<compile_context>
chip_gen: v7x
topology: tpu7x:2x2x1
jax: 0.10.0
libtpu: 0.0.40
codegen_flags: <defaults>
</compile_context>

<pallas_src>
import functools

import jax
import jax.numpy as jnp
from jax.experimental import pallas as pl
from jax.experimental.pallas import tpu as pltpu


# --------------------------------------------------------------------------
# In-kernel helpers
# --------------------------------------------------------------------------
def _conv3x3_from_padded(pad_ref, w_ref, H, W, Cin, use_im2col):
    """3x3 'same' conv from a zero-padded (H+2, W+2, Cin) bf16 VMEM scratch.

    Returns an (H*W, Cout) f32 accumulator.
      use_im2col=True  : w_ref is (9*Cin, Cout)  -> one K=9*Cin contraction.
      use_im2col=False : w_ref is (9, Cin, Cout) -> 9 tap matmuls, accumulated.
    Tap / weight ordering is (dy, dx, cin), matching the wrapper's
    (KH, KW, Cin, Cout) weight reshape.
    """
    if use_im2col:
        taps = []
        for dy in range(3):
            for dx in range(3):
                tap = pad_ref[dy:dy + H, dx:dx + W, :]        # (H, W, Cin) bf16
                taps.append(tap.reshape(H * W, Cin))          # free leading merge
        patches = jnp.concatenate(taps, axis=1)               # (H*W, 9*Cin)
        return jnp.dot(patches, w_ref[...],
                       preferred_element_type=jnp.float32)    # (H*W, Cout) f32

    acc = None
    for dy in range(3):
        for dx in range(3):
            tap = pad_ref[dy:dy + H, dx:dx + W, :].reshape(H * W, Cin)
            part = jnp.dot(tap, w_ref[dy * 3 + dx],
                           preferred_element_type=jnp.float32)
            acc = part if acc is None else acc + part
    return acc                                                 # (H*W, Cout) f32


def _zero_border(pad_ref, H, W, C):
    """Zero only the 1-pixel border of a (H+2, W+2, C) padded scratch."""
    z_row = jnp.zeros((1, W + 2, C), dtype=pad_ref.dtype)
    z_col = jnp.zeros((H + 2, 1, C), dtype=pad_ref.dtype)
    pad_ref[0:1, :, :] = z_row
    pad_ref[H + 1:H + 2, :, :] = z_row
    pad_ref[:, 0:1, :] = z_col
    pad_ref[:, W + 1:W + 2, :] = z_col


# --------------------------------------------------------------------------
# Fused basic-block kernel (one grid step == one batch image)
# --------------------------------------------------------------------------
def _basic_block_kernel(x_ref, w1_ref, b1_ref, w2_ref, b2_ref, o_ref,
                        xpad_ref, mpad_ref, *, H, W, Cin, Cout, use_im2col):
    # Border-only zeroing, every step (scratch persists across steps and is
    # per-core under megacore, so never gate this on program_id).
    _zero_border(xpad_ref, H, W, Cin)
    _zero_border(mpad_ref, H, W, Cout)

    # ---- conv1: write the input once into the bf16 padded scratch ----------
    x = x_ref[0]                                               # (H, W, Cin) f32
    xpad_ref[1:H + 1, 1:W + 1, :] = x.astype(jnp.bfloat16)

    acc1 = _conv3x3_from_padded(xpad_ref, w1_ref, H, W, Cin, use_im2col)
    # bn1 scale folded into w1; only shift + relu remain here (f32).
    out1 = jnp.maximum(acc1 + b1_ref[...], 0.0)                # (H*W, Cout) f32

    # ---- conv2 on the VMEM-resident intermediate (no HBM round trip) -------
    mpad_ref[1:H + 1, 1:W + 1, :] = out1.reshape(H, W, Cout).astype(jnp.bfloat16)

    acc2 = _conv3x3_from_padded(mpad_ref, w2_ref, H, W, Cout, use_im2col)
    out2 = (acc2 + b2_ref[...]).reshape(H, W, Cout) + x        # bn2 + identity (f32)
    o_ref[0] = jnp.maximum(out2, 0.0).astype(o_ref.dtype)      # final relu


# --------------------------------------------------------------------------
# Wrapper / glue
# --------------------------------------------------------------------------
def _fold_bn(gamma, beta, mean, var, eps=1e-5):
    scale = gamma / jnp.sqrt(var + eps)                        # (C,)  f32
    shift = (beta - mean * scale).reshape(1, -1)               # (1,C) f32
    return scale, shift


def basic_block_forward(x_nchw, params):
    """params: dict with w1, w2 (PyTorch OIHW) and bn1, bn2 = (g, b, mean, var)."""
    N, C, H, W = x_nchw.shape
    Cout, Cin = params["w1"].shape[:2]
    assert Cin == C and Cout == C, "identity shortcut requires Cin == Cout"

    # For wide channels (ResNet18 layers 2-4) accumulate 9 tap matmuls instead
    # of materializing a 9x-duplicated im2col slab; for C=64 keep K=9*C fed.
    use_im2col = C < 128

    # NCHW -> NHWC
    x = jnp.transpose(x_nchw, (0, 2, 3, 1))

    s1, b1 = _fold_bn(*params["bn1"])
    s2, b2 = _fold_bn(*params["bn2"])

    def prep_w(w_oihw, scale):
        # OIHW -> (KH, KW, Cin, Cout); fold BN scale in f32, then cast to bf16.
        w = jnp.transpose(w_oihw, (2, 3, 1, 0))
        w = (w * scale.reshape(1, 1, 1, -1)).astype(jnp.bfloat16)
        ci, co = w.shape[2], w.shape[3]
        return w.reshape(9 * ci, co) if use_im2col else w.reshape(9, ci, co)

    w1 = prep_w(params["w1"], s1)
    w2 = prep_w(params["w2"], s2)

    kernel = functools.partial(_basic_block_kernel, H=H, W=W, Cin=C, Cout=Cout,
                               use_im2col=use_im2col)

    def full_spec(arr):  # weights / bn shifts: one block == the full array
        nd = arr.ndim
        return pl.BlockSpec(arr.shape, lambda n, _nd=nd: (0,) * _nd)

    out = pl.pallas_call(
        kernel,
        out_shape=jax.ShapeDtypeStruct((N, H, W, Cout), jnp.float32),
        grid_spec=pltpu.PrefetchScalarGridSpec(
            num_scalar_prefetch=0,
            grid=(N,),
            in_specs=[
                pl.BlockSpec((1, H, W, C), lambda n: (n, 0, 0, 0)),
                full_spec(w1), full_spec(b1),
                full_spec(w2), full_spec(b2),
            ],
            out_specs=pl.BlockSpec((1, H, W, Cout), lambda n: (n, 0, 0, 0)),
            scratch_shapes=[
                pltpu.VMEM((H + 2, W + 2, C), jnp.bfloat16),     # padded input
                pltpu.VMEM((H + 2, W + 2, Cout), jnp.bfloat16),  # padded conv1 act
            ],
        ),
        compiler_params=pltpu.CompilerParams(
            dimension_semantics=("parallel",),        # megacore sharding on v7x
            vmem_limit_bytes=32 * 1024 * 1024,        # safe on v5e/v6e/v7x
        ),
    )(x, w1, b1, w2, b2)

    return jnp.transpose(out, (0, 3, 1, 2))                     # back to NCHW


# --------------------------------------------------------------------------
# Pure-JAX reference (NCHW) for a correctness check
# --------------------------------------------------------------------------
def reference_block(x, params):
    def conv(x, w):
        return jax.lax.conv_general_dilated(
            x, w, (1, 1), ((1, 1), (1, 1)),
            dimension_numbers=("NCHW", "OIHW", "NCHW"),
            precision=jax.lax.Precision.HIGHEST,
        )

    def bn(x, p):
        g, b, m, v = p
        inv = g / jnp.sqrt(v + 1e-5)
        return (x - m[None, :, None, None]) * inv[None, :, None, None] \
            + b[None, :, None, None]

    out = jax.nn.relu(bn(conv(x, params["w1"]), params["bn1"]))
    out = bn(conv(out, params["w2"]), params["bn2"]) + x
    return jax.nn.relu(out)


if __name__ == "__main__":
    N, C, H, W = 2, 4, 16, 16          # in_channels == out_channels, padding=1
    key = jax.random.PRNGKey(0)
    ks = jax.random.split(key, 11)

    x = jax.random.normal(ks[0], (N, C, H, W), jnp.float32)

    params = {
        "w1": 0.1 * jax.random.normal(ks[1], (C, C, 3, 3), jnp.float32),
        "w2": 0.1 * jax.random.normal(ks[2], (C, C, 3, 3), jnp.float32),
        "bn1": (
            jax.random.uniform(ks[3], (C,), jnp.float32, 0.5, 1.5),   # gamma
            0.1 * jax.random.normal(ks[4], (C,), jnp.float32),        # beta
            0.1 * jax.random.normal(ks[5], (C,), jnp.float32),        # running_mean
            jax.random.uniform(ks[6], (C,), jnp.float32, 0.5, 1.5),   # running_var
        ),
        "bn2": (
            jax.random.uniform(ks[7], (C,), jnp.float32, 0.5, 1.5),
            0.1 * jax.random.normal(ks[8], (C,), jnp.float32),
            0.1 * jax.random.normal(ks[9], (C,), jnp.float32),
            jax.random.uniform(ks[10], (C,), jnp.float32, 0.5, 1.5),
        ),
    }

    out = jax.block_until_ready(basic_block_forward(x, params))
    ref = jax.block_until_ready(reference_block(x, params))

    assert out.shape == (N, C, H, W), out.shape
    # bf16 MXU operands / bf16 intermediate vs an f32-HIGHEST reference.
    assert jnp.allclose(out, ref, rtol=2e-2, atol=2e-2), \
        float(jnp.max(jnp.abs(out - ref)))

    print("KERNEL_OK")
</pallas_src>

<mosaic_0001>
module attributes {stable_mosaic.version = 11 : i64} {
  func.func @_basic_block_kernel(%arg0: i32, %arg1: memref<1x16x16x4xf32, #tpu.memory_space<vmem>>, %arg2: memref<36x4xbf16, #tpu.memory_space<vmem>>, %arg3: memref<1x4xf32, #tpu.memory_space<vmem>>, %arg4: memref<36x4xbf16, #tpu.memory_space<vmem>>, %arg5: memref<1x4xf32, #tpu.memory_space<vmem>>, %arg6: memref<1x16x16x4xf32, #tpu.memory_space<vmem>>, %arg7: memref<18x18x4xbf16, #tpu.memory_space<vmem>>, %arg8: memref<18x18x4xbf16, #tpu.memory_space<vmem>>) attributes {dimension_semantics = [#tpu.dimension_semantics<parallel>], iteration_bounds = array<i64: 2>, scalar_prefetch = 0 : i64, scratch_operands = 2 : i64, tpu.core_type = #tpu.core_type<tc>, window_params = [{transform_indices = @transform_0, window_bounds = array<i64: 1, 16, 16, 4>}, {pipeline_mode = #tpu.pipeline_mode<synchronous>, transform_indices = @transform_1, window_bounds = array<i64: 36, 4>}, {pipeline_mode = #tpu.pipeline_mode<synchronous>, transform_indices = @transform_2, window_bounds = array<i64: 1, 4>}, {pipeline_mode = #tpu.pipeline_mode<synchronous>, transform_indices = @transform_3, window_bounds = array<i64: 36, 4>}, {pipeline_mode = #tpu.pipeline_mode<synchronous>, transform_indices = @transform_4, window_bounds = array<i64: 1, 4>}, {transform_indices = @transform_5, window_bounds = array<i64: 1, 16, 16, 4>}]} {
    %cst = arith.constant 0.000000e+00 : bf16
    %0 = vector.broadcast %cst : bf16 to vector<1x18x4xbf16>
    %cst_0 = arith.constant 0.000000e+00 : bf16
    %1 = vector.broadcast %cst_0 : bf16 to vector<18x1x4xbf16>
    %c0 = arith.constant 0 : index
    %c0_1 = arith.constant 0 : index
    %c0_2 = arith.constant 0 : index
    %2 = vector.load %arg7[%c0, %c0_1, %c0_2] : memref<18x18x4xbf16, #tpu.memory_space<vmem>>, vector<1x18x4xbf16>
    tpu.vector_store %arg7[%c0, %c0_1, %c0_2], %0 {strides = array<i32>} : memref<18x18x4xbf16, #tpu.memory_space<vmem>>, vector<1x18x4xbf16>,
    %c17 = arith.constant 17 : index
    %c0_3 = arith.constant 0 : index
    %c0_4 = arith.constant 0 : index
    %3 = vector.load %arg7[%c17, %c0_3, %c0_4] : memref<18x18x4xbf16, #tpu.memory_space<vmem>>, vector<1x18x4xbf16>
    tpu.vector_store %arg7[%c17, %c0_3, %c0_4], %0 {strides = array<i32>} : memref<18x18x4xbf16, #tpu.memory_space<vmem>>, vector<1x18x4xbf16>,
    %c0_5 = arith.constant 0 : index
    %c0_6 = arith.constant 0 : index
    %c0_7 = arith.constant 0 : index
    %4 = vector.load %arg7[%c0_5, %c0_6, %c0_7] : memref<18x18x4xbf16, #tpu.memory_space<vmem>>, vector<18x1x4xbf16>
    tpu.vector_store %arg7[%c0_5, %c0_6, %c0_7], %1 {strides = array<i32>} : memref<18x18x4xbf16, #tpu.memory_space<vmem>>, vector<18x1x4xbf16>,
    %c0_8 = arith.constant 0 : index
    %c17_9 = arith.constant 17 : index
    %c0_10 = arith.constant 0 : index
    %5 = vector.load %arg7[%c0_8, %c17_9, %c0_10] : memref<18x18x4xbf16, #tpu.memory_space<vmem>>, vector<18x1x4xbf16>
    tpu.vector_store %arg7[%c0_8, %c17_9, %c0_10], %1 {strides = array<i32>} : memref<18x18x4xbf16, #tpu.memory_space<vmem>>, vector<18x1x4xbf16>,
    %cst_11 = arith.constant 0.000000e+00 : bf16
    %6 = vector.broadcast %cst_11 : bf16 to vector<1x18x4xbf16>
    %cst_12 = arith.constant 0.000000e+00 : bf16
    %7 = vector.broadcast %cst_12 : bf16 to vector<18x1x4xbf16>
    %c0_13 = arith.constant 0 : index
    %c0_14 = arith.constant 0 : index
    %c0_15 = arith.constant 0 : index
    %8 = vector.load %arg8[%c0_13, %c0_14, %c0_15] : memref<18x18x4xbf16, #tpu.memory_space<vmem>>, vector<1x18x4xbf16>
    tpu.vector_store %arg8[%c0_13, %c0_14, %c0_15], %6 {strides = array<i32>} : memref<18x18x4xbf16, #tpu.memory_space<vmem>>, vector<1x18x4xbf16>,
    %c17_16 = arith.constant 17 : index
    %c0_17 = arith.constant 0 : index
    %c0_18 = arith.constant 0 : index
    %9 = vector.load %arg8[%c17_16, %c0_17, %c0_18] : memref<18x18x4xbf16, #tpu.memory_space<vmem>>, vector<1x18x4xbf16>
    tpu.vector_store %arg8[%c17_16, %c0_17, %c0_18], %6 {strides = array<i32>} : memref<18x18x4xbf16, #tpu.memory_space<vmem>>, vector<1x18x4xbf16>,
    %c0_19 = arith.constant 0 : index
    %c0_20 = arith.constant 0 : index
    %c0_21 = arith.constant 0 : index
    %10 = vector.load %arg8[%c0_19, %c0_20, %c0_21] : memref<18x18x4xbf16, #tpu.memory_space<vmem>>, vector<18x1x4xbf16>
    tpu.vector_store %arg8[%c0_19, %c0_20, %c0_21], %7 {strides = array<i32>} : memref<18x18x4xbf16, #tpu.memory_space<vmem>>, vector<18x1x4xbf16>,
    %c0_22 = arith.constant 0 : index
    %c17_23 = arith.constant 17 : index
    %c0_24 = arith.constant 0 : index
    %11 = vector.load %arg8[%c0_22, %c17_23, %c0_24] : memref<18x18x4xbf16, #tpu.memory_space<vmem>>, vector<18x1x4xbf16>
    tpu.vector_store %arg8[%c0_22, %c17_23, %c0_24], %7 {strides = array<i32>} : memref<18x18x4xbf16, #tpu.memory_space<vmem>>, vector<18x1x4xbf16>,
    %c0_25 = arith.constant 0 : index
    %c0_26 = arith.constant 0 : index
    %c0_27 = arith.constant 0 : index
    %c0_28 = arith.constant 0 : index
    %12 = vector.load %arg1[%c0_25, %c0_26, %c0_27, %c0_28] : memref<1x16x16x4xf32, #tpu.memory_space<vmem>>, vector<1x16x16x4xf32>
    %13 = vector.shape_cast %12 : vector<1x16x16x4xf32> to vector<16x16x4xf32>
    %14 = arith.truncf %13 : vector<16x16x4xf32> to vector<16x16x4xbf16>
    %c1 = arith.constant 1 : index
    %c1_29 = arith.constant 1 : index
    %c0_30 = arith.constant 0 : index
    %15 = vector.load %arg7[%c1, %c1_29, %c0_30] : memref<18x18x4xbf16, #tpu.memory_space<vmem>>, vector<16x16x4xbf16>
    tpu.vector_store %arg7[%c1, %c1_29, %c0_30], %14 {strides = array<i32>} : memref<18x18x4xbf16, #tpu.memory_space<vmem>>, vector<16x16x4xbf16>,
    %c0_31 = arith.constant 0 : index
    %c0_32 = arith.constant 0 : index
    %c0_33 = arith.constant 0 : index
    %16 = vector.load %arg7[%c0_31, %c0_32, %c0_33] : memref<18x18x4xbf16, #tpu.memory_space<vmem>>, vector<16x16x4xbf16>
    %17 = vector.shape_cast %16 : vector<16x16x4xbf16> to vector<256x4xbf16>
    %c0_34 = arith.constant 0 : index
    %c1_35 = arith.constant 1 : index
    %c0_36 = arith.constant 0 : index
    %18 = vector.load %arg7[%c0_34, %c1_35, %c0_36] : memref<18x18x4xbf16, #tpu.memory_space<vmem>>, vector<16x16x4xbf16>
    %19 = vector.shape_cast %18 : vector<16x16x4xbf16> to vector<256x4xbf16>
    %c0_37 = arith.constant 0 : index
    %c2 = arith.constant 2 : index
    %c0_38 = arith.constant 0 : index
    %20 = vector.load %arg7[%c0_37, %c2, %c0_38] : memref<18x18x4xbf16, #tpu.memory_space<vmem>>, vector<16x16x4xbf16>
    %21 = vector.shape_cast %20 : vector<16x16x4xbf16> to vector<256x4xbf16>
    %c1_39 = arith.constant 1 : index
    %c0_40 = arith.constant 0 : index
    %c0_41 = arith.constant 0 : index
    %22 = vector.load %arg7[%c1_39, %c0_40, %c0_41] : memref<18x18x4xbf16, #tpu.memory_space<vmem>>, vector<16x16x4xbf16>
    %23 = vector.shape_cast %22 : vector<16x16x4xbf16> to vector<256x4xbf16>
    %c1_42 = arith.constant 1 : index
    %c1_43 = arith.constant 1 : index
    %c0_44 = arith.constant 0 : index
    %24 = vector.load %arg7[%c1_42, %c1_43, %c0_44] : memref<18x18x4xbf16, #tpu.memory_space<vmem>>, vector<16x16x4xbf16>
    %25 = vector.shape_cast %24 : vector<16x16x4xbf16> to vector<256x4xbf16>
    %c1_45 = arith.constant 1 : index
    %c2_46 = arith.constant 2 : index
    %c0_47 = arith.constant 0 : index
    %26 = vector.load %arg7[%c1_45, %c2_46, %c0_47] : memref<18x18x4xbf16, #tpu.memory_space<vmem>>, vector<16x16x4xbf16>
    %27 = vector.shape_cast %26 : vector<16x16x4xbf16> to vector<256x4xbf16>
    %c2_48 = arith.constant 2 : index
    %c0_49 = arith.constant 0 : index
    %c0_50 = arith.constant 0 : index
    %28 = vector.load %arg7[%c2_48, %c0_49, %c0_50] : memref<18x18x4xbf16, #tpu.memory_space<vmem>>, vector<16x16x4xbf16>
    %29 = vector.shape_cast %28 : vector<16x16x4xbf16> to vector<256x4xbf16>
    %c2_51 = arith.constant 2 : index
    %c1_52 = arith.constant 1 : index
    %c0_53 = arith.constant 0 : index
    %30 = vector.load %arg7[%c2_51, %c1_52, %c0_53] : memref<18x18x4xbf16, #tpu.memory_space<vmem>>, vector<16x16x4xbf16>
    %31 = vector.shape_cast %30 : vector<16x16x4xbf16> to vector<256x4xbf16>
    %c2_54 = arith.constant 2 : index
    %c2_55 = arith.constant 2 : index
    %c0_56 = arith.constant 0 : index
    %32 = vector.load %arg7[%c2_54, %c2_55, %c0_56] : memref<18x18x4xbf16, #tpu.memory_space<vmem>>, vector<16x16x4xbf16>
    %33 = vector.shape_cast %32 : vector<16x16x4xbf16> to vector<256x4xbf16>
    %34 = tpu.concatenate %17, %19, %21, %23, %25, %27, %29, %31, %33 in 1 : vector<256x4xbf16>, vector<256x4xbf16>, vector<256x4xbf16>, vector<256x4xbf16>, vector<256x4xbf16>, vector<256x4xbf16>, vector<256x4xbf16>, vector<256x4xbf16>, vector<256x4xbf16> -> vector<256x36xbf16>
    %c0_57 = arith.constant 0 : index
    %c0_58 = arith.constant 0 : index
    %35 = vector.load %arg2[%c0_57, %c0_58] : memref<36x4xbf16, #tpu.memory_space<vmem>>, vector<36x4xbf16>
    %cst_59 = arith.constant dense<0.000000e+00> : vector<256x4xf32>
    %36 = tpu.matmul %34, %35, %cst_59 {dimension_numbers = #tpu.dot_dimension_numbers<[1], [0], [0], [1], [0, 0, 1, 1], [], []>} : vector<256x36xbf16>, vector<36x4xbf16>, vector<256x4xf32> -> vector<256x4xf32>
    %c0_60 = arith.constant 0 : index
    %c0_61 = arith.constant 0 : index
    %37 = vector.load %arg3[%c0_60, %c0_61] : memref<1x4xf32, #tpu.memory_space<vmem>>, vector<1x4xf32>
    %38 = vector.broadcast %37 : vector<1x4xf32> to vector<256x4xf32>
    %39 = arith.addf %36, %38 : vector<256x4xf32>
    %cst_62 = arith.constant 0.000000e+00 : f32
    %40 = vector.broadcast %cst_62 : f32 to vector<256x4xf32>
    %41 = arith.maximumf %39, %40 : vector<256x4xf32>
    %42 = vector.shape_cast %41 : vector<256x4xf32> to vector<16x16x4xf32>
    %43 = arith.truncf %42 : vector<16x16x4xf32> to vector<16x16x4xbf16>
    %c1_63 = arith.constant 1 : index
    %c1_64 = arith.constant 1 : index
    %c0_65 = arith.constant 0 : index
    %44 = vector.load %arg8[%c1_63, %c1_64, %c0_65] : memref<18x18x4xbf16, #tpu.memory_space<vmem>>, vector<16x16x4xbf16>
    tpu.vector_store %arg8[%c1_63, %c1_64, %c0_65], %43 {strides = array<i32>} : memref<18x18x4xbf16, #tpu.memory_space<vmem>>, vector<16x16x4xbf16>,
    %c0_66 = arith.constant 0 : index
    %c0_67 = arith.constant 0 : index
    %c0_68 = arith.constant 0 : index
    %45 = vector.load %arg8[%c0_66, %c0_67, %c0_68] : memref<18x18x4xbf16, #tpu.memory_space<vmem>>, vector<16x16x4xbf16>
    %46 = vector.shape_cast %45 : vector<16x16x4xbf16> to vector<256x4xbf16>
    %c0_69 = arith.constant 0 : index
    %c1_70 = arith.constant 1 : index
    %c0_71 = arith.constant 0 : index
    %47 = vector.load %arg8[%c0_69, %c1_70, %c0_71] : memref<18x18x4xbf16, #tpu.memory_space<vmem>>, vector<16x16x4xbf16>
    %48 = vector.shape_cast %47 : vector<16x16x4xbf16> to vector<256x4xbf16>
    %c0_72 = arith.constant 0 : index
    %c2_73 = arith.constant 2 : index
    %c0_74 = arith.constant 0 : index
    %49 = vector.load %arg8[%c0_72, %c2_73, %c0_74] : memref<18x18x4xbf16, #tpu.memory_space<vmem>>, vector<16x16x4xbf16>
    %50 = vector.shape_cast %49 : vector<16x16x4xbf16> to vector<256x4xbf16>
    %c1_75 = arith.constant 1 : index
    %c0_76 = arith.constant 0 : index
    %c0_77 = arith.constant 0 : index
    %51 = vector.load %arg8[%c1_75, %c0_76, %c0_77] : memref<18x18x4xbf16, #tpu.memory_space<vmem>>, vector<16x16x4xbf16>
    %52 = vector.shape_cast %51 : vector<16x16x4xbf16> to vector<256x4xbf16>
    %c1_78 = arith.constant 1 : index
    %c1_79 = arith.constant 1 : index
    %c0_80 = arith.constant 0 : index
    %53 = vector.load %arg8[%c1_78, %c1_79, %c0_80] : memref<18x18x4xbf16, #tpu.memory_space<vmem>>, vector<16x16x4xbf16>
    %54 = vector.shape_cast %53 : vector<16x16x4xbf16> to vector<256x4xbf16>
    %c1_81 = arith.constant 1 : index
    %c2_82 = arith.constant 2 : index
    %c0_83 = arith.constant 0 : index
    %55 = vector.load %arg8[%c1_81, %c2_82, %c0_83] : memref<18x18x4xbf16, #tpu.memory_space<vmem>>, vector<16x16x4xbf16>
    %56 = vector.shape_cast %55 : vector<16x16x4xbf16> to vector<256x4xbf16>
    %c2_84 = arith.constant 2 : index
    %c0_85 = arith.constant 0 : index
    %c0_86 = arith.constant 0 : index
    %57 = vector.load %arg8[%c2_84, %c0_85, %c0_86] : memref<18x18x4xbf16, #tpu.memory_space<vmem>>, vector<16x16x4xbf16>
    %58 = vector.shape_cast %57 : vector<16x16x4xbf16> to vector<256x4xbf16>
    %c2_87 = arith.constant 2 : index
    %c1_88 = arith.constant 1 : index
    %c0_89 = arith.constant 0 : index
    %59 = vector.load %arg8[%c2_87, %c1_88, %c0_89] : memref<18x18x4xbf16, #tpu.memory_space<vmem>>, vector<16x16x4xbf16>
    %60 = vector.shape_cast %59 : vector<16x16x4xbf16> to vector<256x4xbf16>
    %c2_90 = arith.constant 2 : index
    %c2_91 = arith.constant 2 : index
    %c0_92 = arith.constant 0 : index
    %61 = vector.load %arg8[%c2_90, %c2_91, %c0_92] : memref<18x18x4xbf16, #tpu.memory_space<vmem>>, vector<16x16x4xbf16>
    %62 = vector.shape_cast %61 : vector<16x16x4xbf16> to vector<256x4xbf16>
    %63 = tpu.concatenate %46, %48, %50, %52, %54, %56, %58, %60, %62 in 1 : vector<256x4xbf16>, vector<256x4xbf16>, vector<256x4xbf16>, vector<256x4xbf16>, vector<256x4xbf16>, vector<256x4xbf16>, vector<256x4xbf16>, vector<256x4xbf16>, vector<256x4xbf16> -> vector<256x36xbf16>
    %c0_93 = arith.constant 0 : index
    %c0_94 = arith.constant 0 : index
    %64 = vector.load %arg4[%c0_93, %c0_94] : memref<36x4xbf16, #tpu.memory_space<vmem>>, vector<36x4xbf16>
    %cst_95 = arith.constant dense<0.000000e+00> : vector<256x4xf32>
    %65 = tpu.matmul %63, %64, %cst_95 {dimension_numbers = #tpu.dot_dimension_numbers<[1], [0], [0], [1], [0, 0, 1, 1], [], []>} : vector<256x36xbf16>, vector<36x4xbf16>, vector<256x4xf32> -> vector<256x4xf32>
    %c0_96 = arith.constant 0 : index
    %c0_97 = arith.constant 0 : index
    %66 = vector.load %arg5[%c0_96, %c0_97] : memref<1x4xf32, #tpu.memory_space<vmem>>, vector<1x4xf32>
    %67 = vector.broadcast %66 : vector<1x4xf32> to vector<256x4xf32>
    %68 = arith.addf %65, %67 : vector<256x4xf32>
    %69 = vector.shape_cast %68 : vector<256x4xf32> to vector<16x16x4xf32>
    %70 = arith.addf %69, %13 : vector<16x16x4xf32>
    %cst_98 = arith.constant 0.000000e+00 : f32
    %71 = vector.broadcast %cst_98 : f32 to vector<16x16x4xf32>
    %72 = arith.maximumf %70, %71 : vector<16x16x4xf32>
    %c0_99 = arith.constant 0 : index
    %c0_100 = arith.constant 0 : index
    %c0_101 = arith.constant 0 : index
    %c0_102 = arith.constant 0 : index
    %73 = vector.load %arg6[%c0_99, %c0_100, %c0_101, %c0_102] : memref<1x16x16x4xf32, #tpu.memory_space<vmem>>, vector<1x16x16x4xf32>
    %74 = vector.shape_cast %73 : vector<1x16x16x4xf32> to vector<16x16x4xf32>
    %75 = vector.shape_cast %72 : vector<16x16x4xf32> to vector<1x16x16x4xf32>
    tpu.vector_store %arg6[%c0_99, %c0_100, %c0_101, %c0_102], %75 {strides = array<i32>} : memref<1x16x16x4xf32, #tpu.memory_space<vmem>>, vector<1x16x16x4xf32>,
    return
  }
  func.func @transform_0(%arg0: i32) -> (i32, i32, i32, i32) {
    %c0_i32 = arith.constant 0 : i32
    %c0_i32_0 = arith.constant 0 : i32
    %c0_i32_1 = arith.constant 0 : i32
    %c0_i32_2 = arith.constant 0 : i32
    return %arg0, %c0_i32, %c0_i32_0, %c0_i32_1 : i32, i32, i32, i32
  }
  func.func @transform_1(%arg0: i32) -> (i32, i32) {
    %c0_i32 = arith.constant 0 : i32
    %c0_i32_0 = arith.constant 0 : i32
    %c0_i32_1 = arith.constant 0 : i32
    return %c0_i32, %c0_i32_0 : i32, i32
  }
  func.func @transform_2(%arg0: i32) -> (i32, i32) {
    %c0_i32 = arith.constant 0 : i32
    %c0_i32_0 = arith.constant 0 : i32
    %c0_i32_1 = arith.constant 0 : i32
    return %c0_i32, %c0_i32_0 : i32, i32
  }
  func.func @transform_3(%arg0: i32) -> (i32, i32) {
    %c0_i32 = arith.constant 0 : i32
    %c0_i32_0 = arith.constant 0 : i32
    %c0_i32_1 = arith.constant 0 : i32
    return %c0_i32, %c0_i32_0 : i32, i32
  }
  func.func @transform_4(%arg0: i32) -> (i32, i32) {
    %c0_i32 = arith.constant 0 : i32
    %c0_i32_0 = arith.constant 0 : i32
    %c0_i32_1 = arith.constant 0 : i32
    return %c0_i32, %c0_i32_0 : i32, i32
  }
  func.func @transform_5(%arg0: i32) -> (i32, i32, i32, i32) {
    %c0_i32 = arith.constant 0 : i32
    %c0_i32_0 = arith.constant 0 : i32
    %c0_i32_1 = arith.constant 0 : i32
    %c0_i32_2 = arith.constant 0 : i32
    return %arg0, %c0_i32, %c0_i32_0, %c0_i32_1 : i32, i32, i32, i32
  }
}

</mosaic_0001>

<llo_original>
// kernel: tpu_custom_call.1
$region0: #{tpu_custom_call.1}
  #allocation0 [shape = 'u32[]', space=smem, size = 0x4, offset = 0x4, fixed_abs, tag = 'smem constant byte address 0x4 - core index']
  #allocation1 [shape = 'u32[144,128]{1,0:T(1,128)}', space=vmem, size = 0x12000, scoped, tag = 'internal scratch']
  #allocation2 [shape = 'bf16[18,18,4]{2,1,0:T(8,128)(2,1)}', space=vmem, size = 0x1b000, scoped, tag = 'scratch operand']
  #allocation3 [shape = 'bf16[18,18,4]{2,1,0:T(8,128)(2,1)}', space=vmem, size = 0x1b000, scoped, tag = 'scratch operand']
  %s0 = inlined_call_operand.vmem [shape: f32[2,16,16,4], index: 0, kind: input, shape index: {}]
  %s1 = inlined_call_operand.vmem [shape: bf16[36,4], index: 1, kind: input, shape index: {}]
  %s2 = inlined_call_operand.vmem [shape: f32[1,4], index: 2, kind: input, shape index: {}]
  %s3 = inlined_call_operand.vmem [shape: bf16[36,4], index: 3, kind: input, shape index: {}]
  %s4 = inlined_call_operand.vmem [shape: f32[1,4], index: 4, kind: input, shape index: {}]
  %s5 = inlined_call_operand.vmem [shape: f32[2,16,16,4], index: 5, kind: output, shape index: {}]
  %s6 = sld [smem:[#allocation0]]
  $region53: #{tpu_custom_call.1} parent=0
    _
  %s8 = ssub.s32 1, %s6
  %s9 = scalar_select 0, %s8, %s6
  loop: start=0, step=1, limit=4
  $region2: #{tpu_custom_call.1} parent=0 // loop_pre_header
    _
  $region3: #{tpu_custom_call.1} parent=0 // loop_header
    %s11 = sphi 0, %s15
    %p12 = scmp.ge.s32.totalorder %s11, 4
    %s21 = sphi 0, %s23
    %s24 = sphi 0, %s21
    %s25 = sphi 0, %s24
    %s41 = sphi 0, %s25
    %s45 = sphi 0, %s45
    %s47 = sphi 0, %s45
    %s48 = sphi 0, %s47
    %s62 = sphi 0, %s48
    %s66 = sphi 0, %s66
    %s68 = sphi 0, %s66
    %s69 = sphi 0, %s68
    %s83 = sphi 0, %s69
    %s87 = sphi 0, %s87
    %s89 = sphi 0, %s87
    %s90 = sphi 0, %s89
    %s104 = sphi 0, %s90
    %s108 = sphi 0, %s108
    %s110 = sphi 0, %s108
    %s111 = sphi 0, %s110
    %s125 = sphi 0, %s111
    %s131 = sphi 0, %s133
    %s134 = sphi 0, %s131
    %s135 = sphi 0, %s134
    %s151 = sphi 0, %s135
  $region4: #{tpu_custom_call.1} parent=0 // loop_header_branch
    %14 = sbr.rel (%p12) target = $region8
  $region5: #{tpu_custom_call.1} parent=0 // loop_body
    %s16 = ssub.s32 %s11, 1
    %s17 = ssub.s32 %s11, 2
    %s18 = sadd.s32 %s11, 1
    %s19 = ssub.s32 %s11, %s18
    %p20 = scmp.eq.s32.totalorder %s19, 0
    %s22 = sadd.s32 %s21, 1
    %s23 = scalar_select %p20, %s21, %s22
    %p26 = pneg %p20
    %p27 = scmp.eq.s32.totalorder %s11, 1
    %p28 = por %p26, %p27
    %p29 = scmp.ne.s32.totalorder %s21, %s24
    %p30 = scmp.eq.s32.totalorder %s11, 0
    %p31 = por %p29, %p30
    %p32 = scmp.ne.s32.totalorder %s21, %s24
    %p33 = scmp.eq.s32.totalorder %s16, 1
    %p34 = por %p32, %p33
    %p35 = scmp.ne.s32.totalorder %s24, %s25
    %p36 = scmp.eq.s32.totalorder %s16, 0
    %p37 = por %p35, %p36
    %p38 = scmp.ne.s32.totalorder %s24, %s25
    %p39 = scmp.eq.s32.totalorder %s17, 1
    %p40 = por %p38, %p39
    %p42 = scmp.ne.s32.totalorder %s25, %s41
    %p43 = scmp.eq.s32.totalorder %s17, 0
    %p44 = por %p42, %p43
    %s46 = sadd.s32 %s45, 1
    %p49 = scmp.eq.s32.totalorder %s11, 1
    %p50 = scmp.ne.s32.totalorder %s45, %s47
    %p51 = scmp.eq.s32.totalorder %s11, 0
    %p52 = por %p50, %p51
    %p53 = scmp.ne.s32.totalorder %s45, %s47
    %p54 = scmp.eq.s32.totalorder %s16, 1
    %p55 = por %p53, %p54
    %p56 = scmp.ne.s32.totalorder %s47, %s48
    %p57 = scmp.eq.s32.totalorder %s16, 0
    %p58 = por %p56, %p57
    %p59 = scmp.ne.s32.totalorder %s47, %s48
    %p60 = scmp.eq.s32.totalorder %s17, 1
    %p61 = por %p59, %p60
    %p63 = scmp.ne.s32.totalorder %s48, %s62
    %p64 = scmp.eq.s32.totalorder %s17, 0
    %p65 = por %p63, %p64
    %s67 = sadd.s32 %s66, 1
    %p70 = scmp.eq.s32.totalorder %s11, 1
    %p71 = scmp.ne.s32.totalorder %s66, %s68
    %p72 = scmp.eq.s32.totalorder %s11, 0
    %p73 = por %p71, %p72
    %p74 = scmp.ne.s32.totalorder %s66, %s68
    %p75 = scmp.eq.s32.totalorder %s16, 1
    %p76 = por %p74, %p75
    %p77 = scmp.ne.s32.totalorder %s68, %s69
    %p78 = scmp.eq.s32.totalorder %s16, 0
    %p79 = por %p77, %p78
    %p80 = scmp.ne.s32.totalorder %s68, %s69
    %p81 = scmp.eq.s32.totalorder %s17, 1
    %p82 = por %p80, %p81
    %p84 = scmp.ne.s32.totalorder %s69, %s83
    %p85 = scmp.eq.s32.totalorder %s17, 0
    %p86 = por %p84, %p85
    %s88 = sadd.s32 %s87, 1
    %p91 = scmp.eq.s32.totalorder %s11, 1
    %p92 = scmp.ne.s32.totalorder %s87, %s89
    %p93 = scmp.eq.s32.totalorder %s11, 0
    %p94 = por %p92, %p93
    %p95 = scmp.ne.s32.totalorder %s87, %s89
    %p96 = scmp.eq.s32.totalorder %s16, 1
    %p97 = por %p95, %p96
    %p98 = scmp.ne.s32.totalorder %s89, %s90
    %p99 = scmp.eq.s32.totalorder %s16, 0
    %p100 = por %p98, %p99
    %p101 = scmp.ne.s32.totalorder %s89, %s90
    %p102 = scmp.eq.s32.totalorder %s17, 1
    %p103 = por %p101, %p102
    %p105 = scmp.ne.s32.totalorder %s90, %s104
    %p106 = scmp.eq.s32.totalorder %s17, 0
    %p107 = por %p105, %p106
    %s109 = sadd.s32 %s108, 1
    %p112 = scmp.eq.s32.totalorder %s11, 1
    %p113 = scmp.ne.s32.totalorder %s108, %s110
    %p114 = scmp.eq.s32.totalorder %s11, 0
    %p115 = por %p113, %p114
    %p116 = scmp.ne.s32.totalorder %s108, %s110
    %p117 = scmp.eq.s32.totalorder %s16, 1
    %p118 = por %p116, %p117
    %p119 = scmp.ne.s32.totalorder %s110, %s111
    %p120 = scmp.eq.s32.totalorder %s16, 0
    %p121 = por %p119, %p120
    %p122 = scmp.ne.s32.totalorder %s110, %s111
    %p123 = scmp.eq.s32.totalorder %s17, 1
    %p124 = por %p122, %p123
    %p126 = scmp.ne.s32.totalorder %s111, %s125
    %p127 = scmp.eq.s32.totalorder %s17, 0
    %p128 = por %p126, %p127
    %s129 = ssub.s32 %s11, %s18
    %p130 = scmp.eq.s32.totalorder %s129, 0
    %s132 = sadd.s32 %s131, 1
    %s133 = scalar_select %p130, %s131, %s132
    %p136 = pneg %p130
    %p137 = scmp.eq.s32.totalorder %s11, 1
    %p138 = por %p136, %p137
    %p139 = scmp.ne.s32.totalorder %s131, %s134
    %p140 = scmp.eq.s32.totalorder %s11, 0
    %p141 = por %p139, %p140
    %p142 = scmp.ne.s32.totalorder %s131, %s134
    %p143 = scmp.eq.s32.totalorder %s16, 1
    %p144 = por %p142, %p143
    %p145 = scmp.ne.s32.totalorder %s134, %s135
    %p146 = scmp.eq.s32.totalorder %s16, 0
    %p147 = por %p145, %p146
    %p148 = scmp.ne.s32.totalorder %s134, %s135
    %p149 = scmp.eq.s32.totalorder %s17, 1
    %p150 = por %p148, %p149
    %p152 = scmp.ne.s32.totalorder %s135, %s151
    %p153 = scmp.eq.s32.totalorder %s17, 0
    %p154 = por %p152, %p153
    %p155 = scmp.le.s32.totalorder 1, %s11
    %p156 = scmp.lt.s32.totalorder %s11, 3
    %p157 = pnand %p155, %p156
    %p158 = pneg %p157
    // Predicated region
    $region9: #{tpu_custom_call.1} parent=5 // pred_check
      _
    $region10: #{tpu_custom_call.1} parent=5 // pred_check_branch
      %160 = sbr.rel (%p157) target = $region12
    $region11: #{tpu_custom_call.1} parent=5 // pred_region
      %s161 = ssub.s32 %s11, 1
      // Predicated region
      $region13: #{tpu_custom_call.1} parent=11 // pred_check
        %p162 = pneg %p58
      $region14: #{tpu_custom_call.1} parent=11 // pred_check_branch
        %164 = sbr.rel (%p162) target = $region16
      $region15: #{tpu_custom_call.1} parent=11 // pred_region
        _
      $region16: #{tpu_custom_call.1} parent=11 // pred_fallthru
        _
      // Predicated region
      $region17: #{tpu_custom_call.1} parent=11 // pred_check
        %p165 = pneg %p79
      $region18: #{tpu_custom_call.1} parent=11 // pred_check_branch
        %167 = sbr.rel (%p165) target = $region20
      $region19: #{tpu_custom_call.1} parent=11 // pred_region
        _
      $region20: #{tpu_custom_call.1} parent=11 // pred_fallthru
        _
      // Predicated region
      $region21: #{tpu_custom_call.1} parent=11 // pred_check
        %p168 = pneg %p100
      $region22: #{tpu_custom_call.1} parent=11 // pred_check_branch
        %170 = sbr.rel (%p168) target = $region24
      $region23: #{tpu_custom_call.1} parent=11 // pred_region
        _
      $region24: #{tpu_custom_call.1} parent=11 // pred_fallthru
        _
      // Predicated region
      $region25: #{tpu_custom_call.1} parent=11 // pred_check
        %p171 = pneg %p121
      $region26: #{tpu_custom_call.1} parent=11 // pred_check_branch
        %173 = sbr.rel (%p171) target = $region28
      $region27: #{tpu_custom_call.1} parent=11 // pred_region
        _
      $region28: #{tpu_custom_call.1} parent=11 // pred_fallthru
        _
    $region12: #{tpu_custom_call.1} parent=5 // pred_fallthru
      _
    %p174 = scmp.lt.s32.totalorder %s11, 2
    // Predicated region
    $region29: #{tpu_custom_call.1} parent=5 // pred_check
      %p175 = pneg %p174
    $region30: #{tpu_custom_call.1} parent=5 // pred_check_branch
      %177 = sbr.rel (%p175) target = $region32
    $region31: #{tpu_custom_call.1} parent=5 // pred_region
      // Predicated region
      $region33: #{tpu_custom_call.1} parent=31 // pred_check
        %p178 = pneg %p31
      $region34: #{tpu_custom_call.1} parent=31 // pred_check_branch
        %180 = sbr.rel (%p178) target = $region36
      $region35: #{tpu_custom_call.1} parent=31 // pred_region
        %p181 = scmp.lt.s32.totalorder %s11, 1
        %s182 = scalar_select %p181, %s11, 1
        %s183 = smul.addr %s182, 32
        %s184 = smul.addr %s183, 8
        %s185 = scalar_lea.vmem %s0, %s184
      $region36: #{tpu_custom_call.1} parent=31 // pred_fallthru
        _
    $region32: #{tpu_custom_call.1} parent=5 // pred_fallthru
      _
    %p186 = scmp.le.s32.totalorder 1, %s11
    %p187 = scmp.lt.s32.totalorder %s11, 3
    %p188 = pnand %p186, %p187
    %p189 = pneg %p188
    // Predicated region
    $region37: #{tpu_custom_call.1} parent=5 // pred_check
      _
    $region38: #{tpu_custom_call.1} parent=5 // pred_check_branch
      %191 = sbr.rel (%p188) target = $region40
    $region39: #{tpu_custom_call.1} parent=5 // pred_region
      %s192 = ssub.s32 %s11, 1
      %p193 = scmp.lt.s32.totalorder %s16, 1
      %s194 = scalar_select %p193, %s16, 1
      %s195 = smul.addr %s194, 32
      %s196 = smul.addr %s195, 8
      %s197 = scalar_lea.vmem %s0, %s196
      %p198 = pneg %p37
      %p199 = pneg %p34
      %p200 = pneg %p58
      %p201 = pneg %p55
      %p202 = pneg %p79
      %p203 = pneg %p76
      %p204 = pneg %p100
      %p205 = pneg %p97
      %p206 = pneg %p121
      %p207 = pneg %p118
      %p208 = pneg %p147
      %p209 = pneg %p144
      %p210 = scmp.lt.s32.totalorder %s16, 1
      %s211 = scalar_select %p210, %s16, 1
      %s212 = smul.addr %s211, 32
      %s213 = smul.addr %s212, 8
      %s214 = scalar_lea.vmem %s5, %s213
      %p215 = scmp.lt.s32.totalorder %s16, 1
      %s216 = scalar_select %p215, %s16, 1
      %s217 = smul.addr %s216, 32
      %s218 = smul.addr %s217, 8
      %s219 = scalar_lea.vmem %s0, %s218
      %p220 = scmp.lt.s32.totalorder %s16, 1
      %s221 = scalar_select %p220, %s16, 1
      %s222 = smul.addr %s221, 32
      %s223 = smul.addr %s222, 8
      %s224 = scalar_lea.vmem %s5, %s223
      %vm226 = vcmask 27648
      %227 = vst.msk [vmem:[#allocation2] sm:$0xf] %vm226, 0
      %228 = vst.msk [vmem:[#allocation2 + $0x4] sm:$0xf] %vm226, 0
      %vm229 = vcmask 24576
      %230 = vst.msk [vmem:[#allocation2 + $0x8] sm:$0x1] %vm229, 0
      %s231 = scalar_lea.vmem [#allocation2], 204
      %232 = vst.msk [vmem:[%s231] sm:$0xf] %vm226, 0
      %233 = vst.msk [vmem:[%s231 + $0x4] sm:$0xf] %vm226, 0
      %234 = vst.msk [vmem:[%s231 + $0x8] sm:$0x1] %vm229, 0
      %vm235 = vcmask 24576
      %vm236 = vsmask.f32 256
      %vm237 = vmand %vm235, %vm236
      %v238 = vld [vmem:[#allocation2] sm:$0x1]
      %v239 = vsel %vm237, 0, %v238
      %240 = vst [vmem:[#allocation2] sm:$0x1] %v239
      %v241 = vld [vmem:[#allocation2 + $0xc] sm:$0x1]
      %v242 = vsel %vm237, 0, %v241
      %243 = vst [vmem:[#allocation2 + $0xc] sm:$0x1] %v242
      %v244 = vld [vmem:[#allocation2 + $0x18] sm:$0x1]
      %v245 = vsel %vm237, 0, %v244
      %246 = vst [vmem:[#allocation2 + $0x18] sm:$0x1] %v245
      %v247 = vld [vmem:[#allocation2 + $0x24] sm:$0x1]
      %v248 = vsel %vm237, 0, %v247
      %249 = vst [vmem:[#allocation2 + $0x24] sm:$0x1] %v248
      %v250 = vld [vmem:[#allocation2 + $0x30] sm:$0x1]
      %v251 = vsel %vm237, 0, %v250
      %252 = vst [vmem:[#allocation2 + $0x30] sm:$0x1] %v251
      %v253 = vld [vmem:[#allocation2 + $0x3c] sm:$0x1]
      %v254 = vsel %vm237, 0, %v253
      %255 = vst [vmem:[#allocation2 + $0x3c] sm:$0x1] %v254
      %v256 = vld [vmem:[#allocation2 + $0x48] sm:$0x1]
      %v257 = vsel %vm237, 0, %v256
      %258 = vst [vmem:[#allocation2 + $0x48] sm:$0x1] %v257
      %v259 = vld [vmem:[#allocation2 + $0x54] sm:$0x1]
      %v260 = vsel %vm237, 0, %v259
      %261 = vst [vmem:[#allocation2 + $0x54] sm:$0x1] %v260
      %v262 = vld [vmem:[#allocation2 + $0x60] sm:$0x1]
      %v263 = vsel %vm237, 0, %v262
      %264 = vst [vmem:[#allocation2 + $0x60] sm:$0x1] %v263
      %v265 = vld [vmem:[#allocation2 + $0x6c] sm:$0x1]
      %v266 = vsel %vm237, 0, %v265
      %267 = vst [vmem:[#allocation2 + $0x6c] sm:$0x1] %v266
      %v268 = vld [vmem:[#allocation2 + $0x78] sm:$0x1]
      %v269 = vsel %vm237, 0, %v268
      %270 = vst [vmem:[#allocation2 + $0x78] sm:$0x1] %v269
      %v271 = vld [vmem:[#allocation2 + $0x84] sm:$0x1]
      %v272 = vsel %vm237, 0, %v271
      %273 = vst [vmem:[#allocation2 + $0x84] sm:$0x1] %v272
      %v274 = vld [vmem:[#allocation2 + $0x90] sm:$0x1]
      %v275 = vsel %vm237, 0, %v274
      %276 = vst [vmem:[#allocation2 + $0x90] sm:$0x1] %v275
      %v277 = vld [vmem:[#allocation2 + $0x9c] sm:$0x1]
      %v278 = vsel %vm237, 0, %v277
      %279 = vst [vmem:[#allocation2 + $0x9c] sm:$0x1] %v278
      %v280 = vld [vmem:[#allocation2 + $0xa8] sm:$0x1]
      %v281 = vsel %vm237, 0, %v280
      %282 = vst [vmem:[#allocation2 + $0xa8] sm:$0x1] %v281
      %v283 = vld [vmem:[#allocation2 + $0xb4] sm:$0x1]
      %v284 = vsel %vm237, 0, %v283
      %285 = vst [vmem:[#allocation2 + $0xb4] sm:$0x1] %v284
      %v286 = vld [vmem:[#allocation2 + $0xc0] sm:$0x1]
      %v287 = vsel %vm237, 0, %v286
      %288 = vst [vmem:[#allocation2 + $0xc0] sm:$0x1] %v287
      %v289 = vld [vmem:[#allocation2 + $0xcc] sm:$0x1]
      %v290 = vsel %vm237, 0, %v289
      %291 = vst [vmem:[#allocation2 + $0xcc] sm:$0x1] %v290
      %vm292 = vsmask.f32 7938
      %vm293 = vmand %vm235, %vm292
      %v294 = vld [vmem:[#allocation2 + $0x8] sm:$0x1]
      %v295 = vsel %vm293, 0, %v294
      %296 = vst [vmem:[#allocation2 + $0x8] sm:$0x1] %v295
      %v297 = vld [vmem:[#allocation2 + $0x14] sm:$0x1]
      %v298 = vsel %vm293, 0, %v297
      %299 = vst [vmem:[#allocation2 + $0x14] sm:$0x1] %v298
      %v300 = vld [vmem:[#allocation2 + $0x20] sm:$0x1]
      %v301 = vsel %vm293, 0, %v300
      %302 = vst [vmem:[#allocation2 + $0x20] sm:$0x1] %v301
      %v303 = vld [vmem:[#allocation2 + $0x2c] sm:$0x1]
      %v304 = vsel %vm293, 0, %v303
      %305 = vst [vmem:[#allocation2 + $0x2c] sm:$0x1] %v304
      %v306 = vld [vmem:[#allocation2 + $0x38] sm:$0x1]
      %v307 = vsel %vm293, 0, %v306
      %308 = vst [vmem:[#allocation2 + $0x38] sm:$0x1] %v307
      %v309 = vld [vmem:[#allocation2 + $0x44] sm:$0x1]
      %v310 = vsel %vm293, 0, %v309
      %311 = vst [vmem:[#allocation2 + $0x44] sm:$0x1] %v310
      %v312 = vld [vmem:[#allocation2 + $0x50] sm:$0x1]
      %v313 = vsel %vm293, 0, %v312
      %314 = vst [vmem:[#allocation2 + $0x50] sm:$0x1] %v313
      %v315 = vld [vmem:[#allocation2 + $0x5c] sm:$0x1]
      %v316 = vsel %vm293, 0, %v315
      %317 = vst [vmem:[#allocation2 + $0x5c] sm:$0x1] %v316
      %v318 = vld [vmem:[#allocation2 + $0x68] sm:$0x1]
      %v319 = vsel %vm293, 0, %v318
      %320 = vst [vmem:[#allocation2 + $0x68] sm:$0x1] %v319
      %v321 = vld [vmem:[#allocation2 + $0x74] sm:$0x1]
      %v322 = vsel %vm293, 0, %v321
      %323 = vst [vmem:[#allocation2 + $0x74] sm:$0x1] %v322
      %v324 = vld [vmem:[#allocation2 + $0x80] sm:$0x1]
      %v325 = vsel %vm293, 0, %v324
      %326 = vst [vmem:[#allocation2 + $0x80] sm:$0x1] %v325
      %v327 = vld [vmem:[#allocation2 + $0x8c] sm:$0x1]
      %v328 = vsel %vm293, 0, %v327
      %329 = vst [vmem:[#allocation2 + $0x8c] sm:$0x1] %v328
      %v330 = vld [vmem:[#allocation2 + $0x98] sm:$0x1]
      %v331 = vsel %vm293, 0, %v330
      %332 = vst [vmem:[#allocation2 + $0x98] sm:$0x1] %v331
      %v333 = vld [vmem:[#allocation2 + $0xa4] sm:$0x1]
      %v334 = vsel %vm293, 0, %v333
      %335 = vst [vmem:[#allocation2 + $0xa4] sm:$0x1] %v334
      %v336 = vld [vmem:[#allocation2 + $0xb0] sm:$0x1]
      %v337 = vsel %vm293, 0, %v336
      %338 = vst [vmem:[#allocation2 + $0xb0] sm:$0x1] %v337
      %v339 = vld [vmem:[#allocation2 + $0xbc] sm:$0x1]
      %v340 = vsel %vm293, 0, %v339
      %341 = vst [vmem:[#allocation2 + $0xbc] sm:$0x1] %v340
      %v342 = vld [vmem:[#allocation2 + $0xc8] sm:$0x1]
      %v343 = vsel %vm293, 0, %v342
      %344 = vst [vmem:[#allocation2 + $0xc8] sm:$0x1] %v343
      %v345 = vld [vmem:[#allocation2 + $0xd4] sm:$0x1]
      %v346 = vsel %vm293, 0, %v345
      %347 = vst [vmem:[#allocation2 + $0xd4] sm:$0x1] %v346
      %348 = vst.msk [vmem:[#allocation3] sm:$0xf] %vm226, 0
      %349 = vst.msk [vmem:[#allocation3 + $0x4] sm:$0xf] %vm226, 0
      %350 = vst.msk [vmem:[#allocation3 + $0x8] sm:$0x1] %vm229, 0
      %s351 = scalar_lea.vmem [#allocation3], 204
      %352 = vst.msk [vmem:[%s351] sm:$0xf] %vm226, 0
      %353 = vst.msk [vmem:[%s351 + $0x4] sm:$0xf] %vm226, 0
      %354 = vst.msk [vmem:[%s351 + $0x8] sm:$0x1] %vm229, 0
      %v355 = vld [vmem:[#allocation3] sm:$0x1]
      %v356 = vsel %vm237, 0, %v355
      %357 = vst [vmem:[#allocation3] sm:$0x1] %v356
      %v358 = vld [vmem:[#allocation3 + $0xc] sm:$0x1]
      %v359 = vsel %vm237, 0, %v358
      %360 = vst [vmem:[#allocation3 + $0xc] sm:$0x1] %v359
      %v361 = vld [vmem:[#allocation3 + $0x18] sm:$0x1]
      %v362 = vsel %vm237, 0, %v361
      %363 = vst [vmem:[#allocation3 + $0x18] sm:$0x1] %v362
      %v364 = vld [vmem:[#allocation3 + $0x24] sm:$0x1]
      %v365 = vsel %vm237, 0, %v364
      %366 = vst [vmem:[#allocation3 + $0x24] sm:$0x1] %v365
      %v367 = vld [vmem:[#allocation3 + $0x30] sm:$0x1]
      %v368 = vsel %vm237, 0, %v367
      %369 = vst [vmem:[#allocation3 + $0x30] sm:$0x1] %v368
      %v370 = vld [vmem:[#allocation3 + $0x3c] sm:$0x1]
      %v371 = vsel %vm237, 0, %v370
      %372 = vst [vmem:[#allocation3 + $0x3c] sm:$0x1] %v371
      %v373 = vld [vmem:[#allocation3 + $0x48] sm:$0x1]
      %v374 = vsel %vm237, 0, %v373
      %375 = vst [vmem:[#allocation3 + $0x48] sm:$0x1] %v374
      %v376 = vld [vmem:[#allocation3 + $0x54] sm:$0x1]
      %v377 = vsel %vm237, 0, %v376
      %378 = vst [vmem:[#allocation3 + $0x54] sm:$0x1] %v377
      %v379 = vld [vmem:[#allocation3 + $0x60] sm:$0x1]
      %v380 = vsel %vm237, 0, %v379
      %381 = vst [vmem:[#allocation3 + $0x60] sm:$0x1] %v380
      %v382 = vld [vmem:[#allocation3 + $0x6c] sm:$0x1]
      %v383 = vsel %vm237, 0, %v382
      %384 = vst [vmem:[#allocation3 + $0x6c] sm:$0x1] %v383
      %v385 = vld [vmem:[#allocation3 + $0x78] sm:$0x1]
      %v386 = vsel %vm237, 0, %v385
      %387 = vst [vmem:[#allocation3 + $0x78] sm:$0x1] %v386
      %v388 = vld [vmem:[#allocation3 + $0x84] sm:$0x1]
      %v389 = vsel %vm237, 0, %v388
      %390 = vst [vmem:[#allocation3 + $0x84] sm:$0x1] %v389
      %v391 = vld [vmem:[#allocation3 + $0x90] sm:$0x1]
      %v392 = vsel %vm237, 0, %v391
      %393 = vst [vmem:[#allocation3 + $0x90] sm:$0x1] %v392
      %v394 = vld [vmem:[#allocation3 + $0x9c] sm:$0x1]
      %v395 = vsel %vm237, 0, %v394
      %396 = vst [vmem:[#allocation3 + $0x9c] sm:$0x1] %v395
      %v397 = vld [vmem:[#allocation3 + $0xa8] sm:$0x1]
      %v398 = vsel %vm237, 0, %v397
      %399 = vst [vmem:[#allocation3 + $0xa8] sm:$0x1] %v398
      %v400 = vld [vmem:[#allocation3 + $0xb4] sm:$0x1]
      %v401 = vsel %vm237, 0, %v400
      %402 = vst [vmem:[#allocation3 + $0xb4] sm:$0x1] %v401
      %v403 = vld [vmem:[#allocation3 + $0xc0] sm:$0x1]
      %v404 = vsel %vm237, 0, %v403
      %405 = vst [vmem:[#allocation3 + $0xc0] sm:$0x1] %v404
      %v406 = vld [vmem:[#allocation3 + $0xcc] sm:$0x1]
      %v407 = vsel %vm237, 0, %v406
      %408 = vst [vmem:[#allocation3 + $0xcc] sm:$0x1] %v407
      %v409 = vld [vmem:[#allocation3 + $0x8] sm:$0x1]
      %v410 = vsel %vm293, 0, %v409
      %411 = vst [vmem:[#allocation3 + $0x8] sm:$0x1] %v410
      %v412 = vld [vmem:[#allocation3 + $0x14] sm:$0x1]
      %v413 = vsel %vm293, 0, %v412
      %414 = vst [vmem:[#allocation3 + $0x14] sm:$0x1] %v413
      %v415 = vld [vmem:[#allocation3 + $0x20] sm:$0x1]
      %v416 = vsel %vm293, 0, %v415
      %417 = vst [vmem:[#allocation3 + $0x20] sm:$0x1] %v416
      %v418 = vld [vmem:[#allocation3 + $0x2c] sm:$0x1]
      %v419 = vsel %vm293, 0, %v418
      %420 = vst [vmem:[#allocation3 + $0x2c] sm:$0x1] %v419
      %v421 = vld [vmem:[#allocation3 + $0x38] sm:$0x1]
      %v422 = vsel %vm293, 0, %v421
      %423 = vst [vmem:[#allocation3 + $0x38] sm:$0x1] %v422
      %v424 = vld [vmem:[#allocation3 + $0x44] sm:$0x1]
      %v425 = vsel %vm293, 0, %v424
      %426 = vst [vmem:[#allocation3 + $0x44] sm:$0x1] %v425
      %v427 = vld [vmem:[#allocation3 + $0x50] sm:$0x1]
      %v428 = vsel %vm293, 0, %v427
      %429 = vst [vmem:[#allocation3 + $0x50] sm:$0x1] %v428
      %v430 = vld [vmem:[#allocation3 + $0x5c] sm:$0x1]
      %v431 = vsel %vm293, 0, %v430
      %432 = vst [vmem:[#allocation3 + $0x5c] sm:$0x1] %v431
      %v433 = vld [vmem:[#allocation3 + $0x68] sm:$0x1]
      %v434 = vsel %vm293, 0, %v433
      %435 = vst [vmem:[#allocation3 + $0x68] sm:$0x1] %v434
      %v436 = vld [vmem:[#allocation3 + $0x74] sm:$0x1]
      %v437 = vsel %vm293, 0, %v436
      %438 = vst [vmem:[#allocation3 + $0x74] sm:$0x1] %v437
      %v439 = vld [vmem:[#allocation3 + $0x80] sm:$0x1]
      %v440 = vsel %vm293, 0, %v439
      %441 = vst [vmem:[#allocation3 + $0x80] sm:$0x1] %v440
      %v442 = vld [vmem:[#allocation3 + $0x8c] sm:$0x1]
      %v443 = vsel %vm293, 0, %v442
      %444 = vst [vmem:[#allocation3 + $0x8c] sm:$0x1] %v443
      %v445 = vld [vmem:[#allocation3 + $0x98] sm:$0x1]
      %v446 = vsel %vm293, 0, %v445
      %447 = vst [vmem:[#allocation3 + $0x98] sm:$0x1] %v446
      %v448 = vld [vmem:[#allocation3 + $0xa4] sm:$0x1]
      %v449 = vsel %vm293, 0, %v448
      %450 = vst [vmem:[#allocation3 + $0xa4] sm:$0x1] %v449
      %v451 = vld [vmem:[#allocation3 + $0xb0] sm:$0x1]
      %v452 = vsel %vm293, 0, %v451
      %453 = vst [vmem:[#allocation3 + $0xb0] sm:$0x1] %v452
      %v454 = vld [vmem:[#allocation3 + $0xbc] sm:$0x1]
      %v455 = vsel %vm293, 0, %v454
      %456 = vst [vmem:[#allocation3 + $0xbc] sm:$0x1] %v455
      %v457 = vld [vmem:[#allocation3 + $0xc8] sm:$0x1]
      %v458 = vsel %vm293, 0, %v457
      %459 = vst [vmem:[#allocation3 + $0xc8] sm:$0x1] %v458
      %v460 = vld [vmem:[#allocation3 + $0xd4] sm:$0x1]
      %v461 = vsel %vm293, 0, %v460
      %462 = vst [vmem:[#allocation3 + $0xd4] sm:$0x1] %v461
      %v463 = vld [vmem:[%s219] sm:$0xff]
      %v464 = vld [vmem:[%s219 + $0x8] sm:$0xff]
      %v465 = vld [vmem:[%s219 + $0x10] sm:$0xff]
      %v466 = vld [vmem:[%s219 + $0x18] sm:$0xff]
      %v467 = vld [vmem:[%s219 + $0x20] sm:$0xff]
      %v468 = vld [vmem:[%s219 + $0x28] sm:$0xff]
      %v469 = vld [vmem:[%s219 + $0x30] sm:$0xff]
      %v470 = vld [vmem:[%s219 + $0x38] sm:$0xff]
      %v471 = vld [vmem:[%s219 + $0x40] sm:$0xff]
      %v472 = vld [vmem:[%s219 + $0x48] sm:$0xff]
      %v473 = vld [vmem:[%s219 + $0x50] sm:$0xff]
      %v474 = vld [vmem:[%s219 + $0x58] sm:$0xff]
      %v475 = vld [vmem:[%s219 + $0x60] sm:$0xff]
      %v476 = vld [vmem:[%s219 + $0x68] sm:$0xff]
      %v477 = vld [vmem:[%s219 + $0x70] sm:$0xff]
      %v478 = vld [vmem:[%s219 + $0x78] sm:$0xff]
      %v479 = vld [vmem:[%s219 + $0x80] sm:$0xff]
      %v480 = vld [vmem:[%s219 + $0x88] sm:$0xff]
      %v481 = vld [vmem:[%s219 + $0x90] sm:$0xff]
      %v482 = vld [vmem:[%s219 + $0x98] sm:$0xff]
      %v483 = vld [vmem:[%s219 + $0xa0] sm:$0xff]
      %v484 = vld [vmem:[%s219 + $0xa8] sm:$0xff]
      %v485 = vld [vmem:[%s219 + $0xb0] sm:$0xff]
      %v486 = vld [vmem:[%s219 + $0xb8] sm:$0xff]
      %v487 = vld [vmem:[%s219 + $0xc0] sm:$0xff]
      %v488 = vld [vmem:[%s219 + $0xc8] sm:$0xff]
      %v489 = vld [vmem:[%s219 + $0xd0] sm:$0xff]
      %v490 = vld [vmem:[%s219 + $0xd8] sm:$0xff]
      %v491 = vld [vmem:[%s219 + $0xe0] sm:$0xff]
      %v492 = vld [vmem:[%s219 + $0xe8] sm:$0xff]
      %v493 = vld [vmem:[%s219 + $0xf0] sm:$0xff]
      %v494 = vld [vmem:[%s219 + $0xf8] sm:$0xff]
      %v495 = vpack.c.bf16 %v464, %v463
      %v496 = vpack.c.bf16 %v466, %v465
      %v497 = vpack.c.bf16 %v468, %v467
      %v498 = vpack.c.bf16 %v470, %v469
      %v499 = vpack.c.bf16 %v472, %v471
      %v500 = vpack.c.bf16 %v474, %v473
      %v501 = vpack.c.bf16 %v476, %v475
      %v502 = vpack.c.bf16 %v478, %v477
      %v503 = vpack.c.bf16 %v480, %v479
      %v504 = vpack.c.bf16 %v482, %v481
      %v505 = vpack.c.bf16 %v484, %v483
      %v506 = vpack.c.bf16 %v486, %v485
      %v507 = vpack.c.bf16 %v488, %v487
      %v508 = vpack.c.bf16 %v490, %v489
      %v509 = vpack.c.bf16 %v492, %v491
      %v510 = vpack.c.bf16 %v494, %v493
      %v527 = vunpack.c.l.b16 %v495
      %v528 = vunpack.c.h.b16 %v495
      %v529 = vunpack.c.l.b16 %v496
      %v530 = vunpack.c.h.b16 %v496
      %v531 = vunpack.c.l.b16 %v497
      %v532 = vunpack.c.h.b16 %v497
      %v533 = vunpack.c.l.b16 %v498
      %v534 = vunpack.c.h.b16 %v498
      %v535 = vunpack.c.l.b16 %v499
      %v536 = vunpack.c.h.b16 %v499
      %v537 = vunpack.c.l.b16 %v500
      %v538 = vunpack.c.h.b16 %v500
      %v539 = vunpack.c.l.b16 %v501
      %v540 = vunpack.c.h.b16 %v501
      %v541 = vunpack.c.l.b16 %v502
      %v542 = vunpack.c.h.b16 %v502
      %v543 = vunpack.c.l.b16 %v503
      %v544 = vunpack.c.h.b16 %v503
      %v545 = vunpack.c.l.b16 %v504
      %v546 = vunpack.c.h.b16 %v504
      %v547 = vunpack.c.l.b16 %v505
      %v548 = vunpack.c.h.b16 %v505
      %v549 = vunpack.c.l.b16 %v506
      %v550 = vunpack.c.h.b16 %v506
      %v551 = vunpack.c.l.b16 %v507
      %v552 = vunpack.c.h.b16 %v507
      %v553 = vunpack.c.l.b16 %v508
      %v554 = vunpack.c.h.b16 %v508
      %v555 = vunpack.c.l.b16 %v509
      %v556 = vunpack.c.h.b16 %v509
      %v557 = vunpack.c.l.b16 %v510
      %v558 = vunpack.c.h.b16 %v510
      %v559 = vpack.c.b16 %v527, %v527
      %v560 = vpack.c.b16 %v528, %v528
      %v561 = vpack.c.b16 %v529, %v529
      %v562 = vpack.c.b16 %v530, %v530
      %v563 = vpack.c.b16 %v531, %v531
      %v564 = vpack.c.b16 %v532, %v532
      %v565 = vpack.c.b16 %v533, %v533
      %v566 = vpack.c.b16 %v534, %v534
      %v567 = vpack.c.b16 %v535, %v535
      %v568 = vpack.c.b16 %v536, %v536
      %v569 = vpack.c.b16 %v537, %v537
      %v570 = vpack.c.b16 %v538, %v538
      %v571 = vpack.c.b16 %v539, %v539
      %v572 = vpack.c.b16 %v540, %v540
      %v573 = vpack.c.b16 %v541, %v541
      %v574 = vpack.c.b16 %v542, %v542
      %v575 = vpack.c.b16 %v543, %v543
      %v576 = vpack.c.b16 %v544, %v544
      %v577 = vpack.c.b16 %v545, %v545
      %v578 = vpack.c.b16 %v546, %v546
      %v579 = vpack.c.b16 %v547, %v547
      %v580 = vpack.c.b16 %v548, %v548
      %v581 = vpack.c.b16 %v549, %v549
      %v582 = vpack.c.b16 %v550, %v550
      %v583 = vpack.c.b16 %v551, %v551
      %v584 = vpack.c.b16 %v552, %v552
      %v585 = vpack.c.b16 %v553, %v553
      %v586 = vpack.c.b16 %v554, %v554
      %v587 = vpack.c.b16 %v555, %v555
      %v588 = vpack.c.b16 %v556, %v556
      %v589 = vpack.c.b16 %v557, %v557
      %v590 = vpack.c.b16 %v558, %v558
      %vm591 = vsmask.f32 4368
      %vm592 = vmor %vm236, %vm591
      %v594 = vshrl.u32 %v559, 16
      %v596 = vrot.slane %v594, 7
      %v597 = vshll.u32 %v559, 16
      %v599 = vor.u32 %v596, %v597
      %v600 = vrot.slane %v596, 4
      %v602 = vshrl.u32 %v560, 16
      %v604 = vrot.slane %v602, 7
      %v605 = vshll.u32 %v560, 16
      %v607 = vor.u32 %v604, %v605
      %v608 = vsel %vm592, %v600, %v607
      %v609 = vrot.slane %v604, 4
      %v611 = vshrl.u32 %v561, 16
      %v613 = vrot.slane %v611, 7
      %v614 = vshll.u32 %v561, 16
      %v616 = vor.u32 %v613, %v614
      %v617 = vrot.slane %v613, 4
      %v619 = vshrl.u32 %v562, 16
      %v621 = vrot.slane %v619, 7
      %v622 = vshll.u32 %v562, 16
      %v624 = vor.u32 %v621, %v622
      %v625 = vsel %vm592, %v617, %v624
      %v626 = vrot.slane %v621, 4
      %v628 = vshrl.u32 %v563, 16
      %v630 = vrot.slane %v628, 7
      %v631 = vshll.u32 %v563, 16
      %v633 = vor.u32 %v630, %v631
      %v634 = vrot.slane %v630, 4
      %v636 = vshrl.u32 %v564, 16
      %v638 = vrot.slane %v636, 7
      %v639 = vshll.u32 %v564, 16
      %v641 = vor.u32 %v638, %v639
      %v642 = vsel %vm592, %v634, %v641
      %v643 = vrot.slane %v638, 4
      %v645 = vshrl.u32 %v565, 16
      %v647 = vrot.slane %v645, 7
      %v648 = vshll.u32 %v565, 16
      %v650 = vor.u32 %v647, %v648
      %v651 = vrot.slane %v647, 4
      %v653 = vshrl.u32 %v566, 16
      %v655 = vrot.slane %v653, 7
      %v656 = vshll.u32 %v566, 16
      %v658 = vor.u32 %v655, %v656
      %v659 = vsel %vm592, %v651, %v658
      %v660 = vrot.slane %v655, 4
      %v662 = vshrl.u32 %v567, 16
      %v664 = vrot.slane %v662, 7
      %v665 = vshll.u32 %v567, 16
      %v667 = vor.u32 %v664, %v665
      %v668 = vrot.slane %v664, 4
      %v670 = vshrl.u32 %v568, 16
      %v672 = vrot.slane %v670, 7
      %v673 = vshll.u32 %v568, 16
      %v675 = vor.u32 %v672, %v673
      %v676 = vsel %vm592, %v668, %v675
      %v677 = vrot.slane %v672, 4
      %v679 = vshrl.u32 %v569, 16
      %v681 = vrot.slane %v679, 7
      %v682 = vshll.u32 %v569, 16
      %v684 = vor.u32 %v681, %v682
      %v685 = vrot.slane %v681, 4
      %v687 = vshrl.u32 %v570, 16
      %v689 = vrot.slane %v687, 7
      %v690 = vshll.u32 %v570, 16
      %v692 = vor.u32 %v689, %v690
      %v693 = vsel %vm592, %v685, %v692
      %v694 = vrot.slane %v689, 4
      %v696 = vshrl.u32 %v571, 16
      %v698 = vrot.slane %v696, 7
      %v699 = vshll.u32 %v571, 16
      %v701 = vor.u32 %v698, %v699
      %v702 = vrot.slane %v698, 4
      %v704 = vshrl.u32 %v572, 16
      %v706 = vrot.slane %v704, 7
      %v707 = vshll.u32 %v572, 16
      %v709 = vor.u32 %v706, %v707
      %v710 = vsel %vm592, %v702, %v709
      %v711 = vrot.slane %v706, 4
      %v713 = vshrl.u32 %v573, 16
      %v715 = vrot.slane %v713, 7
      %v716 = vshll.u32 %v573, 16
      %v718 = vor.u32 %v715, %v716
      %v719 = vrot.slane %v715, 4
      %v721 = vshrl.u32 %v574, 16
      %v723 = vrot.slane %v721, 7
      %v724 = vshll.u32 %v574, 16
      %v726 = vor.u32 %v723, %v724
      %v727 = vsel %vm592, %v719, %v726
      %v728 = vrot.slane %v723, 4
      %v730 = vshrl.u32 %v575, 16
      %v732 = vrot.slane %v730, 7
      %v733 = vshll.u32 %v575, 16
      %v735 = vor.u32 %v732, %v733
      %v736 = vrot.slane %v732, 4
      %v738 = vshrl.u32 %v576, 16
      %v740 = vrot.slane %v738, 7
      %v741 = vshll.u32 %v576, 16
      %v743 = vor.u32 %v740, %v741
      %v744 = vsel %vm592, %v736, %v743
      %v745 = vrot.slane %v740, 4
      %v747 = vshrl.u32 %v577, 16
      %v749 = vrot.slane %v747, 7
      %v750 = vshll.u32 %v577, 16
      %v752 = vor.u32 %v749, %v750
      %v753 = vrot.slane %v749, 4
      %v755 = vshrl.u32 %v578, 16
      %v757 = vrot.slane %v755, 7
      %v758 = vshll.u32 %v578, 16
      %v760 = vor.u32 %v757, %v758
      %v761 = vsel %vm592, %v753, %v760
      %v762 = vrot.slane %v757, 4
      %v764 = vshrl.u32 %v579, 16
      %v766 = vrot.slane %v764, 7
      %v767 = vshll.u32 %v579, 16
      %v769 = vor.u32 %v766, %v767
      %v770 = vrot.slane %v766, 4
      %v772 = vshrl.u32 %v580, 16
      %v774 = vrot.slane %v772, 7
      %v775 = vshll.u32 %v580, 16
      %v777 = vor.u32 %v774, %v775
      %v778 = vsel %vm592, %v770, %v777
      %v779 = vrot.slane %v774, 4
      %v781 = vshrl.u32 %v581, 16
      %v783 = vrot.slane %v781, 7
      %v784 = vshll.u32 %v581, 16
      %v786 = vor.u32 %v783, %v784
      %v787 = vrot.slane %v783, 4
      %v789 = vshrl.u32 %v582, 16
      %v791 = vrot.slane %v789, 7
      %v792 = vshll.u32 %v582, 16
      %v794 = vor.u32 %v791, %v792
      %v795 = vsel %vm592, %v787, %v794
      %v796 = vrot.slane %v791, 4
      %v798 = vshrl.u32 %v583, 16
      %v800 = vrot.slane %v798, 7
      %v801 = vshll.u32 %v583, 16
      %v803 = vor.u32 %v800, %v801
      %v804 = vrot.slane %v800, 4
      %v806 = vshrl.u32 %v584, 16
      %v808 = vrot.slane %v806, 7
      %v809 = vshll.u32 %v584, 16
      %v811 = vor.u32 %v808, %v809
      %v812 = vsel %vm592, %v804, %v811
      %v813 = vrot.slane %v808, 4
      %v815 = vshrl.u32 %v585, 16
      %v817 = vrot.slane %v815, 7
      %v818 = vshll.u32 %v585, 16
      %v820 = vor.u32 %v817, %v818
      %v821 = vrot.slane %v817, 4
      %v823 = vshrl.u32 %v586, 16
      %v825 = vrot.slane %v823, 7
      %v826 = vshll.u32 %v586, 16
      %v828 = vor.u32 %v825, %v826
      %v829 = vsel %vm592, %v821, %v828
      %v830 = vrot.slane %v825, 4
      %v832 = vshrl.u32 %v587, 16
      %v834 = vrot.slane %v832, 7
      %v835 = vshll.u32 %v587, 16
      %v837 = vor.u32 %v834, %v835
      %v838 = vrot.slane %v834, 4
      %v840 = vshrl.u32 %v588, 16
      %v842 = vrot.slane %v840, 7
      %v843 = vshll.u32 %v588, 16
      %v845 = vor.u32 %v842, %v843
      %v846 = vsel %vm592, %v838, %v845
      %v847 = vrot.slane %v842, 4
      %v849 = vshrl.u32 %v589, 16
      %v851 = vrot.slane %v849, 7
      %v852 = vshll.u32 %v589, 16
      %v854 = vor.u32 %v851, %v852
      %v855 = vrot.slane %v851, 4
      %v857 = vshrl.u32 %v590, 16
      %v859 = vrot.slane %v857, 7
      %v860 = vshll.u32 %v590, 16
      %v862 = vor.u32 %v859, %v860
      %v863 = vsel %vm592, %v855, %v862
      %v864 = vrot.slane %v859, 4
      %s913 = scalar_lea.vmem [#allocation2], 12
      %vm914 = vcmask 27648
      %vm915 = vmand %vm914, %vm292
      %v916 = vld [vmem:[%s913] sm:$0xf]
      %v917 = vsel %vm915, %v599, %v916
      %918 = vst [vmem:[%s913] sm:$0xf] %v917
      %919 = vst.msk [vmem:[%s913 + $0x4] sm:$0xf] %vm226, %v608
      %v920 = vld [vmem:[%s913 + $0x8] sm:$0x1]
      %v921 = vsel %vm237, %v609, %v920
      %922 = vst [vmem:[%s913 + $0x8] sm:$0x1] %v921
      %v923 = vld [vmem:[%s913 + $0xc] sm:$0xf]
      %v924 = vsel %vm915, %v616, %v923
      %925 = vst [vmem:[%s913 + $0xc] sm:$0xf] %v924
      %926 = vst.msk [vmem:[%s913 + $0x10] sm:$0xf] %vm226, %v625
      %v927 = vld [vmem:[%s913 + $0x14] sm:$0x1]
      %v928 = vsel %vm237, %v626, %v927
      %929 = vst [vmem:[%s913 + $0x14] sm:$0x1] %v928
      %v930 = vld [vmem:[%s913 + $0x18] sm:$0xf]
      %v931 = vsel %vm915, %v633, %v930
      %932 = vst [vmem:[%s913 + $0x18] sm:$0xf] %v931
      %933 = vst.msk [vmem:[%s913 + $0x1c] sm:$0xf] %vm226, %v642
      %v934 = vld [vmem:[%s913 + $0x20] sm:$0x1]
      %v935 = vsel %vm237, %v643, %v934
      %936 = vst [vmem:[%s913 + $0x20] sm:$0x1] %v935
      %v937 = vld [vmem:[%s913 + $0x24] sm:$0xf]
      %v938 = vsel %vm915, %v650, %v937
      %939 = vst [vmem:[%s913 + $0x24] sm:$0xf] %v938
      %940 = vst.msk [vmem:[%s913 + $0x28] sm:$0xf] %vm226, %v659
      %v941 = vld [vmem:[%s913 + $0x2c] sm:$0x1]
      %v942 = vsel %vm237, %v660, %v941
      %943 = vst [vmem:[%s913 + $0x2c] sm:$0x1] %v942
      %v944 = vld [vmem:[%s913 + $0x30] sm:$0xf]
      %v945 = vsel %vm915, %v667, %v944
      %946 = vst [vmem:[%s913 + $0x30] sm:$0xf] %v945
      %947 = vst.msk [vmem:[%s913 + $0x34] sm:$0xf] %vm226, %v676
      %v948 = vld [vmem:[%s913 + $0x38] sm:$0x1]
      %v949 = vsel %vm237, %v677, %v948
      %950 = vst [vmem:[%s913 + $0x38] sm:$0x1] %v949
      %v951 = vld [vmem:[%s913 + $0x3c] sm:$0xf]
      %v952 = vsel %vm915, %v684, %v951
      %953 = vst [vmem:[%s913 + $0x3c] sm:$0xf] %v952
      %954 = vst.msk [vmem:[%s913 + $0x40] sm:$0xf] %vm226, %v693
      %v955 = vld [vmem:[%s913 + $0x44] sm:$0x1]
      %v956 = vsel %vm237, %v694, %v955
      %957 = vst [vmem:[%s913 + $0x44] sm:$0x1] %v956
      %v958 = vld [vmem:[%s913 + $0x48] sm:$0xf]
      %v959 = vsel %vm915, %v701, %v958
      %960 = vst [vmem:[%s913 + $0x48] sm:$0xf] %v959
      %961 = vst.msk [vmem:[%s913 + $0x4c] sm:$0xf] %vm226, %v710
      %v962 = vld [vmem:[%s913 + $0x50] sm:$0x1]
      %v963 = vsel %vm237, %v711, %v962
      %964 = vst [vmem:[%s913 + $0x50] sm:$0x1] %v963
      %v965 = vld [vmem:[%s913 + $0x54] sm:$0xf]
      %v966 = vsel %vm915, %v718, %v965
      %967 = vst [vmem:[%s913 + $0x54] sm:$0xf] %v966
      %968 = vst.msk [vmem:[%s913 + $0x58] sm:$0xf] %vm226, %v727
      %v969 = vld [vmem:[%s913 + $0x5c] sm:$0x1]
      %v970 = vsel %vm237, %v728, %v969
      %971 = vst [vmem:[%s913 + $0x5c] sm:$0x1] %v970
      %v972 = vld [vmem:[%s913 + $0x60] sm:$0xf]
      %v973 = vsel %vm915, %v735, %v972
      %974 = vst [vmem:[%s913 + $0x60] sm:$0xf] %v973
      %975 = vst.msk [vmem:[%s913 + $0x64] sm:$0xf] %vm226, %v744
      %v976 = vld [vmem:[%s913 + $0x68] sm:$0x1]
      %v977 = vsel %vm237, %v745, %v976
      %978 = vst [vmem:[%s913 + $0x68] sm:$0x1] %v977
      %v979 = vld [vmem:[%s913 + $0x6c] sm:$0xf]
      %v980 = vsel %vm915, %v752, %v979
      %981 = vst [vmem:[%s913 + $0x6c] sm:$0xf] %v980
      %982 = vst.msk [vmem:[%s913 + $0x70] sm:$0xf] %vm226, %v761
      %v983 = vld [vmem:[%s913 + $0x74] sm:$0x1]
      %v984 = vsel %vm237, %v762, %v983
      %985 = vst [vmem:[%s913 + $0x74] sm:$0x1] %v984
      %v986 = vld [vmem:[%s913 + $0x78] sm:$0xf]
      %v987 = vsel %vm915, %v769, %v986
      %988 = vst [vmem:[%s913 + $0x78] sm:$0xf] %v987
      %989 = vst.msk [vmem:[%s913 + $0x7c] sm:$0xf] %vm226, %v778
      %v990 = vld [vmem:[%s913 + $0x80] sm:$0x1]
      %v991 = vsel %vm237, %v779, %v990
      %992 = vst [vmem:[%s913 + $0x80] sm:$0x1] %v991
      %v993 = vld [vmem:[%s913 + $0x84] sm:$0xf]
      %v994 = vsel %vm915, %v786, %v993
      %995 = vst [vmem:[%s913 + $0x84] sm:$0xf] %v994
      %996 = vst.msk [vmem:[%s913 + $0x88] sm:$0xf] %vm226, %v795
      %v997 = vld [vmem:[%s913 + $0x8c] sm:$0x1]
      %v998 = vsel %vm237, %v796, %v997
      %999 = vst [vmem:[%s913 + $0x8c] sm:$0x1] %v998
      %v1000 = vld [vmem:[%s913 + $0x90] sm:$0xf]
      %v1001 = vsel %vm915, %v803, %v1000
      %1002 = vst [vmem:[%s913 + $0x90] sm:$0xf] %v1001
      %1003 = vst.msk [vmem:[%s913 + $0x94] sm:$0xf] %vm226, %v812
      %v1004 = vld [vmem:[%s913 + $0x98] sm:$0x1]
      %v1005 = vsel %vm237, %v813, %v1004
      %1006 = vst [vmem:[%s913 + $0x98] sm:$0x1] %v1005
      %v1007 = vld [vmem:[%s913 + $0x9c] sm:$0xf]
      %v1008 = vsel %vm915, %v820, %v1007
      %1009 = vst [vmem:[%s913 + $0x9c] sm:$0xf] %v1008
      %1010 = vst.msk [vmem:[%s913 + $0xa0] sm:$0xf] %vm226, %v829
      %v1011 = vld [vmem:[%s913 + $0xa4] sm:$0x1]
      %v1012 = vsel %vm237, %v830, %v1011
      %1013 = vst [vmem:[%s913 + $0xa4] sm:$0x1] %v1012
      %v1014 = vld [vmem:[%s913 + $0xa8] sm:$0xf]
      %v1015 = vsel %vm915, %v837, %v1014
      %1016 = vst [vmem:[%s913 + $0xa8] sm:$0xf] %v1015
      %1017 = vst.msk [vmem:[%s913 + $0xac] sm:$0xf] %vm226, %v846
      %v1018 = vld [vmem:[%s913 + $0xb0] sm:$0x1]
      %v1019 = vsel %vm237, %v847, %v1018
      %1020 = vst [vmem:[%s913 + $0xb0] sm:$0x1] %v1019
      %v1021 = vld [vmem:[%s913 + $0xb4] sm:$0xf]
      %v1022 = vsel %vm915, %v854, %v1021
      %1023 = vst [vmem:[%s913 + $0xb4] sm:$0xf] %v1022
      %1024 = vst.msk [vmem:[%s913 + $0xb8] sm:$0xf] %vm226, %v863
      %v1025 = vld [vmem:[%s913 + $0xbc] sm:$0x1]
      %v1026 = vsel %vm237, %v864, %v1025
      %1027 = vst [vmem:[%s913 + $0xbc] sm:$0x1] %v1026
      %v1028 = vld [vmem:[#allocation2] sm:$0xf]
      %v1029 = vld [vmem:[#allocation2 + $0x4] sm:$0xf]
      %v1030 = vld [vmem:[#allocation2 + $0xc] sm:$0xf]
      %v1031 = vld [vmem:[#allocation2 + $0x10] sm:$0xf]
      %v1032 = vld [vmem:[#allocation2 + $0x18] sm:$0xf]
      %v1033 = vld [vmem:[#allocation2 + $0x1c] sm:$0xf]
      %v1034 = vld [vmem:[#allocation2 + $0x24] sm:$0xf]
      %v1035 = vld [vmem:[#allocation2 + $0x28] sm:$0xf]
      %v1036 = vld [vmem:[#allocation2 + $0x30] sm:$0xf]
      %v1037 = vld [vmem:[#allocation2 + $0x34] sm:$0xf]
      %v1038 = vld [vmem:[#allocation2 + $0x3c] sm:$0xf]
      %v1039 = vld [vmem:[#allocation2 + $0x40] sm:$0xf]
      %v1040 = vld [vmem:[#allocation2 + $0x48] sm:$0xf]
      %v1041 = vld [vmem:[#allocation2 + $0x4c] sm:$0xf]
      %v1042 = vld [vmem:[#allocation2 + $0x54] sm:$0xf]
      %v1043 = vld [vmem:[#allocation2 + $0x58] sm:$0xf]
      %v1044 = vld [vmem:[#allocation2 + $0x60] sm:$0xf]
      %v1045 = vld [vmem:[#allocation2 + $0x64] sm:$0xf]
      %v1046 = vld [vmem:[#allocation2 + $0x6c] sm:$0xf]
      %v1047 = vld [vmem:[#allocation2 + $0x70] sm:$0xf]
      %v1048 = vld [vmem:[#allocation2 + $0x78] sm:$0xf]
      %v1049 = vld [vmem:[#allocation2 + $0x7c] sm:$0xf]
      %v1050 = vld [vmem:[#allocation2 + $0x84] sm:$0xf]
      %v1051 = vld [vmem:[#allocation2 + $0x88] sm:$0xf]
      %v1052 = vld [vmem:[#allocation2 + $0x90] sm:$0xf]
      %v1053 = vld [vmem:[#allocation2 + $0x94] sm:$0xf]
      %v1054 = vld [vmem:[#allocation2 + $0x9c] sm:$0xf]
      %v1055 = vld [vmem:[#allocation2 + $0xa0] sm:$0xf]
      %v1056 = vld [vmem:[#allocation2 + $0xa8] sm:$0xf]
      %v1057 = vld [vmem:[#allocation2 + $0xac] sm:$0xf]
      %v1058 = vld [vmem:[#allocation2 + $0xb4] sm:$0xf]
      %v1059 = vld [vmem:[#allocation2 + $0xb8] sm:$0xf]
      %v1060 = vld [vmem:[#allocation2 + $0x8] sm:$0x1]
      %v1061 = vld [vmem:[#allocation2 + $0x14] sm:$0x1]
      %v1062 = vld [vmem:[#allocation2 + $0x20] sm:$0x1]
      %v1063 = vld [vmem:[#allocation2 + $0x2c] sm:$0x1]
      %v1064 = vld [vmem:[#allocation2 + $0x38] sm:$0x1]
      %v1065 = vld [vmem:[#allocation2 + $0x44] sm:$0x1]
      %v1066 = vld [vmem:[#allocation2 + $0x50] sm:$0x1]
      %v1067 = vld [vmem:[#allocation2 + $0x5c] sm:$0x1]
      %v1068 = vld [vmem:[#allocation2 + $0x68] sm:$0x1]
      %v1069 = vld [vmem:[#allocation2 + $0x74] sm:$0x1]
      %v1070 = vld [vmem:[#allocation2 + $0x80] sm:$0x1]
      %v1071 = vld [vmem:[#allocation2 + $0x8c] sm:$0x1]
      %v1072 = vld [vmem:[#allocation2 + $0x98] sm:$0x1]
      %v1073 = vld [vmem:[#allocation2 + $0xa4] sm:$0x1]
      %v1074 = vld [vmem:[#allocation2 + $0xb0] sm:$0x1]
      %v1075 = vld [vmem:[#allocation2 + $0xbc] sm:$0x1]
      %vm1076 = vsmask.f32 3328
      %vm1077 = vsmask.f32 7440
      %vm1078 = vmor %vm1076, %vm1077
      %v1080 = vshrl.u32 %v1028, 16
      %v1082 = vrot.slane %v1080, 4
      %v1083 = vshll.u32 %v1028, 16
      %v1085 = vrot.slane %v1083, 5
      %v1086 = vor.u32 %v1082, %v1085
      %v1087 = vrot.slane %v1086, 4
      %v1089 = vshll.u32 %v1029, 16
      %v1091 = vrot.slane %v1089, 5
      %v1092 = vsel %vm1078, %v1087, %v1091
      %v1093 = vshrl.u32 %v1029, 16
      %v1095 = vrot.slane %v1093, 4
      %v1096 = vor.u32 %v1095, %v1091
      %v1097 = vrot.slane %v1096, 4
      %v1099 = vshll.u32 %v1060, 16
      %v1101 = vrot.slane %v1099, 5
      %v1102 = vsel %vm1078, %v1097, %v1101
      %v1104 = vshrl.u32 %v1030, 16
      %v1106 = vrot.slane %v1104, 4
      %v1107 = vshll.u32 %v1030, 16
      %v1109 = vrot.slane %v1107, 5
      %v1110 = vor.u32 %v1106, %v1109
      %v1111 = vrot.slane %v1110, 4
      %v1113 = vshll.u32 %v1031, 16
      %v1115 = vrot.slane %v1113, 5
      %v1116 = vsel %vm1078, %v1111, %v1115
      %v1117 = vshrl.u32 %v1031, 16
      %v1119 = vrot.slane %v1117, 4
      %v1120 = vor.u32 %v1119, %v1115
      %v1121 = vrot.slane %v1120, 4
      %v1123 = vshll.u32 %v1061, 16
      %v1125 = vrot.slane %v1123, 5
      %v1126 = vsel %vm1078, %v1121, %v1125
      %v1128 = vshrl.u32 %v1032, 16
      %v1130 = vrot.slane %v1128, 4
      %v1131 = vshll.u32 %v1032, 16
      %v1133 = vrot.slane %v1131, 5
      %v1134 = vor.u32 %v1130, %v1133
      %v1135 = vrot.slane %v1134, 4
      %v1137 = vshll.u32 %v1033, 16
      %v1139 = vrot.slane %v1137, 5
      %v1140 = vsel %vm1078, %v1135, %v1139
      %v1141 = vshrl.u32 %v1033, 16
      %v1143 = vrot.slane %v1141, 4
      %v1144 = vor.u32 %v1143, %v1139
      %v1145 = vrot.slane %v1144, 4
      %v1147 = vshll.u32 %v1062, 16
      %v1149 = vrot.slane %v1147, 5
      %v1150 = vsel %vm1078, %v1145, %v1149
      %v1152 = vshrl.u32 %v1034, 16
      %v1154 = vrot.slane %v1152, 4
      %v1155 = vshll.u32 %v1034, 16
      %v1157 = vrot.slane %v1155, 5
      %v1158 = vor.u32 %v1154, %v1157
      %v1159 = vrot.slane %v1158, 4
      %v1161 = vshll.u32 %v1035, 16
      %v1163 = vrot.slane %v1161, 5
      %v1164 = vsel %vm1078, %v1159, %v1163
      %v1165 = vshrl.u32 %v1035, 16
      %v1167 = vrot.slane %v1165, 4
      %v1168 = vor.u32 %v1167, %v1163
      %v1169 = vrot.slane %v1168, 4
      %v1171 = vshll.u32 %v1063, 16
      %v1173 = vrot.slane %v1171, 5
      %v1174 = vsel %vm1078, %v1169, %v1173
      %v1176 = vshrl.u32 %v1036, 16
      %v1178 = vrot.slane %v1176, 4
      %v1179 = vshll.u32 %v1036, 16
      %v1181 = vrot.slane %v1179, 5
      %v1182 = vor.u32 %v1178, %v1181
      %v1183 = vrot.slane %v1182, 4
      %v1185 = vshll.u32 %v1037, 16
      %v1187 = vrot.slane %v1185, 5
      %v1188 = vsel %vm1078, %v1183, %v1187
      %v1189 = vshrl.u32 %v1037, 16
      %v1191 = vrot.slane %v1189, 4
      %v1192 = vor.u32 %v1191, %v1187
      %v1193 = vrot.slane %v1192, 4
      %v1195 = vshll.u32 %v1064, 16
      %v1197 = vrot.slane %v1195, 5
      %v1198 = vsel %vm1078, %v1193, %v1197
      %v1200 = vshrl.u32 %v1038, 16
      %v1202 = vrot.slane %v1200, 4
      %v1203 = vshll.u32 %v1038, 16
      %v1205 = vrot.slane %v1203, 5
      %v1206 = vor.u32 %v1202, %v1205
      %v1207 = vrot.slane %v1206, 4
      %v1209 = vshll.u32 %v1039, 16
      %v1211 = vrot.slane %v1209, 5
      %v1212 = vsel %vm1078, %v1207, %v1211
      %v1213 = vshrl.u32 %v1039, 16
      %v1215 = vrot.slane %v1213, 4
      %v1216 = vor.u32 %v1215, %v1211
      %v1217 = vrot.slane %v1216, 4
      %v1219 = vshll.u32 %v1065, 16
      %v1221 = vrot.slane %v1219, 5
      %v1222 = vsel %vm1078, %v1217, %v1221
      %v1224 = vshrl.u32 %v1040, 16
      %v1226 = vrot.slane %v1224, 4
      %v1227 = vshll.u32 %v1040, 16
      %v1229 = vrot.slane %v1227, 5
      %v1230 = vor.u32 %v1226, %v1229
      %v1231 = vrot.slane %v1230, 4
      %v1233 = vshll.u32 %v1041, 16
      %v1235 = vrot.slane %v1233, 5
      %v1236 = vsel %vm1078, %v1231, %v1235
      %v1237 = vshrl.u32 %v1041, 16
      %v1239 = vrot.slane %v1237, 4
      %v1240 = vor.u32 %v1239, %v1235
      %v1241 = vrot.slane %v1240, 4
      %v1243 = vshll.u32 %v1066, 16
      %v1245 = vrot.slane %v1243, 5
      %v1246 = vsel %vm1078, %v1241, %v1245
      %v1248 = vshrl.u32 %v1042, 16
      %v1250 = vrot.slane %v1248, 4
      %v1251 = vshll.u32 %v1042, 16
      %v1253 = vrot.slane %v1251, 5
      %v1254 = vor.u32 %v1250, %v1253
      %v1255 = vrot.slane %v1254, 4
      %v1257 = vshll.u32 %v1043, 16
      %v1259 = vrot.slane %v1257, 5
      %v1260 = vsel %vm1078, %v1255, %v1259
      %v1261 = vshrl.u32 %v1043, 16
      %v1263 = vrot.slane %v1261, 4
      %v1264 = vor.u32 %v1263, %v1259
      %v1265 = vrot.slane %v1264, 4
      %v1267 = vshll.u32 %v1067, 16
      %v1269 = vrot.slane %v1267, 5
      %v1270 = vsel %vm1078, %v1265, %v1269
      %v1272 = vshrl.u32 %v1044, 16
      %v1274 = vrot.slane %v1272, 4
      %v1275 = vshll.u32 %v1044, 16
      %v1277 = vrot.slane %v1275, 5
      %v1278 = vor.u32 %v1274, %v1277
      %v1279 = vrot.slane %v1278, 4
      %v1281 = vshll.u32 %v1045, 16
      %v1283 = vrot.slane %v1281, 5
      %v1284 = vsel %vm1078, %v1279, %v1283
      %v1285 = vshrl.u32 %v1045, 16
      %v1287 = vrot.slane %v1285, 4
      %v1288 = vor.u32 %v1287, %v1283
      %v1289 = vrot.slane %v1288, 4
      %v1291 = vshll.u32 %v1068, 16
      %v1293 = vrot.slane %v1291, 5
      %v1294 = vsel %vm1078, %v1289, %v1293
      %v1296 = vshrl.u32 %v1046, 16
      %v1298 = vrot.slane %v1296, 4
      %v1299 = vshll.u32 %v1046, 16
      %v1301 = vrot.slane %v1299, 5
      %v1302 = vor.u32 %v1298, %v1301
      %v1303 = vrot.slane %v1302, 4
      %v1305 = vshll.u32 %v1047, 16
      %v1307 = vrot.slane %v1305, 5
      %v1308 = vsel %vm1078, %v1303, %v1307
      %v1309 = vshrl.u32 %v1047, 16
      %v1311 = vrot.slane %v1309, 4
      %v1312 = vor.u32 %v1311, %v1307
      %v1313 = vrot.slane %v1312, 4
      %v1315 = vshll.u32 %v1069, 16
      %v1317 = vrot.slane %v1315, 5
      %v1318 = vsel %vm1078, %v1313, %v1317
      %v1320 = vshrl.u32 %v1048, 16
      %v1322 = vrot.slane %v1320, 4
      %v1323 = vshll.u32 %v1048, 16
      %v1325 = vrot.slane %v1323, 5
      %v1326 = vor.u32 %v1322, %v1325
      %v1327 = vrot.slane %v1326, 4
      %v1329 = vshll.u32 %v1049, 16
      %v1331 = vrot.slane %v1329, 5
      %v1332 = vsel %vm1078, %v1327, %v1331
      %v1333 = vshrl.u32 %v1049, 16
      %v1335 = vrot.slane %v1333, 4
      %v1336 = vor.u32 %v1335, %v1331
      %v1337 = vrot.slane %v1336, 4
      %v1339 = vshll.u32 %v1070, 16
      %v1341 = vrot.slane %v1339, 5
      %v1342 = vsel %vm1078, %v1337, %v1341
      %v1344 = vshrl.u32 %v1050, 16
      %v1346 = vrot.slane %v1344, 4
      %v1347 = vshll.u32 %v1050, 16
      %v1349 = vrot.slane %v1347, 5
      %v1350 = vor.u32 %v1346, %v1349
      %v1351 = vrot.slane %v1350, 4
      %v1353 = vshll.u32 %v1051, 16
      %v1355 = vrot.slane %v1353, 5
      %v1356 = vsel %vm1078, %v1351, %v1355
      %v1357 = vshrl.u32 %v1051, 16
      %v1359 = vrot.slane %v1357, 4
      %v1360 = vor.u32 %v1359, %v1355
      %v1361 = vrot.slane %v1360, 4
      %v1363 = vshll.u32 %v1071, 16
      %v1365 = vrot.slane %v1363, 5
      %v1366 = vsel %vm1078, %v1361, %v1365
      %v1368 = vshrl.u32 %v1052, 16
      %v1370 = vrot.slane %v1368, 4
      %v1371 = vshll.u32 %v1052, 16
      %v1373 = vrot.slane %v1371, 5
      %v1374 = vor.u32 %v1370, %v1373
      %v1375 = vrot.slane %v1374, 4
      %v1377 = vshll.u32 %v1053, 16
      %v1379 = vrot.slane %v1377, 5
      %v1380 = vsel %vm1078, %v1375, %v1379
      %v1381 = vshrl.u32 %v1053, 16
      %v1383 = vrot.slane %v1381, 4
      %v1384 = vor.u32 %v1383, %v1379
      %v1385 = vrot.slane %v1384, 4
      %v1387 = vshll.u32 %v1072, 16
      %v1389 = vrot.slane %v1387, 5
      %v1390 = vsel %vm1078, %v1385, %v1389
      %v1392 = vshrl.u32 %v1054, 16
      %v1394 = vrot.slane %v1392, 4
      %v1395 = vshll.u32 %v1054, 16
      %v1397 = vrot.slane %v1395, 5
      %v1398 = vor.u32 %v1394, %v1397
      %v1399 = vrot.slane %v1398, 4
      %v1401 = vshll.u32 %v1055, 16
      %v1403 = vrot.slane %v1401, 5
      %v1404 = vsel %vm1078, %v1399, %v1403
      %v1405 = vshrl.u32 %v1055, 16
      %v1407 = vrot.slane %v1405, 4
      %v1408 = vor.u32 %v1407, %v1403
      %v1409 = vrot.slane %v1408, 4
      %v1411 = vshll.u32 %v1073, 16
      %v1413 = vrot.slane %v1411, 5
      %v1414 = vsel %vm1078, %v1409, %v1413
      %v1416 = vshrl.u32 %v1056, 16
      %v1418 = vrot.slane %v1416, 4
      %v1419 = vshll.u32 %v1056, 16
      %v1421 = vrot.slane %v1419, 5
      %v1422 = vor.u32 %v1418, %v1421
      %v1423 = vrot.slane %v1422, 4
      %v1425 = vshll.u32 %v1057, 16
      %v1427 = vrot.slane %v1425, 5
      %v1428 = vsel %vm1078, %v1423, %v1427
      %v1429 = vshrl.u32 %v1057, 16
      %v1431 = vrot.slane %v1429, 4
      %v1432 = vor.u32 %v1431, %v1427
      %v1433 = vrot.slane %v1432, 4
      %v1435 = vshll.u32 %v1074, 16
      %v1437 = vrot.slane %v1435, 5
      %v1438 = vsel %vm1078, %v1433, %v1437
      %v1440 = vshrl.u32 %v1058, 16
      %v1442 = vrot.slane %v1440, 4
      %v1443 = vshll.u32 %v1058, 16
      %v1445 = vrot.slane %v1443, 5
      %v1446 = vor.u32 %v1442, %v1445
      %v1447 = vrot.slane %v1446, 4
      %v1449 = vshll.u32 %v1059, 16
      %v1451 = vrot.slane %v1449, 5
      %v1452 = vsel %vm1078, %v1447, %v1451
      %v1453 = vshrl.u32 %v1059, 16
      %v1455 = vrot.slane %v1453, 4
      %v1456 = vor.u32 %v1455, %v1451
      %v1457 = vrot.slane %v1456, 4
      %v1459 = vshll.u32 %v1075, 16
      %v1461 = vrot.slane %v1459, 5
      %v1462 = vsel %vm1078, %v1457, %v1461
      %v1463 = vld [vmem:[#allocation2] sm:$0xe]
      %v1464 = vld [vmem:[#allocation2 + $0xc] sm:$0xe]
      %v1465 = vld [vmem:[#allocation2 + $0x18] sm:$0xe]
      %v1466 = vld [vmem:[#allocation2 + $0x24] sm:$0xe]
      %v1467 = vld [vmem:[#allocation2 + $0x30] sm:$0xe]
      %v1468 = vld [vmem:[#allocation2 + $0x3c] sm:$0xe]
      %v1469 = vld [vmem:[#allocation2 + $0x48] sm:$0xe]
      %v1470 = vld [vmem:[#allocation2 + $0x54] sm:$0xe]
      %v1471 = vld [vmem:[#allocation2 + $0x60] sm:$0xe]
      %v1472 = vld [vmem:[#allocation2 + $0x6c] sm:$0xe]
      %v1473 = vld [vmem:[#allocation2 + $0x78] sm:$0xe]
      %v1474 = vld [vmem:[#allocation2 + $0x84] sm:$0xe]
      %v1475 = vld [vmem:[#allocation2 + $0x90] sm:$0xe]
      %v1476 = vld [vmem:[#allocation2 + $0x9c] sm:$0xe]
      %v1477 = vld [vmem:[#allocation2 + $0xa8] sm:$0xe]
      %v1478 = vld [vmem:[#allocation2 + $0xb4] sm:$0xe]
      %vm1527 = vcmask 1042432
      %vm1528 = vcmask 1046532
      %vm1529 = vmor %vm1527, %vm1528
      %v1530 = vrot.slane %v1463, 5
      %v1531 = vrot.slane %v1530, 4
      %v1532 = vrot.slane %v1029, 5
      %v1533 = vsel %vm1529, %v1531, %v1532
      %v1534 = vrot.slane %v1532, 4
      %v1535 = vrot.slane %v1060, 5
      %v1536 = vsel %vm1529, %v1534, %v1535
      %v1537 = vrot.slane %v1464, 5
      %v1538 = vrot.slane %v1537, 4
      %v1539 = vrot.slane %v1031, 5
      %v1540 = vsel %vm1529, %v1538, %v1539
      %v1541 = vrot.slane %v1539, 4
      %v1542 = vrot.slane %v1061, 5
      %v1543 = vsel %vm1529, %v1541, %v1542
      %v1544 = vrot.slane %v1465, 5
      %v1545 = vrot.slane %v1544, 4
      %v1546 = vrot.slane %v1033, 5
      %v1547 = vsel %vm1529, %v1545, %v1546
      %v1548 = vrot.slane %v1546, 4
      %v1549 = vrot.slane %v1062, 5
      %v1550 = vsel %vm1529, %v1548, %v1549
      %v1551 = vrot.slane %v1466, 5
      %v1552 = vrot.slane %v1551, 4
      %v1553 = vrot.slane %v1035, 5
      %v1554 = vsel %vm1529, %v1552, %v1553
      %v1555 = vrot.slane %v1553, 4
      %v1556 = vrot.slane %v1063, 5
      %v1557 = vsel %vm1529, %v1555, %v1556
      %v1558 = vrot.slane %v1467, 5
      %v1559 = vrot.slane %v1558, 4
      %v1560 = vrot.slane %v1037, 5
      %v1561 = vsel %vm1529, %v1559, %v1560
      %v1562 = vrot.slane %v1560, 4
      %v1563 = vrot.slane %v1064, 5
      %v1564 = vsel %vm1529, %v1562, %v1563
      %v1565 = vrot.slane %v1468, 5
      %v1566 = vrot.slane %v1565, 4
      %v1567 = vrot.slane %v1039, 5
      %v1568 = vsel %vm1529, %v1566, %v1567
      %v1569 = vrot.slane %v1567, 4
      %v1570 = vrot.slane %v1065, 5
      %v1571 = vsel %vm1529, %v1569, %v1570
      %v1572 = vrot.slane %v1469, 5
      %v1573 = vrot.slane %v1572, 4
      %v1574 = vrot.slane %v1041, 5
      %v1575 = vsel %vm1529, %v1573, %v1574
      %v1576 = vrot.slane %v1574, 4
      %v1577 = vrot.slane %v1066, 5
      %v1578 = vsel %vm1529, %v1576, %v1577
      %v1579 = vrot.slane %v1470, 5
      %v1580 = vrot.slane %v1579, 4
      %v1581 = vrot.slane %v1043, 5
      %v1582 = vsel %vm1529, %v1580, %v1581
      %v1583 = vrot.slane %v1581, 4
      %v1584 = vrot.slane %v1067, 5
      %v1585 = vsel %vm1529, %v1583, %v1584
      %v1586 = vrot.slane %v1471, 5
      %v1587 = vrot.slane %v1586, 4
      %v1588 = vrot.slane %v1045, 5
      %v1589 = vsel %vm1529, %v1587, %v1588
      %v1590 = vrot.slane %v1588, 4
      %v1591 = vrot.slane %v1068, 5
      %v1592 = vsel %vm1529, %v1590, %v1591
      %v1593 = vrot.slane %v1472, 5
      %v1594 = vrot.slane %v1593, 4
      %v1595 = vrot.slane %v1047, 5
      %v1596 = vsel %vm1529, %v1594, %v1595
      %v1597 = vrot.slane %v1595, 4
      %v1598 = vrot.slane %v1069, 5
      %v1599 = vsel %vm1529, %v1597, %v1598
      %v1600 = vrot.slane %v1473, 5
      %v1601 = vrot.slane %v1600, 4
      %v1602 = vrot.slane %v1049, 5
      %v1603 = vsel %vm1529, %v1601, %v1602
      %v1604 = vrot.slane %v1602, 4
      %v1605 = vrot.slane %v1070, 5
      %v1606 = vsel %vm1529, %v1604, %v1605
      %v1607 = vrot.slane %v1474, 5
      %v1608 = vrot.slane %v1607, 4
      %v1609 = vrot.slane %v1051, 5
      %v1610 = vsel %vm1529, %v1608, %v1609
      %v1611 = vrot.slane %v1609, 4
      %v1612 = vrot.slane %v1071, 5
      %v1613 = vsel %vm1529, %v1611, %v1612
      %v1614 = vrot.slane %v1475, 5
      %v1615 = vrot.slane %v1614, 4
      %v1616 = vrot.slane %v1053, 5
      %v1617 = vsel %vm1529, %v1615, %v1616
      %v1618 = vrot.slane %v1616, 4
      %v1619 = vrot.slane %v1072, 5
      %v1620 = vsel %vm1529, %v1618, %v1619
      %v1621 = vrot.slane %v1476, 5
      %v1622 = vrot.slane %v1621, 4
      %v1623 = vrot.slane %v1055, 5
      %v1624 = vsel %vm1529, %v1622, %v1623
      %v1625 = vrot.slane %v1623, 4
      %v1626 = vrot.slane %v1073, 5
      %v1627 = vsel %vm1529, %v1625, %v1626
      %v1628 = vrot.slane %v1477, 5
      %v1629 = vrot.slane %v1628, 4
      %v1630 = vrot.slane %v1057, 5
      %v1631 = vsel %vm1529, %v1629, %v1630
      %v1632 = vrot.slane %v1630, 4
      %v1633 = vrot.slane %v1074, 5
      %v1634 = vsel %vm1529, %v1632, %v1633
      %v1635 = vrot.slane %v1478, 5
      %v1636 = vrot.slane %v1635, 4
      %v1637 = vrot.slane %v1059, 5
      %v1638 = vsel %vm1529, %v1636, %v1637
      %v1639 = vrot.slane %v1637, 4
      %v1640 = vrot.slane %v1075, 5
      %v1641 = vsel %vm1529, %v1639, %v1640
      %v1642 = vld [vmem:[%s913] sm:$0xf]
      %v1643 = vld [vmem:[%s913 + $0x4] sm:$0xf]
      %v1644 = vld [vmem:[%s913 + $0xc] sm:$0xf]
      %v1645 = vld [vmem:[%s913 + $0x10] sm:$0xf]
      %v1646 = vld [vmem:[%s913 + $0x18] sm:$0xf]
      %v1647 = vld [vmem:[%s913 + $0x1c] sm:$0xf]
      %v1648 = vld [vmem:[%s913 + $0x24] sm:$0xf]
      %v1649 = vld [vmem:[%s913 + $0x28] sm:$0xf]
      %v1650 = vld [vmem:[%s913 + $0x30] sm:$0xf]
      %v1651 = vld [vmem:[%s913 + $0x34] sm:$0xf]
      %v1652 = vld [vmem:[%s913 + $0x3c] sm:$0xf]
      %v1653 = vld [vmem:[%s913 + $0x40] sm:$0xf]
      %v1654 = vld [vmem:[%s913 + $0x48] sm:$0xf]
      %v1655 = vld [vmem:[%s913 + $0x4c] sm:$0xf]
      %v1656 = vld [vmem:[%s913 + $0x54] sm:$0xf]
      %v1657 = vld [vmem:[%s913 + $0x58] sm:$0xf]
      %v1658 = vld [vmem:[%s913 + $0x60] sm:$0xf]
      %v1659 = vld [vmem:[%s913 + $0x64] sm:$0xf]
      %v1660 = vld [vmem:[%s913 + $0x6c] sm:$0xf]
      %v1661 = vld [vmem:[%s913 + $0x70] sm:$0xf]
      %v1662 = vld [vmem:[%s913 + $0x78] sm:$0xf]
      %v1663 = vld [vmem:[%s913 + $0x7c] sm:$0xf]
      %v1664 = vld [vmem:[%s913 + $0x84] sm:$0xf]
      %v1665 = vld [vmem:[%s913 + $0x88] sm:$0xf]
      %v1666 = vld [vmem:[%s913 + $0x90] sm:$0xf]
      %v1667 = vld [vmem:[%s913 + $0x94] sm:$0xf]
      %v1668 = vld [vmem:[%s913 + $0x9c] sm:$0xf]
      %v1669 = vld [vmem:[%s913 + $0xa0] sm:$0xf]
      %v1670 = vld [vmem:[%s913 + $0xa8] sm:$0xf]
      %v1671 = vld [vmem:[%s913 + $0xac] sm:$0xf]
      %v1672 = vld [vmem:[%s913 + $0xb4] sm:$0xf]
      %v1673 = vld [vmem:[%s913 + $0xb8] sm:$0xf]
      %v1674 = vld [vmem:[%s913 + $0x8] sm:$0x1]
      %v1675 = vld [vmem:[%s913 + $0x14] sm:$0x1]
      %v1676 = vld [vmem:[%s913 + $0x20] sm:$0x1]
      %v1677 = vld [vmem:[%s913 + $0x2c] sm:$0x1]
      %v1678 = vld [vmem:[%s913 + $0x38] sm:$0x1]
      %v1679 = vld [vmem:[%s913 + $0x44] sm:$0x1]
      %v1680 = vld [vmem:[%s913 + $0x50] sm:$0x1]
      %v1681 = vld [vmem:[%s913 + $0x5c] sm:$0x1]
      %v1682 = vld [vmem:[%s913 + $0x68] sm:$0x1]
      %v1683 = vld [vmem:[%s913 + $0x74] sm:$0x1]
      %v1684 = vld [vmem:[%s913 + $0x80] sm:$0x1]
      %v1685 = vld [vmem:[%s913 + $0x8c] sm:$0x1]
      %v1686 = vld [vmem:[%s913 + $0x98] sm:$0x1]
      %v1687 = vld [vmem:[%s913 + $0xa4] sm:$0x1]
      %v1688 = vld [vmem:[%s913 + $0xb0] sm:$0x1]
      %v1689 = vld [vmem:[%s913 + $0xbc] sm:$0x1]
      %v1691 = vshrl.u32 %v1642, 16
      %v1693 = vrot.slane %v1691, 4
      %v1694 = vshll.u32 %v1642, 16
      %v1696 = vrot.slane %v1694, 5
      %v1697 = vor.u32 %v1693, %v1696
      %v1698 = vrot.slane %v1697, 4
      %v1700 = vshll.u32 %v1643, 16
      %v1702 = vrot.slane %v1700, 5
      %v1703 = vsel %vm1078, %v1698, %v1702
      %v1704 = vshrl.u32 %v1643, 16
      %v1706 = vrot.slane %v1704, 4
      %v1707 = vor.u32 %v1706, %v1702
      %v1708 = vrot.slane %v1707, 4
      %v1710 = vshll.u32 %v1674, 16
      %v1712 = vrot.slane %v1710, 5
      %v1713 = vsel %vm1078, %v1708, %v1712
      %v1715 = vshrl.u32 %v1644, 16
      %v1717 = vrot.slane %v1715, 4
      %v1718 = vshll.u32 %v1644, 16
      %v1720 = vrot.slane %v1718, 5
      %v1721 = vor.u32 %v1717, %v1720
      %v1722 = vrot.slane %v1721, 4
      %v1724 = vshll.u32 %v1645, 16
      %v1726 = vrot.slane %v1724, 5
      %v1727 = vsel %vm1078, %v1722, %v1726
      %v1728 = vshrl.u32 %v1645, 16
      %v1730 = vrot.slane %v1728, 4
      %v1731 = vor.u32 %v1730, %v1726
      %v1732 = vrot.slane %v1731, 4
      %v1734 = vshll.u32 %v1675, 16
      %v1736 = vrot.slane %v1734, 5
      %v1737 = vsel %vm1078, %v1732, %v1736
      %v1739 = vshrl.u32 %v1646, 16
      %v1741 = vrot.slane %v1739, 4
      %v1742 = vshll.u32 %v1646, 16
      %v1744 = vrot.slane %v1742, 5
      %v1745 = vor.u32 %v1741, %v1744
      %v1746 = vrot.slane %v1745, 4
      %v1748 = vshll.u32 %v1647, 16
      %v1750 = vrot.slane %v1748, 5
      %v1751 = vsel %vm1078, %v1746, %v1750
      %v1752 = vshrl.u32 %v1647, 16
      %v1754 = vrot.slane %v1752, 4
      %v1755 = vor.u32 %v1754, %v1750
      %v1756 = vrot.slane %v1755, 4
      %v1758 = vshll.u32 %v1676, 16
      %v1760 = vrot.slane %v1758, 5
      %v1761 = vsel %vm1078, %v1756, %v1760
      %v1763 = vshrl.u32 %v1648, 16
      %v1765 = vrot.slane %v1763, 4
      %v1766 = vshll.u32 %v1648, 16
      %v1768 = vrot.slane %v1766, 5
      %v1769 = vor.u32 %v1765, %v1768
      %v1770 = vrot.slane %v1769, 4
      %v1772 = vshll.u32 %v1649, 16
      %v1774 = vrot.slane %v1772, 5
      %v1775 = vsel %vm1078, %v1770, %v1774
      %v1776 = vshrl.u32 %v1649, 16
      %v1778 = vrot.slane %v1776, 4
      %v1779 = vor.u32 %v1778, %v1774
      %v1780 = vrot.slane %v1779, 4
      %v1782 = vshll.u32 %v1677, 16
      %v1784 = vrot.slane %v1782, 5
      %v1785 = vsel %vm1078, %v1780, %v1784
      %v1787 = vshrl.u32 %v1650, 16
      %v1789 = vrot.slane %v1787, 4
      %v1790 = vshll.u32 %v1650, 16
      %v1792 = vrot.slane %v1790, 5
      %v1793 = vor.u32 %v1789, %v1792
      %v1794 = vrot.slane %v1793, 4
      %v1796 = vshll.u32 %v1651, 16
      %v1798 = vrot.slane %v1796, 5
      %v1799 = vsel %vm1078, %v1794, %v1798
      %v1800 = vshrl.u32 %v1651, 16
      %v1802 = vrot.slane %v1800, 4
      %v1803 = vor.u32 %v1802, %v1798
      %v1804 = vrot.slane %v1803, 4
      %v1806 = vshll.u32 %v1678, 16
      %v1808 = vrot.slane %v1806, 5
      %v1809 = vsel %vm1078, %v1804, %v1808
      %v1811 = vshrl.u32 %v1652, 16
      %v1813 = vrot.slane %v1811, 4
      %v1814 = vshll.u32 %v1652, 16
      %v1816 = vrot.slane %v1814, 5
      %v1817 = vor.u32 %v1813, %v1816
      %v1818 = vrot.slane %v1817, 4
      %v1820 = vshll.u32 %v1653, 16
      %v1822 = vrot.slane %v1820, 5
      %v1823 = vsel %vm1078, %v1818, %v1822
      %v1824 = vshrl.u32 %v1653, 16
      %v1826 = vrot.slane %v1824, 4
      %v1827 = vor.u32 %v1826, %v1822
      %v1828 = vrot.slane %v1827, 4
      %v1830 = vshll.u32 %v1679, 16
      %v1832 = vrot.slane %v1830, 5
      %v1833 = vsel %vm1078, %v1828, %v1832
      %v1835 = vshrl.u32 %v1654, 16
      %v1837 = vrot.slane %v1835, 4
      %v1838 = vshll.u32 %v1654, 16
      %v1840 = vrot.slane %v1838, 5
      %v1841 = vor.u32 %v1837, %v1840
      %v1842 = vrot.slane %v1841, 4
      %v1844 = vshll.u32 %v1655, 16
      %v1846 = vrot.slane %v1844, 5
      %v1847 = vsel %vm1078, %v1842, %v1846
      %v1848 = vshrl.u32 %v1655, 16
      %v1850 = vrot.slane %v1848, 4
      %v1851 = vor.u32 %v1850, %v1846
      %v1852 = vrot.slane %v1851, 4
      %v1854 = vshll.u32 %v1680, 16
      %v1856 = vrot.slane %v1854, 5
      %v1857 = vsel %vm1078, %v1852, %v1856
      %v1859 = vshrl.u32 %v1656, 16
      %v1861 = vrot.slane %v1859, 4
      %v1862 = vshll.u32 %v1656, 16
      %v1864 = vrot.slane %v1862, 5
      %v1865 = vor.u32 %v1861, %v1864
      %v1866 = vrot.slane %v1865, 4
      %v1868 = vshll.u32 %v1657, 16
      %v1870 = vrot.slane %v1868, 5
      %v1871 = vsel %vm1078, %v1866, %v1870
      %v1872 = vshrl.u32 %v1657, 16
      %v1874 = vrot.slane %v1872, 4
      %v1875 = vor.u32 %v1874, %v1870
      %v1876 = vrot.slane %v1875, 4
      %v1878 = vshll.u32 %v1681, 16
      %v1880 = vrot.slane %v1878, 5
      %v1881 = vsel %vm1078, %v1876, %v1880
      %v1883 = vshrl.u32 %v1658, 16
      %v1885 = vrot.slane %v1883, 4
      %v1886 = vshll.u32 %v1658, 16
      %v1888 = vrot.slane %v1886, 5
      %v1889 = vor.u32 %v1885, %v1888
      %v1890 = vrot.slane %v1889, 4
      %v1892 = vshll.u32 %v1659, 16
      %v1894 = vrot.slane %v1892, 5
      %v1895 = vsel %vm1078, %v1890, %v1894
      %v1896 = vshrl.u32 %v1659, 16
      %v1898 = vrot.slane %v1896, 4
      %v1899 = vor.u32 %v1898, %v1894
      %v1900 = vrot.slane %v1899, 4
      %v1902 = vshll.u32 %v1682, 16
      %v1904 = vrot.slane %v1902, 5
      %v1905 = vsel %vm1078, %v1900, %v1904
      %v1907 = vshrl.u32 %v1660, 16
      %v1909 = vrot.slane %v1907, 4
      %v1910 = vshll.u32 %v1660, 16
      %v1912 = vrot.slane %v1910, 5
      %v1913 = vor.u32 %v1909, %v1912
      %v1914 = vrot.slane %v1913, 4
      %v1916 = vshll.u32 %v1661, 16
      %v1918 = vrot.slane %v1916, 5
      %v1919 = vsel %vm1078, %v1914, %v1918
      %v1920 = vshrl.u32 %v1661, 16
      %v1922 = vrot.slane %v1920, 4
      %v1923 = vor.u32 %v1922, %v1918
      %v1924 = vrot.slane %v1923, 4
      %v1926 = vshll.u32 %v1683, 16
      %v1928 = vrot.slane %v1926, 5
      %v1929 = vsel %vm1078, %v1924, %v1928
      %v1931 = vshrl.u32 %v1662, 16
      %v1933 = vrot.slane %v1931, 4
      %v1934 = vshll.u32 %v1662, 16
      %v1936 = vrot.slane %v1934, 5
      %v1937 = vor.u32 %v1933, %v1936
      %v1938 = vrot.slane %v1937, 4
      %v1940 = vshll.u32 %v1663, 16
      %v1942 = vrot.slane %v1940, 5
      %v1943 = vsel %vm1078, %v1938, %v1942
      %v1944 = vshrl.u32 %v1663, 16
      %v1946 = vrot.slane %v1944, 4
      %v1947 = vor.u32 %v1946, %v1942
      %v1948 = vrot.slane %v1947, 4
      %v1950 = vshll.u32 %v1684, 16
      %v1952 = vrot.slane %v1950, 5
      %v1953 = vsel %vm1078, %v1948, %v1952
      %v1955 = vshrl.u32 %v1664, 16
      %v1957 = vrot.slane %v1955, 4
      %v1958 = vshll.u32 %v1664, 16
      %v1960 = vrot.slane %v1958, 5
      %v1961 = vor.u32 %v1957, %v1960
      %v1962 = vrot.slane %v1961, 4
      %v1964 = vshll.u32 %v1665, 16
      %v1966 = vrot.slane %v1964, 5
      %v1967 = vsel %vm1078, %v1962, %v1966
      %v1968 = vshrl.u32 %v1665, 16
      %v1970 = vrot.slane %v1968, 4
      %v1971 = vor.u32 %v1970, %v1966
      %v1972 = vrot.slane %v1971, 4
      %v1974 = vshll.u32 %v1685, 16
      %v1976 = vrot.slane %v1974, 5
      %v1977 = vsel %vm1078, %v1972, %v1976
      %v1979 = vshrl.u32 %v1666, 16
      %v1981 = vrot.slane %v1979, 4
      %v1982 = vshll.u32 %v1666, 16
      %v1984 = vrot.slane %v1982, 5
      %v1985 = vor.u32 %v1981, %v1984
      %v1986 = vrot.slane %v1985, 4
      %v1988 = vshll.u32 %v1667, 16
      %v1990 = vrot.slane %v1988, 5
      %v1991 = vsel %vm1078, %v1986, %v1990
      %v1992 = vshrl.u32 %v1667, 16
      %v1994 = vrot.slane %v1992, 4
      %v1995 = vor.u32 %v1994, %v1990
      %v1996 = vrot.slane %v1995, 4
      %v1998 = vshll.u32 %v1686, 16
      %v2000 = vrot.slane %v1998, 5
      %v2001 = vsel %vm1078, %v1996, %v2000
      %v2003 = vshrl.u32 %v1668, 16
      %v2005 = vrot.slane %v2003, 4
      %v2006 = vshll.u32 %v1668, 16
      %v2008 = vrot.slane %v2006, 5
      %v2009 = vor.u32 %v2005, %v2008
      %v2010 = vrot.slane %v2009, 4
      %v2012 = vshll.u32 %v1669, 16
      %v2014 = vrot.slane %v2012, 5
      %v2015 = vsel %vm1078, %v2010, %v2014
      %v2016 = vshrl.u32 %v1669, 16
      %v2018 = vrot.slane %v2016, 4
      %v2019 = vor.u32 %v2018, %v2014
      %v2020 = vrot.slane %v2019, 4
      %v2022 = vshll.u32 %v1687, 16
      %v2024 = vrot.slane %v2022, 5
      %v2025 = vsel %vm1078, %v2020, %v2024
      %v2027 = vshrl.u32 %v1670, 16
      %v2029 = vrot.slane %v2027, 4
      %v2030 = vshll.u32 %v1670, 16
      %v2032 = vrot.slane %v2030, 5
      %v2033 = vor.u32 %v2029, %v2032
      %v2034 = vrot.slane %v2033, 4
      %v2036 = vshll.u32 %v1671, 16
      %v2038 = vrot.slane %v2036, 5
      %v2039 = vsel %vm1078, %v2034, %v2038
      %v2040 = vshrl.u32 %v1671, 16
      %v2042 = vrot.slane %v2040, 4
      %v2043 = vor.u32 %v2042, %v2038
      %v2044 = vrot.slane %v2043, 4
      %v2046 = vshll.u32 %v1688, 16
      %v2048 = vrot.slane %v2046, 5
      %v2049 = vsel %vm1078, %v2044, %v2048
      %v2051 = vshrl.u32 %v1672, 16
      %v2053 = vrot.slane %v2051, 4
      %v2054 = vshll.u32 %v1672, 16
      %v2056 = vrot.slane %v2054, 5
      %v2057 = vor.u32 %v2053, %v2056
      %v2058 = vrot.slane %v2057, 4
      %v2060 = vshll.u32 %v1673, 16
      %v2062 = vrot.slane %v2060, 5
      %v2063 = vsel %vm1078, %v2058, %v2062
      %v2064 = vshrl.u32 %v1673, 16
      %v2066 = vrot.slane %v2064, 4
      %v2067 = vor.u32 %v2066, %v2062
      %v2068 = vrot.slane %v2067, 4
      %v2070 = vshll.u32 %v1689, 16
      %v2072 = vrot.slane %v2070, 5
      %v2073 = vsel %vm1078, %v2068, %v2072
      %v2074 = vld [vmem:[%s913] sm:$0xe]
      %v2075 = vld [vmem:[%s913 + $0xc] sm:$0xe]
      %v2076 = vld [vmem:[%s913 + $0x18] sm:$0xe]
      %v2077 = vld [vmem:[%s913 + $0x24] sm:$0xe]
      %v2078 = vld [vmem:[%s913 + $0x30] sm:$0xe]
      %v2079 = vld [vmem:[%s913 + $0x3c] sm:$0xe]
      %v2080 = vld [vmem:[%s913 + $0x48] sm:$0xe]
      %v2081 = vld [vmem:[%s913 + $0x54] sm:$0xe]
      %v2082 = vld [vmem:[%s913 + $0x60] sm:$0xe]
      %v2083 = vld [vmem:[%s913 + $0x6c] sm:$0xe]
      %v2084 = vld [vmem:[%s913 + $0x78] sm:$0xe]
      %v2085 = vld [vmem:[%s913 + $0x84] sm:$0xe]
      %v2086 = vld [vmem:[%s913 + $0x90] sm:$0xe]
      %v2087 = vld [vmem:[%s913 + $0x9c] sm:$0xe]
      %v2088 = vld [vmem:[%s913 + $0xa8] sm:$0xe]
      %v2089 = vld [vmem:[%s913 + $0xb4] sm:$0xe]
      %v2138 = vrot.slane %v2074, 5
      %v2139 = vrot.slane %v2138, 4
      %v2140 = vrot.slane %v1643, 5
      %v2141 = vsel %vm1529, %v2139, %v2140
      %v2142 = vrot.slane %v2140, 4
      %v2143 = vrot.slane %v1674, 5
      %v2144 = vsel %vm1529, %v2142, %v2143
      %v2145 = vrot.slane %v2075, 5
      %v2146 = vrot.slane %v2145, 4
      %v2147 = vrot.slane %v1645, 5
      %v2148 = vsel %vm1529, %v2146, %v2147
      %v2149 = vrot.slane %v2147, 4
      %v2150 = vrot.slane %v1675, 5
      %v2151 = vsel %vm1529, %v2149, %v2150
      %v2152 = vrot.slane %v2076, 5
      %v2153 = vrot.slane %v2152, 4
      %v2154 = vrot.slane %v1647, 5
      %v2155 = vsel %vm1529, %v2153, %v2154
      %v2156 = vrot.slane %v2154, 4
      %v2157 = vrot.slane %v1676, 5
      %v2158 = vsel %vm1529, %v2156, %v2157
      %v2159 = vrot.slane %v2077, 5
      %v2160 = vrot.slane %v2159, 4
      %v2161 = vrot.slane %v1649, 5
      %v2162 = vsel %vm1529, %v2160, %v2161
      %v2163 = vrot.slane %v2161, 4
      %v2164 = vrot.slane %v1677, 5
      %v2165 = vsel %vm1529, %v2163, %v2164
      %v2166 = vrot.slane %v2078, 5
      %v2167 = vrot.slane %v2166, 4
      %v2168 = vrot.slane %v1651, 5
      %v2169 = vsel %vm1529, %v2167, %v2168
      %v2170 = vrot.slane %v2168, 4
      %v2171 = vrot.slane %v1678, 5
      %v2172 = vsel %vm1529, %v2170, %v2171
      %v2173 = vrot.slane %v2079, 5
      %v2174 = vrot.slane %v2173, 4
      %v2175 = vrot.slane %v1653, 5
      %v2176 = vsel %vm1529, %v2174, %v2175
      %v2177 = vrot.slane %v2175, 4
      %v2178 = vrot.slane %v1679, 5
      %v2179 = vsel %vm1529, %v2177, %v2178
      %v2180 = vrot.slane %v2080, 5
      %v2181 = vrot.slane %v2180, 4
      %v2182 = vrot.slane %v1655, 5
      %v2183 = vsel %vm1529, %v2181, %v2182
      %v2184 = vrot.slane %v2182, 4
      %v2185 = vrot.slane %v1680, 5
      %v2186 = vsel %vm1529, %v2184, %v2185
      %v2187 = vrot.slane %v2081, 5
      %v2188 = vrot.slane %v2187, 4
      %v2189 = vrot.slane %v1657, 5
      %v2190 = vsel %vm1529, %v2188, %v2189
      %v2191 = vrot.slane %v2189, 4
      %v2192 = vrot.slane %v1681, 5
      %v2193 = vsel %vm1529, %v2191, %v2192
      %v2194 = vrot.slane %v2082, 5
      %v2195 = vrot.slane %v2194, 4
      %v2196 = vrot.slane %v1659, 5
      %v2197 = vsel %vm1529, %v2195, %v2196
      %v2198 = vrot.slane %v2196, 4
      %v2199 = vrot.slane %v1682, 5
      %v2200 = vsel %vm1529, %v2198, %v2199
      %v2201 = vrot.slane %v2083, 5
      %v2202 = vrot.slane %v2201, 4
      %v2203 = vrot.slane %v1661, 5
      %v2204 = vsel %vm1529, %v2202, %v2203
      %v2205 = vrot.slane %v2203, 4
      %v2206 = vrot.slane %v1683, 5
      %v2207 = vsel %vm1529, %v2205, %v2206
      %v2208 = vrot.slane %v2084, 5
      %v2209 = vrot.slane %v2208, 4
      %v2210 = vrot.slane %v1663, 5
      %v2211 = vsel %vm1529, %v2209, %v2210
      %v2212 = vrot.slane %v2210, 4
      %v2213 = vrot.slane %v1684, 5
      %v2214 = vsel %vm1529, %v2212, %v2213
      %v2215 = vrot.slane %v2085, 5
      %v2216 = vrot.slane %v2215, 4
      %v2217 = vrot.slane %v1665, 5
      %v2218 = vsel %vm1529, %v2216, %v2217
      %v2219 = vrot.slane %v2217, 4
      %v2220 = vrot.slane %v1685, 5
      %v2221 = vsel %vm1529, %v2219, %v2220
      %v2222 = vrot.slane %v2086, 5
      %v2223 = vrot.slane %v2222, 4
      %v2224 = vrot.slane %v1667, 5
      %v2225 = vsel %vm1529, %v2223, %v2224
      %v2226 = vrot.slane %v2224, 4
      %v2227 = vrot.slane %v1686, 5
      %v2228 = vsel %vm1529, %v2226, %v2227
      %v2229 = vrot.slane %v2087, 5
      %v2230 = vrot.slane %v2229, 4
      %v2231 = vrot.slane %v1669, 5
      %v2232 = vsel %vm1529, %v2230, %v2231
      %v2233 = vrot.slane %v2231, 4
      %v2234 = vrot.slane %v1687, 5
      %v2235 = vsel %vm1529, %v2233, %v2234
      %v2236 = vrot.slane %v2088, 5
      %v2237 = vrot.slane %v2236, 4
      %v2238 = vrot.slane %v1671, 5
      %v2239 = vsel %vm1529, %v2237, %v2238
      %v2240 = vrot.slane %v2238, 4
      %v2241 = vrot.slane %v1688, 5
      %v2242 = vsel %vm1529, %v2240, %v2241
      %v2243 = vrot.slane %v2089, 5
      %v2244 = vrot.slane %v2243, 4
      %v2245 = vrot.slane %v1673, 5
      %v2246 = vsel %vm1529, %v2244, %v2245
      %v2247 = vrot.slane %v2245, 4
      %v2248 = vrot.slane %v1689, 5
      %v2249 = vsel %vm1529, %v2247, %v2248
      %s2250 = scalar_lea.vmem [#allocation2], 24
      %v2251 = vld [vmem:[%s2250] sm:$0xf]
      %v2252 = vld [vmem:[%s2250 + $0x4] sm:$0xf]
      %v2253 = vld [vmem:[%s2250 + $0xc] sm:$0xf]
      %v2254 = vld [vmem:[%s2250 + $0x10] sm:$0xf]
      %v2255 = vld [vmem:[%s2250 + $0x18] sm:$0xf]
      %v2256 = vld [vmem:[%s2250 + $0x1c] sm:$0xf]
      %v2257 = vld [vmem:[%s2250 + $0x24] sm:$0xf]
      %v2258 = vld [vmem:[%s2250 + $0x28] sm:$0xf]
      %v2259 = vld [vmem:[%s2250 + $0x30] sm:$0xf]
      %v2260 = vld [vmem:[%s2250 + $0x34] sm:$0xf]
      %v2261 = vld [vmem:[%s2250 + $0x3c] sm:$0xf]
      %v2262 = vld [vmem:[%s2250 + $0x40] sm:$0xf]
      %v2263 = vld [vmem:[%s2250 + $0x48] sm:$0xf]
      %v2264 = vld [vmem:[%s2250 + $0x4c] sm:$0xf]
      %v2265 = vld [vmem:[%s2250 + $0x54] sm:$0xf]
      %v2266 = vld [vmem:[%s2250 + $0x58] sm:$0xf]
      %v2267 = vld [vmem:[%s2250 + $0x60] sm:$0xf]
      %v2268 = vld [vmem:[%s2250 + $0x64] sm:$0xf]
      %v2269 = vld [vmem:[%s2250 + $0x6c] sm:$0xf]
      %v2270 = vld [vmem:[%s2250 + $0x70] sm:$0xf]
      %v2271 = vld [vmem:[%s2250 + $0x78] sm:$0xf]
      %v2272 = vld [vmem:[%s2250 + $0x7c] sm:$0xf]
      %v2273 = vld [vmem:[%s2250 + $0x84] sm:$0xf]
      %v2274 = vld [vmem:[%s2250 + $0x88] sm:$0xf]
      %v2275 = vld [vmem:[%s2250 + $0x90] sm:$0xf]
      %v2276 = vld [vmem:[%s2250 + $0x94] sm:$0xf]
      %v2277 = vld [vmem:[%s2250 + $0x9c] sm:$0xf]
      %v2278 = vld [vmem:[%s2250 + $0xa0] sm:$0xf]
      %v2279 = vld [vmem:[%s2250 + $0xa8] sm:$0xf]
      %v2280 = vld [vmem:[%s2250 + $0xac] sm:$0xf]
      %v2281 = vld [vmem:[%s2250 + $0xb4] sm:$0xf]
      %v2282 = vld [vmem:[%s2250 + $0xb8] sm:$0xf]
      %v2283 = vld [vmem:[%s2250 + $0x8] sm:$0x1]
      %v2284 = vld [vmem:[%s2250 + $0x14] sm:$0x1]
      %v2285 = vld [vmem:[%s2250 + $0x20] sm:$0x1]
      %v2286 = vld [vmem:[%s2250 + $0x2c] sm:$0x1]
      %v2287 = vld [vmem:[%s2250 + $0x38] sm:$0x1]
      %v2288 = vld [vmem:[%s2250 + $0x44] sm:$0x1]
      %v2289 = vld [vmem:[%s2250 + $0x50] sm:$0x1]
      %v2290 = vld [vmem:[%s2250 + $0x5c] sm:$0x1]
      %v2291 = vld [vmem:[%s2250 + $0x68] sm:$0x1]
      %v2292 = vld [vmem:[%s2250 + $0x74] sm:$0x1]
      %v2293 = vld [vmem:[%s2250 + $0x80] sm:$0x1]
      %v2294 = vld [vmem:[%s2250 + $0x8c] sm:$0x1]
      %v2295 = vld [vmem:[%s2250 + $0x98] sm:$0x1]
      %v2296 = vld [vmem:[%s2250 + $0xa4] sm:$0x1]
      %v2297 = vld [vmem:[%s2250 + $0xb0] sm:$0x1]
      %v2298 = vld [vmem:[%s2250 + $0xbc] sm:$0x1]
      %v2300 = vshrl.u32 %v2251, 16
      %v2302 = vrot.slane %v2300, 4
      %v2303 = vshll.u32 %v2251, 16
      %v2305 = vrot.slane %v2303, 5
      %v2306 = vor.u32 %v2302, %v2305
      %v2307 = vrot.slane %v2306, 4
      %v2309 = vshll.u32 %v2252, 16
      %v2311 = vrot.slane %v2309, 5
      %v2312 = vsel %vm1078, %v2307, %v2311
      %v2313 = vshrl.u32 %v2252, 16
      %v2315 = vrot.slane %v2313, 4
      %v2316 = vor.u32 %v2315, %v2311
      %v2317 = vrot.slane %v2316, 4
      %v2319 = vshll.u32 %v2283, 16
      %v2321 = vrot.slane %v2319, 5
      %v2322 = vsel %vm1078, %v2317, %v2321
      %v2324 = vshrl.u32 %v2253, 16
      %v2326 = vrot.slane %v2324, 4
      %v2327 = vshll.u32 %v2253, 16
      %v2329 = vrot.slane %v2327, 5
      %v2330 = vor.u32 %v2326, %v2329
      %v2331 = vrot.slane %v2330, 4
      %v2333 = vshll.u32 %v2254, 16
      %v2335 = vrot.slane %v2333, 5
      %v2336 = vsel %vm1078, %v2331, %v2335
      %v2337 = vshrl.u32 %v2254, 16
      %v2339 = vrot.slane %v2337, 4
      %v2340 = vor.u32 %v2339, %v2335
      %v2341 = vrot.slane %v2340, 4
      %v2343 = vshll.u32 %v2284, 16
      %v2345 = vrot.slane %v2343, 5
      %v2346 = vsel %vm1078, %v2341, %v2345
      %v2348 = vshrl.u32 %v2255, 16
      %v2350 = vrot.slane %v2348, 4
      %v2351 = vshll.u32 %v2255, 16
      %v2353 = vrot.slane %v2351, 5
      %v2354 = vor.u32 %v2350, %v2353
      %v2355 = vrot.slane %v2354, 4
      %v2357 = vshll.u32 %v2256, 16
      %v2359 = vrot.slane %v2357, 5
      %v2360 = vsel %vm1078, %v2355, %v2359
      %v2361 = vshrl.u32 %v2256, 16
      %v2363 = vrot.slane %v2361, 4
      %v2364 = vor.u32 %v2363, %v2359
      %v2365 = vrot.slane %v2364, 4
      %v2367 = vshll.u32 %v2285, 16
      %v2369 = vrot.slane %v2367, 5
      %v2370 = vsel %vm1078, %v2365, %v2369
      %v2372 = vshrl.u32 %v2257, 16
      %v2374 = vrot.slane %v2372, 4
      %v2375 = vshll.u32 %v2257, 16
      %v2377 = vrot.slane %v2375, 5
      %v2378 = vor.u32 %v2374, %v2377
      %v2379 = vrot.slane %v2378, 4
      %v2381 = vshll.u32 %v2258, 16
      %v2383 = vrot.slane %v2381, 5
      %v2384 = vsel %vm1078, %v2379, %v2383
      %v2385 = vshrl.u32 %v2258, 16
      %v2387 = vrot.slane %v2385, 4
      %v2388 = vor.u32 %v2387, %v2383
      %v2389 = vrot.slane %v2388, 4
      %v2391 = vshll.u32 %v2286, 16
      %v2393 = vrot.slane %v2391, 5
      %v2394 = vsel %vm1078, %v2389, %v2393
      %v2396 = vshrl.u32 %v2259, 16
      %v2398 = vrot.slane %v2396, 4
      %v2399 = vshll.u32 %v2259, 16
      %v2401 = vrot.slane %v2399, 5
      %v2402 = vor.u32 %v2398, %v2401
      %v2403 = vrot.slane %v2402, 4
      %v2405 = vshll.u32 %v2260, 16
      %v2407 = vrot.slane %v2405, 5
      %v2408 = vsel %vm1078, %v2403, %v2407
      %v2409 = vshrl.u32 %v2260, 16
      %v2411 = vrot.slane %v2409, 4
      %v2412 = vor.u32 %v2411, %v2407
      %v2413 = vrot.slane %v2412, 4
      %v2415 = vshll.u32 %v2287, 16
      %v2417 = vrot.slane %v2415, 5
      %v2418 = vsel %vm1078, %v2413, %v2417
      %v2420 = vshrl.u32 %v2261, 16
      %v2422 = vrot.slane %v2420, 4
      %v2423 = vshll.u32 %v2261, 16
      %v2425 = vrot.slane %v2423, 5
      %v2426 = vor.u32 %v2422, %v2425
      %v2427 = vrot.slane %v2426, 4
      %v2429 = vshll.u32 %v2262, 16
      %v2431 = vrot.slane %v2429, 5
      %v2432 = vsel %vm1078, %v2427, %v2431
      %v2433 = vshrl.u32 %v2262, 16
      %v2435 = vrot.slane %v2433, 4
      %v2436 = vor.u32 %v2435, %v2431
      %v2437 = vrot.slane %v2436, 4
      %v2439 = vshll.u32 %v2288, 16
      %v2441 = vrot.slane %v2439, 5
      %v2442 = vsel %vm1078, %v2437, %v2441
      %v2444 = vshrl.u32 %v2263, 16
      %v2446 = vrot.slane %v2444, 4
      %v2447 = vshll.u32 %v2263, 16
      %v2449 = vrot.slane %v2447, 5
      %v2450 = vor.u32 %v2446, %v2449
      %v2451 = vrot.slane %v2450, 4
      %v2453 = vshll.u32 %v2264, 16
      %v2455 = vrot.slane %v2453, 5
      %v2456 = vsel %vm1078, %v2451, %v2455
      %v2457 = vshrl.u32 %v2264, 16
      %v2459 = vrot.slane %v2457, 4
      %v2460 = vor.u32 %v2459, %v2455
      %v2461 = vrot.slane %v2460, 4
      %v2463 = vshll.u32 %v2289, 16
      %v2465 = vrot.slane %v2463, 5
      %v2466 = vsel %vm1078, %v2461, %v2465
      %v2468 = vshrl.u32 %v2265, 16
      %v2470 = vrot.slane %v2468, 4
      %v2471 = vshll.u32 %v2265, 16
      %v2473 = vrot.slane %v2471, 5
      %v2474 = vor.u32 %v2470, %v2473
      %v2475 = vrot.slane %v2474, 4
      %v2477 = vshll.u32 %v2266, 16
      %v2479 = vrot.slane %v2477, 5
      %v2480 = vsel %vm1078, %v2475, %v2479
      %v2481 = vshrl.u32 %v2266, 16
      %v2483 = vrot.slane %v2481, 4
      %v2484 = vor.u32 %v2483, %v2479
      %v2485 = vrot.slane %v2484, 4
      %v2487 = vshll.u32 %v2290, 16
      %v2489 = vrot.slane %v2487, 5
      %v2490 = vsel %vm1078, %v2485, %v2489
      %v2492 = vshrl.u32 %v2267, 16
      %v2494 = vrot.slane %v2492, 4
      %v2495 = vshll.u32 %v2267, 16
      %v2497 = vrot.slane %v2495, 5
      %v2498 = vor.u32 %v2494, %v2497
      %v2499 = vrot.slane %v2498, 4
      %v2501 = vshll.u32 %v2268, 16
      %v2503 = vrot.slane %v2501, 5
      %v2504 = vsel %vm1078, %v2499, %v2503
      %v2505 = vshrl.u32 %v2268, 16
      %v2507 = vrot.slane %v2505, 4
      %v2508 = vor.u32 %v2507, %v2503
      %v2509 = vrot.slane %v2508, 4
      %v2511 = vshll.u32 %v2291, 16
      %v2513 = vrot.slane %v2511, 5
      %v2514 = vsel %vm1078, %v2509, %v2513
      %v2516 = vshrl.u32 %v2269, 16
      %v2518 = vrot.slane %v2516, 4
      %v2519 = vshll.u32 %v2269, 16
      %v2521 = vrot.slane %v2519, 5
      %v2522 = vor.u32 %v2518, %v2521
      %v2523 = vrot.slane %v2522, 4
      %v2525 = vshll.u32 %v2270, 16
      %v2527 = vrot.slane %v2525, 5
      %v2528 = vsel %vm1078, %v2523, %v2527
      %v2529 = vshrl.u32 %v2270, 16
      %v2531 = vrot.slane %v2529, 4
      %v2532 = vor.u32 %v2531, %v2527
      %v2533 = vrot.slane %v2532, 4
      %v2535 = vshll.u32 %v2292, 16
      %v2537 = vrot.slane %v2535, 5
      %v2538 = vsel %vm1078, %v2533, %v2537
      %v2540 = vshrl.u32 %v2271, 16
      %v2542 = vrot.slane %v2540, 4
      %v2543 = vshll.u32 %v2271, 16
      %v2545 = vrot.slane %v2543, 5
      %v2546 = vor.u32 %v2542, %v2545
      %v2547 = vrot.slane %v2546, 4
      %v2549 = vshll.u32 %v2272, 16
      %v2551 = vrot.slane %v2549, 5
      %v2552 = vsel %vm1078, %v2547, %v2551
      %v2553 = vshrl.u32 %v2272, 16
      %v2555 = vrot.slane %v2553, 4
      %v2556 = vor.u32 %v2555, %v2551
      %v2557 = vrot.slane %v2556, 4
      %v2559 = vshll.u32 %v2293, 16
      %v2561 = vrot.slane %v2559, 5
      %v2562 = vsel %vm1078, %v2557, %v2561
      %v2564 = vshrl.u32 %v2273, 16
      %v2566 = vrot.slane %v2564, 4
      %v2567 = vshll.u32 %v2273, 16
      %v2569 = vrot.slane %v2567, 5
      %v2570 = vor.u32 %v2566, %v2569
      %v2571 = vrot.slane %v2570, 4
      %v2573 = vshll.u32 %v2274, 16
      %v2575 = vrot.slane %v2573, 5
      %v2576 = vsel %vm1078, %v2571, %v2575
      %v2577 = vshrl.u32 %v2274, 16
      %v2579 = vrot.slane %v2577, 4
      %v2580 = vor.u32 %v2579, %v2575
      %v2581 = vrot.slane %v2580, 4
      %v2583 = vshll.u32 %v2294, 16
      %v2585 = vrot.slane %v2583, 5
      %v2586 = vsel %vm1078, %v2581, %v2585
      %v2588 = vshrl.u32 %v2275, 16
      %v2590 = vrot.slane %v2588, 4
      %v2591 = vshll.u32 %v2275, 16
      %v2593 = vrot.slane %v2591, 5
      %v2594 = vor.u32 %v2590, %v2593
      %v2595 = vrot.slane %v2594, 4
      %v2597 = vshll.u32 %v2276, 16
      %v2599 = vrot.slane %v2597, 5
      %v2600 = vsel %vm1078, %v2595, %v2599
      %v2601 = vshrl.u32 %v2276, 16
      %v2603 = vrot.slane %v2601, 4
      %v2604 = vor.u32 %v2603, %v2599
      %v2605 = vrot.slane %v2604, 4
      %v2607 = vshll.u32 %v2295, 16
      %v2609 = vrot.slane %v2607, 5
      %v2610 = vsel %vm1078, %v2605, %v2609
      %v2612 = vshrl.u32 %v2277, 16
      %v2614 = vrot.slane %v2612, 4
      %v2615 = vshll.u32 %v2277, 16
      %v2617 = vrot.slane %v2615, 5
      %v2618 = vor.u32 %v2614, %v2617
      %v2619 = vrot.slane %v2618, 4
      %v2621 = vshll.u32 %v2278, 16
      %v2623 = vrot.slane %v2621, 5
      %v2624 = vsel %vm1078, %v2619, %v2623
      %v2625 = vshrl.u32 %v2278, 16
      %v2627 = vrot.slane %v2625, 4
      %v2628 = vor.u32 %v2627, %v2623
      %v2629 = vrot.slane %v2628, 4
      %v2631 = vshll.u32 %v2296, 16
      %v2633 = vrot.slane %v2631, 5
      %v2634 = vsel %vm1078, %v2629, %v2633
      %v2636 = vshrl.u32 %v2279, 16
      %v2638 = vrot.slane %v2636, 4
      %v2639 = vshll.u32 %v2279, 16
      %v2641 = vrot.slane %v2639, 5
      %v2642 = vor.u32 %v2638, %v2641
      %v2643 = vrot.slane %v2642, 4
      %v2645 = vshll.u32 %v2280, 16
      %v2647 = vrot.slane %v2645, 5
      %v2648 = vsel %vm1078, %v2643, %v2647
      %v2649 = vshrl.u32 %v2280, 16
      %v2651 = vrot.slane %v2649, 4
      %v2652 = vor.u32 %v2651, %v2647
      %v2653 = vrot.slane %v2652, 4
      %v2655 = vshll.u32 %v2297, 16
      %v2657 = vrot.slane %v2655, 5
      %v2658 = vsel %vm1078, %v2653, %v2657
      %v2660 = vshrl.u32 %v2281, 16
      %v2662 = vrot.slane %v2660, 4
      %v2663 = vshll.u32 %v2281, 16
      %v2665 = vrot.slane %v2663, 5
      %v2666 = vor.u32 %v2662, %v2665
      %v2667 = vrot.slane %v2666, 4
      %v2669 = vshll.u32 %v2282, 16
      %v2671 = vrot.slane %v2669, 5
      %v2672 = vsel %vm1078, %v2667, %v2671
      %v2673 = vshrl.u32 %v2282, 16
      %v2675 = vrot.slane %v2673, 4
      %v2676 = vor.u32 %v2675, %v2671
      %v2677 = vrot.slane %v2676, 4
      %v2679 = vshll.u32 %v2298, 16
      %v2681 = vrot.slane %v2679, 5
      %v2682 = vsel %vm1078, %v2677, %v2681
      %v2683 = vld [vmem:[%s2250] sm:$0xe]
      %v2684 = vld [vmem:[%s2250 + $0xc] sm:$0xe]
      %v2685 = vld [vmem:[%s2250 + $0x18] sm:$0xe]
      %v2686 = vld [vmem:[%s2250 + $0x24] sm:$0xe]
      %v2687 = vld [vmem:[%s2250 + $0x30] sm:$0xe]
      %v2688 = vld [vmem:[%s2250 + $0x3c] sm:$0xe]
      %v2689 = vld [vmem:[%s2250 + $0x48] sm:$0xe]
      %v2690 = vld [vmem:[%s2250 + $0x54] sm:$0xe]
      %v2691 = vld [vmem:[%s2250 + $0x60] sm:$0xe]
      %v2692 = vld [vmem:[%s2250 + $0x6c] sm:$0xe]
      %v2693 = vld [vmem:[%s2250 + $0x78] sm:$0xe]
      %v2694 = vld [vmem:[%s2250 + $0x84] sm:$0xe]
      %v2695 = vld [vmem:[%s2250 + $0x90] sm:$0xe]
      %v2696 = vld [vmem:[%s2250 + $0x9c] sm:$0xe]
      %v2697 = vld [vmem:[%s2250 + $0xa8] sm:$0xe]
      %v2698 = vld [vmem:[%s2250 + $0xb4] sm:$0xe]
      %v2747 = vrot.slane %v2683, 5
      %v2748 = vrot.slane %v2747, 4
      %v2749 = vrot.slane %v2252, 5
      %v2750 = vsel %vm1529, %v2748, %v2749
      %v2751 = vrot.slane %v2749, 4
      %v2752 = vrot.slane %v2283, 5
      %v2753 = vsel %vm1529, %v2751, %v2752
      %v2754 = vrot.slane %v2684, 5
      %v2755 = vrot.slane %v2754, 4
      %v2756 = vrot.slane %v2254, 5
      %v2757 = vsel %vm1529, %v2755, %v2756
      %v2758 = vrot.slane %v2756, 4
      %v2759 = vrot.slane %v2284, 5
      %v2760 = vsel %vm1529, %v2758, %v2759
      %v2761 = vrot.slane %v2685, 5
      %v2762 = vrot.slane %v2761, 4
      %v2763 = vrot.slane %v2256, 5
      %v2764 = vsel %vm1529, %v2762, %v2763
      %v2765 = vrot.slane %v2763, 4
      %v2766 = vrot.slane %v2285, 5
      %v2767 = vsel %vm1529, %v2765, %v2766
      %v2768 = vrot.slane %v2686, 5
      %v2769 = vrot.slane %v2768, 4
      %v2770 = vrot.slane %v2258, 5
      %v2771 = vsel %vm1529, %v2769, %v2770
      %v2772 = vrot.slane %v2770, 4
      %v2773 = vrot.slane %v2286, 5
      %v2774 = vsel %vm1529, %v2772, %v2773
      %v2775 = vrot.slane %v2687, 5
      %v2776 = vrot.slane %v2775, 4
      %v2777 = vrot.slane %v2260, 5
      %v2778 = vsel %vm1529, %v2776, %v2777
      %v2779 = vrot.slane %v2777, 4
      %v2780 = vrot.slane %v2287, 5
      %v2781 = vsel %vm1529, %v2779, %v2780
      %v2782 = vrot.slane %v2688, 5
      %v2783 = vrot.slane %v2782, 4
      %v2784 = vrot.slane %v2262, 5
      %v2785 = vsel %vm1529, %v2783, %v2784
      %v2786 = vrot.slane %v2784, 4
      %v2787 = vrot.slane %v2288, 5
      %v2788 = vsel %vm1529, %v2786, %v2787
      %v2789 = vrot.slane %v2689, 5
      %v2790 = vrot.slane %v2789, 4
      %v2791 = vrot.slane %v2264, 5
      %v2792 = vsel %vm1529, %v2790, %v2791
      %v2793 = vrot.slane %v2791, 4
      %v2794 = vrot.slane %v2289, 5
      %v2795 = vsel %vm1529, %v2793, %v2794
      %v2796 = vrot.slane %v2690, 5
      %v2797 = vrot.slane %v2796, 4
      %v2798 = vrot.slane %v2266, 5
      %v2799 = vsel %vm1529, %v2797, %v2798
      %v2800 = vrot.slane %v2798, 4
      %v2801 = vrot.slane %v2290, 5
      %v2802 = vsel %vm1529, %v2800, %v2801
      %v2803 = vrot.slane %v2691, 5
      %v2804 = vrot.slane %v2803, 4
      %v2805 = vrot.slane %v2268, 5
      %v2806 = vsel %vm1529, %v2804, %v2805
      %v2807 = vrot.slane %v2805, 4
      %v2808 = vrot.slane %v2291, 5
      %v2809 = vsel %vm1529, %v2807, %v2808
      %v2810 = vrot.slane %v2692, 5
      %v2811 = vrot.slane %v2810, 4
      %v2812 = vrot.slane %v2270, 5
      %v2813 = vsel %vm1529, %v2811, %v2812
      %v2814 = vrot.slane %v2812, 4
      %v2815 = vrot.slane %v2292, 5
      %v2816 = vsel %vm1529, %v2814, %v2815
      %v2817 = vrot.slane %v2693, 5
      %v2818 = vrot.slane %v2817, 4
      %v2819 = vrot.slane %v2272, 5
      %v2820 = vsel %vm1529, %v2818, %v2819
      %v2821 = vrot.slane %v2819, 4
      %v2822 = vrot.slane %v2293, 5
      %v2823 = vsel %vm1529, %v2821, %v2822
      %v2824 = vrot.slane %v2694, 5
      %v2825 = vrot.slane %v2824, 4
      %v2826 = vrot.slane %v2274, 5
      %v2827 = vsel %vm1529, %v2825, %v2826
      %v2828 = vrot.slane %v2826, 4
      %v2829 = vrot.slane %v2294, 5
      %v2830 = vsel %vm1529, %v2828, %v2829
      %v2831 = vrot.slane %v2695, 5
      %v2832 = vrot.slane %v2831, 4
      %v2833 = vrot.slane %v2276, 5
      %v2834 = vsel %vm1529, %v2832, %v2833
      %v2835 = vrot.slane %v2833, 4
      %v2836 = vrot.slane %v2295, 5
      %v2837 = vsel %vm1529, %v2835, %v2836
      %v2838 = vrot.slane %v2696, 5
      %v2839 = vrot.slane %v2838, 4
      %v2840 = vrot.slane %v2278, 5
      %v2841 = vsel %vm1529, %v2839, %v2840
      %v2842 = vrot.slane %v2840, 4
      %v2843 = vrot.slane %v2296, 5
      %v2844 = vsel %vm1529, %v2842, %v2843
      %v2845 = vrot.slane %v2697, 5
      %v2846 = vrot.slane %v2845, 4
      %v2847 = vrot.slane %v2280, 5
      %v2848 = vsel %vm1529, %v2846, %v2847
      %v2849 = vrot.slane %v2847, 4
      %v2850 = vrot.slane %v2297, 5
      %v2851 = vsel %vm1529, %v2849, %v2850
      %v2852 = vrot.slane %v2698, 5
      %v2853 = vrot.slane %v2852, 4
      %v2854 = vrot.slane %v2282, 5
      %v2855 = vsel %vm1529, %v2853, %v2854
      %v2856 = vrot.slane %v2854, 4
      %v2857 = vrot.slane %v2298, 5
      %v2858 = vsel %vm1529, %v2856, %v2857
      %v2875 = vunpack.c.l.b16 %v1028
      %v2876 = vunpack.c.l.b16 %v1029
      %v2877 = vunpack.c.l.b16 %v1030
      %v2878 = vunpack.c.l.b16 %v1031
      %v2879 = vunpack.c.l.b16 %v1032
      %v2880 = vunpack.c.l.b16 %v1033
      %v2881 = vunpack.c.l.b16 %v1034
      %v2882 = vunpack.c.l.b16 %v1035
      %v2883 = vunpack.c.l.b16 %v1036
      %v2884 = vunpack.c.l.b16 %v1037
      %v2885 = vunpack.c.l.b16 %v1038
      %v2886 = vunpack.c.l.b16 %v1039
      %v2887 = vunpack.c.l.b16 %v1040
      %v2888 = vunpack.c.l.b16 %v1041
      %v2889 = vunpack.c.l.b16 %v1042
      %v2890 = vunpack.c.l.b16 %v1043
      %v2891 = vunpack.c.l.b16 %v1044
      %v2892 = vunpack.c.l.b16 %v1045
      %v2893 = vunpack.c.l.b16 %v1046
      %v2894 = vunpack.c.l.b16 %v1047
      %v2895 = vunpack.c.l.b16 %v1048
      %v2896 = vunpack.c.l.b16 %v1049
      %v2897 = vunpack.c.l.b16 %v1050
      %v2898 = vunpack.c.l.b16 %v1051
      %v2899 = vunpack.c.l.b16 %v1052
      %v2900 = vunpack.c.l.b16 %v1053
      %v2901 = vunpack.c.l.b16 %v1054
      %v2902 = vunpack.c.l.b16 %v1055
      %v2903 = vunpack.c.l.b16 %v1056
      %v2904 = vunpack.c.l.b16 %v1057
      %v2905 = vunpack.c.l.b16 %v1058
      %v2906 = vunpack.c.l.b16 %v1059
      %v2907 = vpack.c.b16 %v2876, %v2875
      %v2908 = vpack.c.b16 %v2878, %v2877
      %v2909 = vpack.c.b16 %v2880, %v2879
      %v2910 = vpack.c.b16 %v2882, %v2881
      %v2911 = vpack.c.b16 %v2884, %v2883
      %v2912 = vpack.c.b16 %v2886, %v2885
      %v2913 = vpack.c.b16 %v2888, %v2887
      %v2914 = vpack.c.b16 %v2890, %v2889
      %v2915 = vpack.c.b16 %v2892, %v2891
      %v2916 = vpack.c.b16 %v2894, %v2893
      %v2917 = vpack.c.b16 %v2896, %v2895
      %v2918 = vpack.c.b16 %v2898, %v2897
      %v2919 = vpack.c.b16 %v2900, %v2899
      %v2920 = vpack.c.b16 %v2902, %v2901
      %v2921 = vpack.c.b16 %v2904, %v2903
      %v2922 = vpack.c.b16 %v2906, %v2905
      %v2923 = vunpack.c.l.b16 %v1092
      %v2924 = vunpack.c.l.b16 %v1102
      %v2925 = vunpack.c.l.b16 %v1116
      %v2926 = vunpack.c.l.b16 %v1126
      %v2927 = vunpack.c.l.b16 %v1140
      %v2928 = vunpack.c.l.b16 %v1150
      %v2929 = vunpack.c.l.b16 %v1164
      %v2930 = vunpack.c.l.b16 %v1174
      %v2931 = vunpack.c.l.b16 %v1188
      %v2932 = vunpack.c.l.b16 %v1198
      %v2933 = vunpack.c.l.b16 %v1212
      %v2934 = vunpack.c.l.b16 %v1222
      %v2935 = vunpack.c.l.b16 %v1236
      %v2936 = vunpack.c.l.b16 %v1246
      %v2937 = vunpack.c.l.b16 %v1260
      %v2938 = vunpack.c.l.b16 %v1270
      %v2939 = vunpack.c.l.b16 %v1284
      %v2940 = vunpack.c.l.b16 %v1294
      %v2941 = vunpack.c.l.b16 %v1308
      %v2942 = vunpack.c.l.b16 %v1318
      %v2943 = vunpack.c.l.b16 %v1332
      %v2944 = vunpack.c.l.b16 %v1342
      %v2945 = vunpack.c.l.b16 %v1356
      %v2946 = vunpack.c.l.b16 %v1366
      %v2947 = vunpack.c.l.b16 %v1380
      %v2948 = vunpack.c.l.b16 %v1390
      %v2949 = vunpack.c.l.b16 %v1404
      %v2950 = vunpack.c.l.b16 %v1414
      %v2951 = vunpack.c.l.b16 %v1428
      %v2952 = vunpack.c.l.b16 %v1438
      %v2953 = vunpack.c.l.b16 %v1452
      %v2954 = vunpack.c.l.b16 %v1462
      %v2955 = vpack.c.b16 %v2924, %v2923
      %v2956 = vpack.c.b16 %v2926, %v2925
      %v2957 = vpack.c.b16 %v2928, %v2927
      %v2958 = vpack.c.b16 %v2930, %v2929
      %v2959 = vpack.c.b16 %v2932, %v2931
      %v2960 = vpack.c.b16 %v2934, %v2933
      %v2961 = vpack.c.b16 %v2936, %v2935
      %v2962 = vpack.c.b16 %v2938, %v2937
      %v2963 = vpack.c.b16 %v2940, %v2939
      %v2964 = vpack.c.b16 %v2942, %v2941
      %v2965 = vpack.c.b16 %v2944, %v2943
      %v2966 = vpack.c.b16 %v2946, %v2945
      %v2967 = vpack.c.b16 %v2948, %v2947
      %v2968 = vpack.c.b16 %v2950, %v2949
      %v2969 = vpack.c.b16 %v2952, %v2951
      %v2970 = vpack.c.b16 %v2954, %v2953
      %2971 = vrot.lane.b32.xlu0 %v2955, 4
      %v2972 = vpop.permute.xlu0 %2971
      %2973 = vrot.lane.b32.xlu0 %v2956, 4
      %v2974 = vpop.permute.xlu0 %2973
      %2975 = vrot.lane.b32.xlu0 %v2957, 4
      %v2976 = vpop.permute.xlu0 %2975
      %2977 = vrot.lane.b32.xlu0 %v2958, 4
      %v2978 = vpop.permute.xlu0 %2977
      %2979 = vrot.lane.b32.xlu0 %v2959, 4
      %v2980 = vpop.permute.xlu0 %2979
      %2981 = vrot.lane.b32.xlu0 %v2960, 4
      %v2982 = vpop.permute.xlu0 %2981
      %2983 = vrot.lane.b32.xlu0 %v2961, 4
      %v2984 = vpop.permute.xlu0 %2983
      %2985 = vrot.lane.b32.xlu0 %v2962, 4
      %v2986 = vpop.permute.xlu0 %2985
      %2987 = vrot.lane.b32.xlu0 %v2963, 4
      %v2988 = vpop.permute.xlu0 %2987
      %2989 = vrot.lane.b32.xlu0 %v2964, 4
      %v2990 = vpop.permute.xlu0 %2989
      %2991 = vrot.lane.b32.xlu0 %v2965, 4
      %v2992 = vpop.permute.xlu0 %2991
      %2993 = vrot.lane.b32.xlu0 %v2966, 4
      %v2994 = vpop.permute.xlu0 %2993
      %2995 = vrot.lane.b32.xlu0 %v2967, 4
      %v2996 = vpop.permute.xlu0 %2995
      %2997 = vrot.lane.b32.xlu0 %v2968, 4
      %v2998 = vpop.permute.xlu0 %2997
      %2999 = vrot.lane.b32.xlu0 %v2969, 4
      %v3000 = vpop.permute.xlu0 %2999
      %3001 = vrot.lane.b32.xlu0 %v2970, 4
      %v3002 = vpop.permute.xlu0 %3001
      %v3003 = vunpack.c.l.b16 %v1533
      %v3004 = vunpack.c.l.b16 %v1536
      %v3005 = vunpack.c.l.b16 %v1540
      %v3006 = vunpack.c.l.b16 %v1543
      %v3007 = vunpack.c.l.b16 %v1547
      %v3008 = vunpack.c.l.b16 %v1550
      %v3009 = vunpack.c.l.b16 %v1554
      %v3010 = vunpack.c.l.b16 %v1557
      %v3011 = vunpack.c.l.b16 %v1561
      %v3012 = vunpack.c.l.b16 %v1564
      %v3013 = vunpack.c.l.b16 %v1568
      %v3014 = vunpack.c.l.b16 %v1571
      %v3015 = vunpack.c.l.b16 %v1575
      %v3016 = vunpack.c.l.b16 %v1578
      %v3017 = vunpack.c.l.b16 %v1582
      %v3018 = vunpack.c.l.b16 %v1585
      %v3019 = vunpack.c.l.b16 %v1589
      %v3020 = vunpack.c.l.b16 %v1592
      %v3021 = vunpack.c.l.b16 %v1596
      %v3022 = vunpack.c.l.b16 %v1599
      %v3023 = vunpack.c.l.b16 %v1603
      %v3024 = vunpack.c.l.b16 %v1606
      %v3025 = vunpack.c.l.b16 %v1610
      %v3026 = vunpack.c.l.b16 %v1613
      %v3027 = vunpack.c.l.b16 %v1617
      %v3028 = vunpack.c.l.b16 %v1620
      %v3029 = vunpack.c.l.b16 %v1624
      %v3030 = vunpack.c.l.b16 %v1627
      %v3031 = vunpack.c.l.b16 %v1631
      %v3032 = vunpack.c.l.b16 %v1634
      %v3033 = vunpack.c.l.b16 %v1638
      %v3034 = vunpack.c.l.b16 %v1641
      %v3035 = vpack.c.b16 %v3004, %v3003
      %v3036 = vpack.c.b16 %v3006, %v3005
      %v3037 = vpack.c.b16 %v3008, %v3007
      %v3038 = vpack.c.b16 %v3010, %v3009
      %v3039 = vpack.c.b16 %v3012, %v3011
      %v3040 = vpack.c.b16 %v3014, %v3013
      %v3041 = vpack.c.b16 %v3016, %v3015
      %v3042 = vpack.c.b16 %v3018, %v3017
      %v3043 = vpack.c.b16 %v3020, %v3019
      %v3044 = vpack.c.b16 %v3022, %v3021
      %v3045 = vpack.c.b16 %v3024, %v3023
      %v3046 = vpack.c.b16 %v3026, %v3025
      %v3047 = vpack.c.b16 %v3028, %v3027
      %v3048 = vpack.c.b16 %v3030, %v3029
      %v3049 = vpack.c.b16 %v3032, %v3031
      %v3050 = vpack.c.b16 %v3034, %v3033
      %3051 = vrot.lane.b32.xlu0 %v3035, 8
      %v3052 = vpop.permute.xlu0 %3051
      %3053 = vrot.lane.b32.xlu0 %v3036, 8
      %v3054 = vpop.permute.xlu0 %3053
      %3055 = vrot.lane.b32.xlu0 %v3037, 8
      %v3056 = vpop.permute.xlu0 %3055
      %3057 = vrot.lane.b32.xlu0 %v3038, 8
      %v3058 = vpop.permute.xlu0 %3057
      %3059 = vrot.lane.b32.xlu0 %v3039, 8
      %v3060 = vpop.permute.xlu0 %3059
      %3061 = vrot.lane.b32.xlu0 %v3040, 8
      %v3062 = vpop.permute.xlu0 %3061
      %3063 = vrot.lane.b32.xlu0 %v3041, 8
      %v3064 = vpop.permute.xlu0 %3063
      %3065 = vrot.lane.b32.xlu0 %v3042, 8
      %v3066 = vpop.permute.xlu0 %3065
      %3067 = vrot.lane.b32.xlu0 %v3043, 8
      %v3068 = vpop.permute.xlu0 %3067
      %3069 = vrot.lane.b32.xlu0 %v3044, 8
      %v3070 = vpop.permute.xlu0 %3069
      %3071 = vrot.lane.b32.xlu0 %v3045, 8
      %v3072 = vpop.permute.xlu0 %3071
      %3073 = vrot.lane.b32.xlu0 %v3046, 8
      %v3074 = vpop.permute.xlu0 %3073
      %3075 = vrot.lane.b32.xlu0 %v3047, 8
      %v3076 = vpop.permute.xlu0 %3075
      %3077 = vrot.lane.b32.xlu0 %v3048, 8
      %v3078 = vpop.permute.xlu0 %3077
      %3079 = vrot.lane.b32.xlu0 %v3049, 8
      %v3080 = vpop.permute.xlu0 %3079
      %3081 = vrot.lane.b32.xlu0 %v3050, 8
      %v3082 = vpop.permute.xlu0 %3081
      %v3099 = vunpack.c.l.b16 %v1642
      %v3100 = vunpack.c.l.b16 %v1643
      %v3101 = vunpack.c.l.b16 %v1644
      %v3102 = vunpack.c.l.b16 %v1645
      %v3103 = vunpack.c.l.b16 %v1646
      %v3104 = vunpack.c.l.b16 %v1647
      %v3105 = vunpack.c.l.b16 %v1648
      %v3106 = vunpack.c.l.b16 %v1649
      %v3107 = vunpack.c.l.b16 %v1650
      %v3108 = vunpack.c.l.b16 %v1651
      %v3109 = vunpack.c.l.b16 %v1652
      %v3110 = vunpack.c.l.b16 %v1653
      %v3111 = vunpack.c.l.b16 %v1654
      %v3112 = vunpack.c.l.b16 %v1655
      %v3113 = vunpack.c.l.b16 %v1656
      %v3114 = vunpack.c.l.b16 %v1657
      %v3115 = vunpack.c.l.b16 %v1658
      %v3116 = vunpack.c.l.b16 %v1659
      %v3117 = vunpack.c.l.b16 %v1660
      %v3118 = vunpack.c.l.b16 %v1661
      %v3119 = vunpack.c.l.b16 %v1662
      %v3120 = vunpack.c.l.b16 %v1663
      %v3121 = vunpack.c.l.b16 %v1664
      %v3122 = vunpack.c.l.b16 %v1665
      %v3123 = vunpack.c.l.b16 %v1666
      %v3124 = vunpack.c.l.b16 %v1667
      %v3125 = vunpack.c.l.b16 %v1668
      %v3126 = vunpack.c.l.b16 %v1669
      %v3127 = vunpack.c.l.b16 %v1670
      %v3128 = vunpack.c.l.b16 %v1671
      %v3129 = vunpack.c.l.b16 %v1672
      %v3130 = vunpack.c.l.b16 %v1673
      %v3131 = vpack.c.b16 %v3100, %v3099
      %v3132 = vpack.c.b16 %v3102, %v3101
      %v3133 = vpack.c.b16 %v3104, %v3103
      %v3134 = vpack.c.b16 %v3106, %v3105
      %v3135 = vpack.c.b16 %v3108, %v3107
      %v3136 = vpack.c.b16 %v3110, %v3109
      %v3137 = vpack.c.b16 %v3112, %v3111
      %v3138 = vpack.c.b16 %v3114, %v3113
      %v3139 = vpack.c.b16 %v3116, %v3115
      %v3140 = vpack.c.b16 %v3118, %v3117
      %v3141 = vpack.c.b16 %v3120, %v3119
      %v3142 = vpack.c.b16 %v3122, %v3121
      %v3143 = vpack.c.b16 %v3124, %v3123
      %v3144 = vpack.c.b16 %v3126, %v3125
      %v3145 = vpack.c.b16 %v3128, %v3127
      %v3146 = vpack.c.b16 %v3130, %v3129
      %3147 = vrot.lane.b32.xlu0 %v3131, 12
      %v3148 = vpop.permute.xlu0 %3147
      %3149 = vrot.lane.b32.xlu0 %v3132, 12
      %v3150 = vpop.permute.xlu0 %3149
      %3151 = vrot.lane.b32.xlu0 %v3133, 12
      %v3152 = vpop.permute.xlu0 %3151
      %3153 = vrot.lane.b32.xlu0 %v3134, 12
      %v3154 = vpop.permute.xlu0 %3153
      %3155 = vrot.lane.b32.xlu0 %v3135, 12
      %v3156 = vpop.permute.xlu0 %3155
      %3157 = vrot.lane.b32.xlu0 %v3136, 12
      %v3158 = vpop.permute.xlu0 %3157
      %3159 = vrot.lane.b32.xlu0 %v3137, 12
      %v3160 = vpop.permute.xlu0 %3159
      %3161 = vrot.lane.b32.xlu0 %v3138, 12
      %v3162 = vpop.permute.xlu0 %3161
      %3163 = vrot.lane.b32.xlu0 %v3139, 12
      %v3164 = vpop.permute.xlu0 %3163
      %3165 = vrot.lane.b32.xlu0 %v3140, 12
      %v3166 = vpop.permute.xlu0 %3165
      %3167 = vrot.lane.b32.xlu0 %v3141, 12
      %v3168 = vpop.permute.xlu0 %3167
      %3169 = vrot.lane.b32.xlu0 %v3142, 12
      %v3170 = vpop.permute.xlu0 %3169
      %3171 = vrot.lane.b32.xlu0 %v3143, 12
      %v3172 = vpop.permute.xlu0 %3171
      %3173 = vrot.lane.b32.xlu0 %v3144, 12
      %v3174 = vpop.permute.xlu0 %3173
      %3175 = vrot.lane.b32.xlu0 %v3145, 12
      %v3176 = vpop.permute.xlu0 %3175
      %3177 = vrot.lane.b32.xlu0 %v3146, 12
      %v3178 = vpop.permute.xlu0 %3177
      %v3179 = vunpack.c.l.b16 %v1703
      %v3180 = vunpack.c.l.b16 %v1713
      %v3181 = vunpack.c.l.b16 %v1727
      %v3182 = vunpack.c.l.b16 %v1737
      %v3183 = vunpack.c.l.b16 %v1751
      %v3184 = vunpack.c.l.b16 %v1761
      %v3185 = vunpack.c.l.b16 %v1775
      %v3186 = vunpack.c.l.b16 %v1785
      %v3187 = vunpack.c.l.b16 %v1799
      %v3188 = vunpack.c.l.b16 %v1809
      %v3189 = vunpack.c.l.b16 %v1823
      %v3190 = vunpack.c.l.b16 %v1833
      %v3191 = vunpack.c.l.b16 %v1847
      %v3192 = vunpack.c.l.b16 %v1857
      %v3193 = vunpack.c.l.b16 %v1871
      %v3194 = vunpack.c.l.b16 %v1881
      %v3195 = vunpack.c.l.b16 %v1895
      %v3196 = vunpack.c.l.b16 %v1905
      %v3197 = vunpack.c.l.b16 %v1919
      %v3198 = vunpack.c.l.b16 %v1929
      %v3199 = vunpack.c.l.b16 %v1943
      %v3200 = vunpack.c.l.b16 %v1953
      %v3201 = vunpack.c.l.b16 %v1967
      %v3202 = vunpack.c.l.b16 %v1977
      %v3203 = vunpack.c.l.b16 %v1991
      %v3204 = vunpack.c.l.b16 %v2001
      %v3205 = vunpack.c.l.b16 %v2015
      %v3206 = vunpack.c.l.b16 %v2025
      %v3207 = vunpack.c.l.b16 %v2039
      %v3208 = vunpack.c.l.b16 %v2049
      %v3209 = vunpack.c.l.b16 %v2063
      %v3210 = vunpack.c.l.b16 %v2073
      %v3211 = vpack.c.b16 %v3180, %v3179
      %v3212 = vpack.c.b16 %v3182, %v3181
      %v3213 = vpack.c.b16 %v3184, %v3183
      %v3214 = vpack.c.b16 %v3186, %v3185
      %v3215 = vpack.c.b16 %v3188, %v3187
      %v3216 = vpack.c.b16 %v3190, %v3189
      %v3217 = vpack.c.b16 %v3192, %v3191
      %v3218 = vpack.c.b16 %v3194, %v3193
      %v3219 = vpack.c.b16 %v3196, %v3195
      %v3220 = vpack.c.b16 %v3198, %v3197
      %v3221 = vpack.c.b16 %v3200, %v3199
      %v3222 = vpack.c.b16 %v3202, %v3201
      %v3223 = vpack.c.b16 %v3204, %v3203
      %v3224 = vpack.c.b16 %v3206, %v3205
      %v3225 = vpack.c.b16 %v3208, %v3207
      %v3226 = vpack.c.b16 %v3210, %v3209
      %3227 = vrot.lane.b32.xlu0 %v3211, 16
      %v3228 = vpop.permute.xlu0 %3227
      %3229 = vrot.lane.b32.xlu0 %v3212, 16
      %v3230 = vpop.permute.xlu0 %3229
      %3231 = vrot.lane.b32.xlu0 %v3213, 16
      %v3232 = vpop.permute.xlu0 %3231
      %3233 = vrot.lane.b32.xlu0 %v3214, 16
      %v3234 = vpop.permute.xlu0 %3233
      %3235 = vrot.lane.b32.xlu0 %v3215, 16
      %v3236 = vpop.permute.xlu0 %3235
      %3237 = vrot.lane.b32.xlu0 %v3216, 16
      %v3238 = vpop.permute.xlu0 %3237
      %3239 = vrot.lane.b32.xlu0 %v3217, 16
      %v3240 = vpop.permute.xlu0 %3239
      %3241 = vrot.lane.b32.xlu0 %v3218, 16
      %v3242 = vpop.permute.xlu0 %3241
      %3243 = vrot.lane.b32.xlu0 %v3219, 16
      %v3244 = vpop.permute.xlu0 %3243
      %3245 = vrot.lane.b32.xlu0 %v3220, 16
      %v3246 = vpop.permute.xlu0 %3245
      %3247 = vrot.lane.b32.xlu0 %v3221, 16
      %v3248 = vpop.permute.xlu0 %3247
      %3249 = vrot.lane.b32.xlu0 %v3222, 16
      %v3250 = vpop.permute.xlu0 %3249
      %3251 = vrot.lane.b32.xlu0 %v3223, 16
      %v3252 = vpop.permute.xlu0 %3251
      %3253 = vrot.lane.b32.xlu0 %v3224, 16
      %v3254 = vpop.permute.xlu0 %3253
      %3255 = vrot.lane.b32.xlu0 %v3225, 16
      %v3256 = vpop.permute.xlu0 %3255
      %3257 = vrot.lane.b32.xlu0 %v3226, 16
      %v3258 = vpop.permute.xlu0 %3257
      %v3259 = vunpack.c.l.b16 %v2141
      %v3260 = vunpack.c.l.b16 %v2144
      %v3261 = vunpack.c.l.b16 %v2148
      %v3262 = vunpack.c.l.b16 %v2151
      %v3263 = vunpack.c.l.b16 %v2155
      %v3264 = vunpack.c.l.b16 %v2158
      %v3265 = vunpack.c.l.b16 %v2162
      %v3266 = vunpack.c.l.b16 %v2165
      %v3267 = vunpack.c.l.b16 %v2169
      %v3268 = vunpack.c.l.b16 %v2172
      %v3269 = vunpack.c.l.b16 %v2176
      %v3270 = vunpack.c.l.b16 %v2179
      %v3271 = vunpack.c.l.b16 %v2183
      %v3272 = vunpack.c.l.b16 %v2186
      %v3273 = vunpack.c.l.b16 %v2190
      %v3274 = vunpack.c.l.b16 %v2193
      %v3275 = vunpack.c.l.b16 %v2197
      %v3276 = vunpack.c.l.b16 %v2200
      %v3277 = vunpack.c.l.b16 %v2204
      %v3278 = vunpack.c.l.b16 %v2207
      %v3279 = vunpack.c.l.b16 %v2211
      %v3280 = vunpack.c.l.b16 %v2214
      %v3281 = vunpack.c.l.b16 %v2218
      %v3282 = vunpack.c.l.b16 %v2221
      %v3283 = vunpack.c.l.b16 %v2225
      %v3284 = vunpack.c.l.b16 %v2228
      %v3285 = vunpack.c.l.b16 %v2232
      %v3286 = vunpack.c.l.b16 %v2235
      %v3287 = vunpack.c.l.b16 %v2239
      %v3288 = vunpack.c.l.b16 %v2242
      %v3289 = vunpack.c.l.b16 %v2246
      %v3290 = vunpack.c.l.b16 %v2249
      %v3291 = vpack.c.b16 %v3260, %v3259
      %v3292 = vpack.c.b16 %v3262, %v3261
      %v3293 = vpack.c.b16 %v3264, %v3263
      %v3294 = vpack.c.b16 %v3266, %v3265
      %v3295 = vpack.c.b16 %v3268, %v3267
      %v3296 = vpack.c.b16 %v3270, %v3269
      %v3297 = vpack.c.b16 %v3272, %v3271
      %v3298 = vpack.c.b16 %v3274, %v3273
      %v3299 = vpack.c.b16 %v3276, %v3275
      %v3300 = vpack.c.b16 %v3278, %v3277
      %v3301 = vpack.c.b16 %v3280, %v3279
      %v3302 = vpack.c.b16 %v3282, %v3281
      %v3303 = vpack.c.b16 %v3284, %v3283
      %v3304 = vpack.c.b16 %v3286, %v3285
      %v3305 = vpack.c.b16 %v3288, %v3287
      %v3306 = vpack.c.b16 %v3290, %v3289
      %3307 = vrot.lane.b32.xlu0 %v3291, 20
      %v3308 = vpop.permute.xlu0 %3307
      %3309 = vrot.lane.b32.xlu0 %v3292, 20
      %v3310 = vpop.permute.xlu0 %3309
      %3311 = vrot.lane.b32.xlu0 %v3293, 20
      %v3312 = vpop.permute.xlu0 %3311
      %3313 = vrot.lane.b32.xlu0 %v3294, 20
      %v3314 = vpop.permute.xlu0 %3313
      %3315 = vrot.lane.b32.xlu0 %v3295, 20
      %v3316 = vpop.permute.xlu0 %3315
      %3317 = vrot.lane.b32.xlu0 %v3296, 20
      %v3318 = vpop.permute.xlu0 %3317
      %3319 = vrot.lane.b32.xlu0 %v3297, 20
      %v3320 = vpop.permute.xlu0 %3319
      %3321 = vrot.lane.b32.xlu0 %v3298, 20
      %v3322 = vpop.permute.xlu0 %3321
      %3323 = vrot.lane.b32.xlu0 %v3299, 20
      %v3324 = vpop.permute.xlu0 %3323
      %3325 = vrot.lane.b32.xlu0 %v3300, 20
      %v3326 = vpop.permute.xlu0 %3325
      %3327 = vrot.lane.b32.xlu0 %v3301, 20
      %v3328 = vpop.permute.xlu0 %3327
      %3329 = vrot.lane.b32.xlu0 %v3302, 20
      %v3330 = vpop.permute.xlu0 %3329
      %3331 = vrot.lane.b32.xlu0 %v3303, 20
      %v3332 = vpop.permute.xlu0 %3331
      %3333 = vrot.lane.b32.xlu0 %v3304, 20
      %v3334 = vpop.permute.xlu0 %3333
      %3335 = vrot.lane.b32.xlu0 %v3305, 20
      %v3336 = vpop.permute.xlu0 %3335
      %3337 = vrot.lane.b32.xlu0 %v3306, 20
      %v3338 = vpop.permute.xlu0 %3337
      %v3355 = vunpack.c.l.b16 %v2251
      %v3356 = vunpack.c.l.b16 %v2252
      %v3357 = vunpack.c.l.b16 %v2253
      %v3358 = vunpack.c.l.b16 %v2254
      %v3359 = vunpack.c.l.b16 %v2255
      %v3360 = vunpack.c.l.b16 %v2256
      %v3361 = vunpack.c.l.b16 %v2257
      %v3362 = vunpack.c.l.b16 %v2258
      %v3363 = vunpack.c.l.b16 %v2259
      %v3364 = vunpack.c.l.b16 %v2260
      %v3365 = vunpack.c.l.b16 %v2261
      %v3366 = vunpack.c.l.b16 %v2262
      %v3367 = vunpack.c.l.b16 %v2263
      %v3368 = vunpack.c.l.b16 %v2264
      %v3369 = vunpack.c.l.b16 %v2265
      %v3370 = vunpack.c.l.b16 %v2266
      %v3371 = vunpack.c.l.b16 %v2267
      %v3372 = vunpack.c.l.b16 %v2268
      %v3373 = vunpack.c.l.b16 %v2269
      %v3374 = vunpack.c.l.b16 %v2270
      %v3375 = vunpack.c.l.b16 %v2271
      %v3376 = vunpack.c.l.b16 %v2272
      %v3377 = vunpack.c.l.b16 %v2273
      %v3378 = vunpack.c.l.b16 %v2274
      %v3379 = vunpack.c.l.b16 %v2275
      %v3380 = vunpack.c.l.b16 %v2276
      %v3381 = vunpack.c.l.b16 %v2277
      %v3382 = vunpack.c.l.b16 %v2278
      %v3383 = vunpack.c.l.b16 %v2279
      %v3384 = vunpack.c.l.b16 %v2280
      %v3385 = vunpack.c.l.b16 %v2281
      %v3386 = vunpack.c.l.b16 %v2282
      %v3387 = vpack.c.b16 %v3356, %v3355
      %v3388 = vpack.c.b16 %v3358, %v3357
      %v3389 = vpack.c.b16 %v3360, %v3359
      %v3390 = vpack.c.b16 %v3362, %v3361
      %v3391 = vpack.c.b16 %v3364, %v3363
      %v3392 = vpack.c.b16 %v3366, %v3365
      %v3393 = vpack.c.b16 %v3368, %v3367
      %v3394 = vpack.c.b16 %v3370, %v3369
      %v3395 = vpack.c.b16 %v3372, %v3371
      %v3396 = vpack.c.b16 %v3374, %v3373
      %v3397 = vpack.c.b16 %v3376, %v3375
      %v3398 = vpack.c.b16 %v3378, %v3377
      %v3399 = vpack.c.b16 %v3380, %v3379
      %v3400 = vpack.c.b16 %v3382, %v3381
      %v3401 = vpack.c.b16 %v3384, %v3383
      %v3402 = vpack.c.b16 %v3386, %v3385
      %3403 = vrot.lane.b32.xlu0 %v3387, 24
      %v3404 = vpop.permute.xlu0 %3403
      %3405 = vrot.lane.b32.xlu0 %v3388, 24
      %v3406 = vpop.permute.xlu0 %3405
      %3407 = vrot.lane.b32.xlu0 %v3389, 24
      %v3408 = vpop.permute.xlu0 %3407
      %3409 = vrot.lane.b32.xlu0 %v3390, 24
      %v3410 = vpop.permute.xlu0 %3409
      %3411 = vrot.lane.b32.xlu0 %v3391, 24
      %v3412 = vpop.permute.xlu0 %3411
      %3413 = vrot.lane.b32.xlu0 %v3392, 24
      %v3414 = vpop.permute.xlu0 %3413
      %3415 = vrot.lane.b32.xlu0 %v3393, 24
      %v3416 = vpop.permute.xlu0 %3415
      %3417 = vrot.lane.b32.xlu0 %v3394, 24
      %v3418 = vpop.permute.xlu0 %3417
      %3419 = vrot.lane.b32.xlu0 %v3395, 24
      %v3420 = vpop.permute.xlu0 %3419
      %3421 = vrot.lane.b32.xlu0 %v3396, 24
      %v3422 = vpop.permute.xlu0 %3421
      %3423 = vrot.lane.b32.xlu0 %v3397, 24
      %v3424 = vpop.permute.xlu0 %3423
      %3425 = vrot.lane.b32.xlu0 %v3398, 24
      %v3426 = vpop.permute.xlu0 %3425
      %3427 = vrot.lane.b32.xlu0 %v3399, 24
      %v3428 = vpop.permute.xlu0 %3427
      %3429 = vrot.lane.b32.xlu0 %v3400, 24
      %v3430 = vpop.permute.xlu0 %3429
      %3431 = vrot.lane.b32.xlu0 %v3401, 24
      %v3432 = vpop.permute.xlu0 %3431
      %3433 = vrot.lane.b32.xlu0 %v3402, 24
      %v3434 = vpop.permute.xlu0 %3433
      %v3435 = vunpack.c.l.b16 %v2312
      %v3436 = vunpack.c.l.b16 %v2322
      %v3437 = vunpack.c.l.b16 %v2336
      %v3438 = vunpack.c.l.b16 %v2346
      %v3439 = vunpack.c.l.b16 %v2360
      %v3440 = vunpack.c.l.b16 %v2370
      %v3441 = vunpack.c.l.b16 %v2384
      %v3442 = vunpack.c.l.b16 %v2394
      %v3443 = vunpack.c.l.b16 %v2408
      %v3444 = vunpack.c.l.b16 %v2418
      %v3445 = vunpack.c.l.b16 %v2432
      %v3446 = vunpack.c.l.b16 %v2442
      %v3447 = vunpack.c.l.b16 %v2456
      %v3448 = vunpack.c.l.b16 %v2466
      %v3449 = vunpack.c.l.b16 %v2480
      %v3450 = vunpack.c.l.b16 %v2490
      %v3451 = vunpack.c.l.b16 %v2504
      %v3452 = vunpack.c.l.b16 %v2514
      %v3453 = vunpack.c.l.b16 %v2528
      %v3454 = vunpack.c.l.b16 %v2538
      %v3455 = vunpack.c.l.b16 %v2552
      %v3456 = vunpack.c.l.b16 %v2562
      %v3457 = vunpack.c.l.b16 %v2576
      %v3458 = vunpack.c.l.b16 %v2586
      %v3459 = vunpack.c.l.b16 %v2600
      %v3460 = vunpack.c.l.b16 %v2610
      %v3461 = vunpack.c.l.b16 %v2624
      %v3462 = vunpack.c.l.b16 %v2634
      %v3463 = vunpack.c.l.b16 %v2648
      %v3464 = vunpack.c.l.b16 %v2658
      %v3465 = vunpack.c.l.b16 %v2672
      %v3466 = vunpack.c.l.b16 %v2682
      %v3467 = vpack.c.b16 %v3436, %v3435
      %v3468 = vpack.c.b16 %v3438, %v3437
      %v3469 = vpack.c.b16 %v3440, %v3439
      %v3470 = vpack.c.b16 %v3442, %v3441
      %v3471 = vpack.c.b16 %v3444, %v3443
      %v3472 = vpack.c.b16 %v3446, %v3445
      %v3473 = vpack.c.b16 %v3448, %v3447
      %v3474 = vpack.c.b16 %v3450, %v3449
      %v3475 = vpack.c.b16 %v3452, %v3451
      %v3476 = vpack.c.b16 %v3454, %v3453
      %v3477 = vpack.c.b16 %v3456, %v3455
      %v3478 = vpack.c.b16 %v3458, %v3457
      %v3479 = vpack.c.b16 %v3460, %v3459
      %v3480 = vpack.c.b16 %v3462, %v3461
      %v3481 = vpack.c.b16 %v3464, %v3463
      %v3482 = vpack.c.b16 %v3466, %v3465
      %3483 = vrot.lane.b32.xlu0 %v3467, 28
      %v3484 = vpop.permute.xlu0 %3483
      %3485 = vrot.lane.b32.xlu0 %v3468, 28
      %v3486 = vpop.permute.xlu0 %3485
      %3487 = vrot.lane.b32.xlu0 %v3469, 28
      %v3488 = vpop.permute.xlu0 %3487
      %3489 = vrot.lane.b32.xlu0 %v3470, 28
      %v3490 = vpop.permute.xlu0 %3489
      %3491 = vrot.lane.b32.xlu0 %v3471, 28
      %v3492 = vpop.permute.xlu0 %3491
      %3493 = vrot.lane.b32.xlu0 %v3472, 28
      %v3494 = vpop.permute.xlu0 %3493
      %3495 = vrot.lane.b32.xlu0 %v3473, 28
      %v3496 = vpop.permute.xlu0 %3495
      %3497 = vrot.lane.b32.xlu0 %v3474, 28
      %v3498 = vpop.permute.xlu0 %3497
      %3499 = vrot.lane.b32.xlu0 %v3475, 28
      %v3500 = vpop.permute.xlu0 %3499
      %3501 = vrot.lane.b32.xlu0 %v3476, 28
      %v3502 = vpop.permute.xlu0 %3501
      %3503 = vrot.lane.b32.xlu0 %v3477, 28
      %v3504 = vpop.permute.xlu0 %3503
      %3505 = vrot.lane.b32.xlu0 %v3478, 28
      %v3506 = vpop.permute.xlu0 %3505
      %3507 = vrot.lane.b32.xlu0 %v3479, 28
      %v3508 = vpop.permute.xlu0 %3507
      %3509 = vrot.lane.b32.xlu0 %v3480, 28
      %v3510 = vpop.permute.xlu0 %3509
      %3511 = vrot.lane.b32.xlu0 %v3481, 28
      %v3512 = vpop.permute.xlu0 %3511
      %3513 = vrot.lane.b32.xlu0 %v3482, 28
      %v3514 = vpop.permute.xlu0 %3513
      %v3515 = vunpack.c.l.b16 %v2750
      %v3516 = vunpack.c.l.b16 %v2753
      %v3517 = vunpack.c.l.b16 %v2757
      %v3518 = vunpack.c.l.b16 %v2760
      %v3519 = vunpack.c.l.b16 %v2764
      %v3520 = vunpack.c.l.b16 %v2767
      %v3521 = vunpack.c.l.b16 %v2771
      %v3522 = vunpack.c.l.b16 %v2774
      %v3523 = vunpack.c.l.b16 %v2778
      %v3524 = vunpack.c.l.b16 %v2781
      %v3525 = vunpack.c.l.b16 %v2785
      %v3526 = vunpack.c.l.b16 %v2788
      %v3527 = vunpack.c.l.b16 %v2792
      %v3528 = vunpack.c.l.b16 %v2795
      %v3529 = vunpack.c.l.b16 %v2799
      %v3530 = vunpack.c.l.b16 %v2802
      %v3531 = vunpack.c.l.b16 %v2806
      %v3532 = vunpack.c.l.b16 %v2809
      %v3533 = vunpack.c.l.b16 %v2813
      %v3534 = vunpack.c.l.b16 %v2816
      %v3535 = vunpack.c.l.b16 %v2820
      %v3536 = vunpack.c.l.b16 %v2823
      %v3537 = vunpack.c.l.b16 %v2827
      %v3538 = vunpack.c.l.b16 %v2830
      %v3539 = vunpack.c.l.b16 %v2834
      %v3540 = vunpack.c.l.b16 %v2837
      %v3541 = vunpack.c.l.b16 %v2841
      %v3542 = vunpack.c.l.b16 %v2844
      %v3543 = vunpack.c.l.b16 %v2848
      %v3544 = vunpack.c.l.b16 %v2851
      %v3545 = vunpack.c.l.b16 %v2855
      %v3546 = vunpack.c.l.b16 %v2858
      %v3547 = vpack.c.b16 %v3516, %v3515
      %v3548 = vpack.c.b16 %v3518, %v3517
      %v3549 = vpack.c.b16 %v3520, %v3519
      %v3550 = vpack.c.b16 %v3522, %v3521
      %v3551 = vpack.c.b16 %v3524, %v3523
      %v3552 = vpack.c.b16 %v3526, %v3525
      %v3553 = vpack.c.b16 %v3528, %v3527
      %v3554 = vpack.c.b16 %v3530, %v3529
      %v3555 = vpack.c.b16 %v3532, %v3531
      %v3556 = vpack.c.b16 %v3534, %v3533
      %v3557 = vpack.c.b16 %v3536, %v3535
      %v3558 = vpack.c.b16 %v3538, %v3537
      %v3559 = vpack.c.b16 %v3540, %v3539
      %v3560 = vpack.c.b16 %v3542, %v3541
      %v3561 = vpack.c.b16 %v3544, %v3543
      %v3562 = vpack.c.b16 %v3546, %v3545
      %3563 = vrot.lane.b32.xlu0 %v3547, 32
      %v3564 = vpop.permute.xlu0 %3563
      %3565 = vrot.lane.b32.xlu0 %v3548, 32
      %v3566 = vpop.permute.xlu0 %3565
      %3567 = vrot.lane.b32.xlu0 %v3549, 32
      %v3568 = vpop.permute.xlu0 %3567
      %3569 = vrot.lane.b32.xlu0 %v3550, 32
      %v3570 = vpop.permute.xlu0 %3569
      %3571 = vrot.lane.b32.xlu0 %v3551, 32
      %v3572 = vpop.permute.xlu0 %3571
      %3573 = vrot.lane.b32.xlu0 %v3552, 32
      %v3574 = vpop.permute.xlu0 %3573
      %3575 = vrot.lane.b32.xlu0 %v3553, 32
      %v3576 = vpop.permute.xlu0 %3575
      %3577 = vrot.lane.b32.xlu0 %v3554, 32
      %v3578 = vpop.permute.xlu0 %3577
      %3579 = vrot.lane.b32.xlu0 %v3555, 32
      %v3580 = vpop.permute.xlu0 %3579
      %3581 = vrot.lane.b32.xlu0 %v3556, 32
      %v3582 = vpop.permute.xlu0 %3581
      %3583 = vrot.lane.b32.xlu0 %v3557, 32
      %v3584 = vpop.permute.xlu0 %3583
      %3585 = vrot.lane.b32.xlu0 %v3558, 32
      %v3586 = vpop.permute.xlu0 %3585
      %3587 = vrot.lane.b32.xlu0 %v3559, 32
      %v3588 = vpop.permute.xlu0 %3587
      %3589 = vrot.lane.b32.xlu0 %v3560, 32
      %v3590 = vpop.permute.xlu0 %3589
      %3591 = vrot.lane.b32.xlu0 %v3561, 32
      %v3592 = vpop.permute.xlu0 %3591
      %3593 = vrot.lane.b32.xlu0 %v3562, 32
      %v3594 = vpop.permute.xlu0 %3593
      %vm3595 = vcmask 31744
      %v3598 = vsel %vm3595, %v2907, %v2972
      %v3601 = vsel %vm3595, %v2908, %v2974
      %v3604 = vsel %vm3595, %v2909, %v2976
      %v3607 = vsel %vm3595, %v2910, %v2978
      %v3610 = vsel %vm3595, %v2911, %v2980
      %v3613 = vsel %vm3595, %v2912, %v2982
      %v3616 = vsel %vm3595, %v2913, %v2984
      %v3619 = vsel %vm3595, %v2914, %v2986
      %v3622 = vsel %vm3595, %v2915, %v2988
      %v3625 = vsel %vm3595, %v2916, %v2990
      %v3628 = vsel %vm3595, %v2917, %v2992
      %v3631 = vsel %vm3595, %v2918, %v2994
      %v3634 = vsel %vm3595, %v2919, %v2996
      %v3637 = vsel %vm3595, %v2920, %v2998
      %v3640 = vsel %vm3595, %v2921, %v3000
      %v3643 = vsel %vm3595, %v2922, %v3002
      %vm3644 = vcmask 64512
      %v3646 = vsel %vm3644, %v3598, %v3052
      %v3648 = vsel %vm3644, %v3601, %v3054
      %v3650 = vsel %vm3644, %v3604, %v3056
      %v3652 = vsel %vm3644, %v3607, %v3058
      %v3654 = vsel %vm3644, %v3610, %v3060
      %v3656 = vsel %vm3644, %v3613, %v3062
      %v3658 = vsel %vm3644, %v3616, %v3064
      %v3660 = vsel %vm3644, %v3619, %v3066
      %v3662 = vsel %vm3644, %v3622, %v3068
      %v3664 = vsel %vm3644, %v3625, %v3070
      %v3666 = vsel %vm3644, %v3628, %v3072
      %v3668 = vsel %vm3644, %v3631, %v3074
      %v3670 = vsel %vm3644, %v3634, %v3076
      %v3672 = vsel %vm3644, %v3637, %v3078
      %v3674 = vsel %vm3644, %v3640, %v3080
      %v3676 = vsel %vm3644, %v3643, %v3082
      %vm3677 = vcmask 97280
      %v3679 = vsel %vm3677, %v3646, %v3148
      %v3681 = vsel %vm3677, %v3648, %v3150
      %v3683 = vsel %vm3677, %v3650, %v3152
      %v3685 = vsel %vm3677, %v3652, %v3154
      %v3687 = vsel %vm3677, %v3654, %v3156
      %v3689 = vsel %vm3677, %v3656, %v3158
      %v3691 = vsel %vm3677, %v3658, %v3160
      %v3693 = vsel %vm3677, %v3660, %v3162
      %v3695 = vsel %vm3677, %v3662, %v3164
      %v3697 = vsel %vm3677, %v3664, %v3166
      %v3699 = vsel %vm3677, %v3666, %v3168
      %v3701 = vsel %vm3677, %v3668, %v3170
      %v3703 = vsel %vm3677, %v3670, %v3172
      %v3705 = vsel %vm3677, %v3672, %v3174
      %v3707 = vsel %vm3677, %v3674, %v3176
      %v3709 = vsel %vm3677, %v3676, %v3178
      %vm3710 = vcmask 130048
      %v3712 = vsel %vm3710, %v3679, %v3228
      %v3714 = vsel %vm3710, %v3681, %v3230
      %v3716 = vsel %vm3710, %v3683, %v3232
      %v3718 = vsel %vm3710, %v3685, %v3234
      %v3720 = vsel %vm3710, %v3687, %v3236
      %v3722 = vsel %vm3710, %v3689, %v3238
      %v3724 = vsel %vm3710, %v3691, %v3240
      %v3726 = vsel %vm3710, %v3693, %v3242
      %v3728 = vsel %vm3710, %v3695, %v3244
      %v3730 = vsel %vm3710, %v3697, %v3246
      %v3732 = vsel %vm3710, %v3699, %v3248
      %v3734 = vsel %vm3710, %v3701, %v3250
      %v3736 = vsel %vm3710, %v3703, %v3252
      %v3738 = vsel %vm3710, %v3705, %v3254
      %v3740 = vsel %vm3710, %v3707, %v3256
      %v3742 = vsel %vm3710, %v3709, %v3258
      %vm3743 = vcmask 162816
      %v3745 = vsel %vm3743, %v3712, %v3308
      %v3747 = vsel %vm3743, %v3714, %v3310
      %v3749 = vsel %vm3743, %v3716, %v3312
      %v3751 = vsel %vm3743, %v3718, %v3314
      %v3753 = vsel %vm3743, %v3720, %v3316
      %v3755 = vsel %vm3743, %v3722, %v3318
      %v3757 = vsel %vm3743, %v3724, %v3320
      %v3759 = vsel %vm3743, %v3726, %v3322
      %v3761 = vsel %vm3743, %v3728, %v3324
      %v3763 = vsel %vm3743, %v3730, %v3326
      %v3765 = vsel %vm3743, %v3732, %v3328
      %v3767 = vsel %vm3743, %v3734, %v3330
      %v3769 = vsel %vm3743, %v3736, %v3332
      %v3771 = vsel %vm3743, %v3738, %v3334
      %v3773 = vsel %vm3743, %v3740, %v3336
      %v3775 = vsel %vm3743, %v3742, %v3338
      %vm3776 = vcmask 195584
      %v3778 = vsel %vm3776, %v3745, %v3404
      %v3780 = vsel %vm3776, %v3747, %v3406
      %v3782 = vsel %vm3776, %v3749, %v3408
      %v3784 = vsel %vm3776, %v3751, %v3410
      %v3786 = vsel %vm3776, %v3753, %v3412
      %v3788 = vsel %vm3776, %v3755, %v3414
      %v3790 = vsel %vm3776, %v3757, %v3416
      %v3792 = vsel %vm3776, %v3759, %v3418
      %v3794 = vsel %vm3776, %v3761, %v3420
      %v3796 = vsel %vm3776, %v3763, %v3422
      %v3798 = vsel %vm3776, %v3765, %v3424
      %v3800 = vsel %vm3776, %v3767, %v3426
      %v3802 = vsel %vm3776, %v3769, %v3428
      %v3804 = vsel %vm3776, %v3771, %v3430
      %v3806 = vsel %vm3776, %v3773, %v3432
      %v3808 = vsel %vm3776, %v3775, %v3434
      %vm3809 = vcmask 228352
      %v3811 = vsel %vm3809, %v3778, %v3484
      %v3813 = vsel %vm3809, %v3780, %v3486
      %v3815 = vsel %vm3809, %v3782, %v3488
      %v3817 = vsel %vm3809, %v3784, %v3490
      %v3819 = vsel %vm3809, %v3786, %v3492
      %v3821 = vsel %vm3809, %v3788, %v3494
      %v3823 = vsel %vm3809, %v3790, %v3496
      %v3825 = vsel %vm3809, %v3792, %v3498
      %v3827 = vsel %vm3809, %v3794, %v3500
      %v3829 = vsel %vm3809, %v3796, %v3502
      %v3831 = vsel %vm3809, %v3798, %v3504
      %v3833 = vsel %vm3809, %v3800, %v3506
      %v3835 = vsel %vm3809, %v3802, %v3508
      %v3837 = vsel %vm3809, %v3804, %v3510
      %v3839 = vsel %vm3809, %v3806, %v3512
      %v3841 = vsel %vm3809, %v3808, %v3514
      %vm3842 = vcmask 261120
      %v3844 = vsel %vm3842, %v3811, %v3564
      %v3846 = vsel %vm3842, %v3813, %v3566
      %v3848 = vsel %vm3842, %v3815, %v3568
      %v3850 = vsel %vm3842, %v3817, %v3570
      %v3852 = vsel %vm3842, %v3819, %v3572
      %v3854 = vsel %vm3842, %v3821, %v3574
      %v3856 = vsel %vm3842, %v3823, %v3576
      %v3858 = vsel %vm3842, %v3825, %v3578
      %v3860 = vsel %vm3842, %v3827, %v3580
      %v3862 = vsel %vm3842, %v3829, %v3582
      %v3864 = vsel %vm3842, %v3831, %v3584
      %v3866 = vsel %vm3842, %v3833, %v3586
      %v3868 = vsel %vm3842, %v3835, %v3588
      %v3870 = vsel %vm3842, %v3837, %v3590
      %v3872 = vsel %vm3842, %v3839, %v3592
      %v3874 = vsel %vm3842, %v3841, %v3594
      %v3875 = vld [vmem:[%s1] sm:$0xf]
      %v3876 = vld [vmem:[%s1 + $0x4] sm:$0xf]
      %v3877 = vld [vmem:[%s1 + $0x8] sm:$0xf]
      %v3878 = vld [vmem:[%s1 + $0xc] sm:$0xf]
      %v3879 = vld [vmem:[%s1 + $0x10] sm:$0x3]
      %v3880 = vld [vmem:[%s2] sm:$0x1]
      %v3882 = vlaneseq
      %v3883 = vshrl.u32 %v3882, 7
      %v3884 = vsub.s32 0, %v3883
      %v3885 = vrot.slane %v3880, %v3884
      %v3892 = vunpack.c.l.b16 %v3875
      %v3893 = vunpack.c.l.b16 %v3876
      %v3894 = vunpack.c.l.b16 %v3877
      %v3895 = vunpack.c.l.b16 %v3878
      %v3896 = vunpack.c.l.b16 %v3879
      %v3897 = vpack.c.b16 %v3893, %v3892
      %v3898 = vpack.c.b16 %v3895, %v3894
      %v3899 = vpack.c.b16 %v3896, %v3896
      %vm3902 = vcmask 293888
      %v3903 = vsel %vm3902, %v3844, 0
      %v3905 = vsel %vm3902, %v3846, 0
      %v3907 = vsel %vm3902, %v3848, 0
      %v3909 = vsel %vm3902, %v3850, 0
      %v3911 = vsel %vm3902, %v3852, 0
      %v3913 = vsel %vm3902, %v3854, 0
      %v3915 = vsel %vm3902, %v3856, 0
      %v3917 = vsel %vm3902, %v3858, 0
      %v3919 = vsel %vm3902, %v3860, 0
      %v3921 = vsel %vm3902, %v3862, 0
      %v3923 = vsel %vm3902, %v3864, 0
      %v3925 = vsel %vm3902, %v3866, 0
      %v3927 = vsel %vm3902, %v3868, 0
      %v3929 = vsel %vm3902, %v3870, 0
      %v3931 = vsel %vm3902, %v3872, 0
      %v3933 = vsel %vm3902, %v3874, 0
      %vm3935 = vcmask 1041408
      %v3937 = vsel %vm3935, %v3899, 0
      %3939 = vmatprep.subr.bf16.mxu0 0
      %3940 = vmatpush1.bf16.msra.mxu0 %v3897
      %3941 = vmatprep.subr.bf16.mxu0 0
      %3942 = vmatpush1.bf16.msra.mxu0 %v3898
      %3943 = vmatprep.subr.bf16.mxu0 0
      %3944 = vmatpush1.bf16.msra.mxu0 %v3937
      %3945 = vmatprep.subr.bf16.mxu0 0
      %3946 = vmatpush1.bf16.msra.mxu0 0
      %3947 = vmatprep.subr.bf16.mxu0 0
      %3948 = vmatpush1.bf16.msra.mxu0 0
      %3949 = vmatprep.subr.bf16.mxu0 0
      %3950 = vmatpush1.bf16.msra.mxu0 0
      %3951 = vmatprep.subr.bf16.mxu0 0
      %3952 = vmatpush1.bf16.msra.mxu0 0
      %3953 = vmatprep.subr.bf16.mxu0 0
      %3954 = vmatpush1.bf16.msra.mxu0 0
      %3955 = vmatprep.subr.bf16.mxu0 0
      %3956 = vmatpush1.bf16.msra.mxu0 0
      %3957 = vmatprep.subr.bf16.mxu0 0
      %3958 = vmatpush1.bf16.msra.mxu0 0
      %3959 = vmatprep.subr.bf16.mxu0 0
      %3960 = vmatpush1.bf16.msra.mxu0 0
      %3961 = vmatprep.subr.bf16.mxu0 0
      %3962 = vmatpush1.bf16.msra.mxu0 0
      %3963 = vmatprep.subr.bf16.mxu0 0
      %3964 = vmatpush1.bf16.msra.mxu0 0
      %3965 = vmatprep.subr.bf16.mxu0 0
      %3966 = vmatpush1.bf16.msra.mxu0 0
      %3967 = vmatprep.subr.bf16.mxu0 0
      %3968 = vmatpush1.bf16.msra.mxu0 0
      %3969 = vmatprep.subr.bf16.mxu0 0
      %3970 = vmatpush1.bf16.msra.mxu0 0
      %3971 = vmatprep.mubr.bf16.mxu0 0
      %3972 = vmatmul.mubr.bf16.gmra.mrb[0].mxu0 %v3903
      %v3973 = vpop.f32.mrb[0].mxu0
      %v3974 = vadd.f32 %v3885, %v3973
      %v3975 = vpop.f32.mrb[0].mxu0
      %v3976 = vpop.f32.mrb[0].mxu0
      %v3977 = vadd.f32 %v3885, %v3976
      %v3978 = vpop.f32.mrb[0].mxu0
      %3979 = vmatprep.mubr.bf16.mxu0 0
      %3980 = vmatmul.mubr.bf16.gmra.mrb[0].mxu0 %v3905
      %v3981 = vpop.f32.mrb[0].mxu0
      %v3982 = vadd.f32 %v3885, %v3981
      %v3983 = vpop.f32.mrb[0].mxu0
      %v3984 = vpop.f32.mrb[0].mxu0
      %v3985 = vadd.f32 %v3885, %v3984
      %v3986 = vpop.f32.mrb[0].mxu0
      %3987 = vmatprep.mubr.bf16.mxu0 0
      %3988 = vmatmul.mubr.bf16.gmra.mrb[0].mxu0 %v3907
      %v3989 = vpop.f32.mrb[0].mxu0
      %v3990 = vadd.f32 %v3885, %v3989
      %v3991 = vpop.f32.mrb[0].mxu0
      %v3992 = vpop.f32.mrb[0].mxu0
      %v3993 = vadd.f32 %v3885, %v3992
      %v3994 = vpop.f32.mrb[0].mxu0
      %3995 = vmatprep.mubr.bf16.mxu0 0
      %3996 = vmatmul.mubr.bf16.gmra.mrb[0].mxu0 %v3909
      %v3997 = vpop.f32.mrb[0].mxu0
      %v3998 = vadd.f32 %v3885, %v3997
      %v3999 = vpop.f32.mrb[0].mxu0
      %v4000 = vpop.f32.mrb[0].mxu0
      %v4001 = vadd.f32 %v3885, %v4000
      %v4002 = vpop.f32.mrb[0].mxu0
      %4003 = vmatprep.mubr.bf16.mxu0 0
      %4004 = vmatmul.mubr.bf16.gmra.mrb[0].mxu0 %v3911
      %v4005 = vpop.f32.mrb[0].mxu0
      %v4006 = vadd.f32 %v3885, %v4005
      %v4007 = vpop.f32.mrb[0].mxu0
      %v4008 = vpop.f32.mrb[0].mxu0
      %v4009 = vadd.f32 %v3885, %v4008
      %v4010 = vpop.f32.mrb[0].mxu0
      %4011 = vmatprep.mubr.bf16.mxu0 0
      %4012 = vmatmul.mubr.bf16.gmra.mrb[0].mxu0 %v3913
      %v4013 = vpop.f32.mrb[0].mxu0
      %v4014 = vadd.f32 %v3885, %v4013
      %v4015 = vpop.f32.mrb[0].mxu0
      %v4016 = vpop.f32.mrb[0].mxu0
      %v4017 = vadd.f32 %v3885, %v4016
      %v4018 = vpop.f32.mrb[0].mxu0
      %4019 = vmatprep.mubr.bf16.mxu0 0
      %4020 = vmatmul.mubr.bf16.gmra.mrb[0].mxu0 %v3915
      %v4021 = vpop.f32.mrb[0].mxu0
      %v4022 = vadd.f32 %v3885, %v4021
      %v4023 = vpop.f32.mrb[0].mxu0
      %v4024 = vpop.f32.mrb[0].mxu0
      %v4025 = vadd.f32 %v3885, %v4024
      %v4026 = vpop.f32.mrb[0].mxu0
      %4027 = vmatprep.mubr.bf16.mxu0 0
      %4028 = vmatmul.mubr.bf16.gmra.mrb[0].mxu0 %v3917
      %v4029 = vpop.f32.mrb[0].mxu0
      %v4030 = vadd.f32 %v3885, %v4029
      %v4031 = vpop.f32.mrb[0].mxu0
      %v4032 = vpop.f32.mrb[0].mxu0
      %v4033 = vadd.f32 %v3885, %v4032
      %v4034 = vpop.f32.mrb[0].mxu0
      %4035 = vmatprep.mubr.bf16.mxu0 0
      %4036 = vmatmul.mubr.bf16.gmra.mrb[0].mxu0 %v3919
      %v4037 = vpop.f32.mrb[0].mxu0
      %v4038 = vadd.f32 %v3885, %v4037
      %v4039 = vpop.f32.mrb[0].mxu0
      %v4040 = vpop.f32.mrb[0].mxu0
      %v4041 = vadd.f32 %v3885, %v4040
      %v4042 = vpop.f32.mrb[0].mxu0
      %4043 = vmatprep.mubr.bf16.mxu0 0
      %4044 = vmatmul.mubr.bf16.gmra.mrb[0].mxu0 %v3921
      %v4045 = vpop.f32.mrb[0].mxu0
      %v4046 = vadd.f32 %v3885, %v4045
      %v4047 = vpop.f32.mrb[0].mxu0
      %v4048 = vpop.f32.mrb[0].mxu0
      %v4049 = vadd.f32 %v3885, %v4048
      %v4050 = vpop.f32.mrb[0].mxu0
      %4051 = vmatprep.mubr.bf16.mxu0 0
      %4052 = vmatmul.mubr.bf16.gmra.mrb[0].mxu0 %v3923
      %v4053 = vpop.f32.mrb[0].mxu0
      %v4054 = vadd.f32 %v3885, %v4053
      %v4055 = vpop.f32.mrb[0].mxu0
      %v4056 = vpop.f32.mrb[0].mxu0
      %v4057 = vadd.f32 %v3885, %v4056
      %v4058 = vpop.f32.mrb[0].mxu0
      %4059 = vmatprep.mubr.bf16.mxu0 0
      %4060 = vmatmul.mubr.bf16.gmra.mrb[0].mxu0 %v3925
      %v4061 = vpop.f32.mrb[0].mxu0
      %v4062 = vadd.f32 %v3885, %v4061
      %v4063 = vpop.f32.mrb[0].mxu0
      %v4064 = vpop.f32.mrb[0].mxu0
      %v4065 = vadd.f32 %v3885, %v4064
      %v4066 = vpop.f32.mrb[0].mxu0
      %4067 = vmatprep.mubr.bf16.mxu0 0
      %4068 = vmatmul.mubr.bf16.gmra.mrb[0].mxu0 %v3927
      %v4069 = vpop.f32.mrb[0].mxu0
      %v4070 = vadd.f32 %v3885, %v4069
      %v4071 = vpop.f32.mrb[0].mxu0
      %v4072 = vpop.f32.mrb[0].mxu0
      %v4073 = vadd.f32 %v3885, %v4072
      %v4074 = vpop.f32.mrb[0].mxu0
      %4075 = vmatprep.mubr.bf16.mxu0 0
      %4076 = vmatmul.mubr.bf16.gmra.mrb[0].mxu0 %v3929
      %v4077 = vpop.f32.mrb[0].mxu0
      %v4078 = vadd.f32 %v3885, %v4077
      %v4079 = vpop.f32.mrb[0].mxu0
      %v4080 = vpop.f32.mrb[0].mxu0
      %v4081 = vadd.f32 %v3885, %v4080
      %v4082 = vpop.f32.mrb[0].mxu0
      %4083 = vmatprep.mubr.bf16.mxu0 0
      %4084 = vmatmul.mubr.bf16.gmra.mrb[0].mxu0 %v3931
      %v4085 = vpop.f32.mrb[0].mxu0
      %v4086 = vadd.f32 %v3885, %v4085
      %v4087 = vpop.f32.mrb[0].mxu0
      %v4088 = vpop.f32.mrb[0].mxu0
      %v4089 = vadd.f32 %v3885, %v4088
      %v4090 = vpop.f32.mrb[0].mxu0
      %4091 = vmatprep.mubr.bf16.mxu0 0
      %4092 = vmatmul.mubr.bf16.gmra.mrb[0].mxu0 %v3933
      %v4093 = vpop.f32.mrb[0].mxu0
      %v4094 = vadd.f32 %v3885, %v4093
      %v4095 = vpop.f32.mrb[0].mxu0
      %v4096 = vpop.f32.mrb[0].mxu0
      %v4097 = vadd.f32 %v3885, %v4096
      %v4098 = vpop.f32.mrb[0].mxu0
      %4099 = vdwg.mxu0
      %v4100 = vmax.f32 %v3974, 0.0
      %v4101 = vmax.f32 %v3977, 0.0
      %v4102 = vmax.f32 %v3982, 0.0
      %v4103 = vmax.f32 %v3985, 0.0
      %v4104 = vmax.f32 %v3990, 0.0
      %v4105 = vmax.f32 %v3993, 0.0
      %v4106 = vmax.f32 %v3998, 0.0
      %v4107 = vmax.f32 %v4001, 0.0
      %v4108 = vmax.f32 %v4006, 0.0
      %v4109 = vmax.f32 %v4009, 0.0
      %v4110 = vmax.f32 %v4014, 0.0
      %v4111 = vmax.f32 %v4017, 0.0
      %v4112 = vmax.f32 %v4022, 0.0
      %v4113 = vmax.f32 %v4025, 0.0
      %v4114 = vmax.f32 %v4030, 0.0
      %v4115 = vmax.f32 %v4033, 0.0
      %v4116 = vmax.f32 %v4038, 0.0
      %v4117 = vmax.f32 %v4041, 0.0
      %v4118 = vmax.f32 %v4046, 0.0
      %v4119 = vmax.f32 %v4049, 0.0
      %v4120 = vmax.f32 %v4054, 0.0
      %v4121 = vmax.f32 %v4057, 0.0
      %v4122 = vmax.f32 %v4062, 0.0
      %v4123 = vmax.f32 %v4065, 0.0
      %v4124 = vmax.f32 %v4070, 0.0
      %v4125 = vmax.f32 %v4073, 0.0
      %v4126 = vmax.f32 %v4078, 0.0
      %v4127 = vmax.f32 %v4081, 0.0
      %v4128 = vmax.f32 %v4086, 0.0
      %v4129 = vmax.f32 %v4089, 0.0
      %v4130 = vmax.f32 %v4094, 0.0
      %v4131 = vmax.f32 %v4097, 0.0
      %v4132 = vpack.c.bf16 %v4101, %v4100
      %v4133 = vpack.c.bf16 %v4103, %v4102
      %v4134 = vpack.c.bf16 %v4105, %v4104
      %v4135 = vpack.c.bf16 %v4107, %v4106
      %v4136 = vpack.c.bf16 %v4109, %v4108
      %v4137 = vpack.c.bf16 %v4111, %v4110
      %v4138 = vpack.c.bf16 %v4113, %v4112
      %v4139 = vpack.c.bf16 %v4115, %v4114
      %v4140 = vpack.c.bf16 %v4117, %v4116
      %v4141 = vpack.c.bf16 %v4119, %v4118
      %v4142 = vpack.c.bf16 %v4121, %v4120
      %v4143 = vpack.c.bf16 %v4123, %v4122
      %v4144 = vpack.c.bf16 %v4125, %v4124
      %v4145 = vpack.c.bf16 %v4127, %v4126
      %v4146 = vpack.c.bf16 %v4129, %v4128
      %v4147 = vpack.c.bf16 %v4131, %v4130
      %v4164 = vunpack.c.l.b16 %v4132
      %v4165 = vunpack.c.h.b16 %v4132
      %v4166 = vunpack.c.l.b16 %v4133
      %v4167 = vunpack.c.h.b16 %v4133
      %v4168 = vunpack.c.l.b16 %v4134
      %v4169 = vunpack.c.h.b16 %v4134
      %v4170 = vunpack.c.l.b16 %v4135
      %v4171 = vunpack.c.h.b16 %v4135
      %v4172 = vunpack.c.l.b16 %v4136
      %v4173 = vunpack.c.h.b16 %v4136
      %v4174 = vunpack.c.l.b16 %v4137
      %v4175 = vunpack.c.h.b16 %v4137
      %v4176 = vunpack.c.l.b16 %v4138
      %v4177 = vunpack.c.h.b16 %v4138
      %v4178 = vunpack.c.l.b16 %v4139
      %v4179 = vunpack.c.h.b16 %v4139
      %v4180 = vunpack.c.l.b16 %v4140
      %v4181 = vunpack.c.h.b16 %v4140
      %v4182 = vunpack.c.l.b16 %v4141
      %v4183 = vunpack.c.h.b16 %v4141
      %v4184 = vunpack.c.l.b16 %v4142
      %v4185 = vunpack.c.h.b16 %v4142
      %v4186 = vunpack.c.l.b16 %v4143
      %v4187 = vunpack.c.h.b16 %v4143
      %v4188 = vunpack.c.l.b16 %v4144
      %v4189 = vunpack.c.h.b16 %v4144
      %v4190 = vunpack.c.l.b16 %v4145
      %v4191 = vunpack.c.h.b16 %v4145
      %v4192 = vunpack.c.l.b16 %v4146
      %v4193 = vunpack.c.h.b16 %v4146
      %v4194 = vunpack.c.l.b16 %v4147
      %v4195 = vunpack.c.h.b16 %v4147
      %v4196 = vpack.c.b16 %v4164, %v4164
      %v4197 = vpack.c.b16 %v4165, %v4165
      %v4198 = vpack.c.b16 %v4166, %v4166
      %v4199 = vpack.c.b16 %v4167, %v4167
      %v4200 = vpack.c.b16 %v4168, %v4168
      %v4201 = vpack.c.b16 %v4169, %v4169
      %v4202 = vpack.c.b16 %v4170, %v4170
      %v4203 = vpack.c.b16 %v4171, %v4171
      %v4204 = vpack.c.b16 %v4172, %v4172
      %v4205 = vpack.c.b16 %v4173, %v4173
      %v4206 = vpack.c.b16 %v4174, %v4174
      %v4207 = vpack.c.b16 %v4175, %v4175
      %v4208 = vpack.c.b16 %v4176, %v4176
      %v4209 = vpack.c.b16 %v4177, %v4177
      %v4210 = vpack.c.b16 %v4178, %v4178
      %v4211 = vpack.c.b16 %v4179, %v4179
      %v4212 = vpack.c.b16 %v4180, %v4180
      %v4213 = vpack.c.b16 %v4181, %v4181
      %v4214 = vpack.c.b16 %v4182, %v4182
      %v4215 = vpack.c.b16 %v4183, %v4183
      %v4216 = vpack.c.b16 %v4184, %v4184
      %v4217 = vpack.c.b16 %v4185, %v4185
      %v4218 = vpack.c.b16 %v4186, %v4186
      %v4219 = vpack.c.b16 %v4187, %v4187
      %v4220 = vpack.c.b16 %v4188, %v4188
      %v4221 = vpack.c.b16 %v4189, %v4189
      %v4222 = vpack.c.b16 %v4190, %v4190
      %v4223 = vpack.c.b16 %v4191, %v4191
      %v4224 = vpack.c.b16 %v4192, %v4192
      %v4225 = vpack.c.b16 %v4193, %v4193
      %v4226 = vpack.c.b16 %v4194, %v4194
      %v4227 = vpack.c.b16 %v4195, %v4195
      %v4229 = vshrl.u32 %v4196, 16
      %v4231 = vrot.slane %v4229, 7
      %v4232 = vshll.u32 %v4196, 16
      %v4234 = vor.u32 %v4231, %v4232
      %v4235 = vrot.slane %v4231, 4
      %v4237 = vshrl.u32 %v4197, 16
      %v4239 = vrot.slane %v4237, 7
      %v4240 = vshll.u32 %v4197, 16
      %v4242 = vor.u32 %v4239, %v4240
      %v4243 = vsel %vm592, %v4235, %v4242
      %v4244 = vrot.slane %v4239, 4
      %v4246 = vshrl.u32 %v4198, 16
      %v4248 = vrot.slane %v4246, 7
      %v4249 = vshll.u32 %v4198, 16
      %v4251 = vor.u32 %v4248, %v4249
      %v4252 = vrot.slane %v4248, 4
      %v4254 = vshrl.u32 %v4199, 16
      %v4256 = vrot.slane %v4254, 7
      %v4257 = vshll.u32 %v4199, 16
      %v4259 = vor.u32 %v4256, %v4257
      %v4260 = vsel %vm592, %v4252, %v4259
      %v4261 = vrot.slane %v4256, 4
      %v4263 = vshrl.u32 %v4200, 16
      %v4265 = vrot.slane %v4263, 7
      %v4266 = vshll.u32 %v4200, 16
      %v4268 = vor.u32 %v4265, %v4266
      %v4269 = vrot.slane %v4265, 4
      %v4271 = vshrl.u32 %v4201, 16
      %v4273 = vrot.slane %v4271, 7
      %v4274 = vshll.u32 %v4201, 16
      %v4276 = vor.u32 %v4273, %v4274
      %v4277 = vsel %vm592, %v4269, %v4276
      %v4278 = vrot.slane %v4273, 4
      %v4280 = vshrl.u32 %v4202, 16
      %v4282 = vrot.slane %v4280, 7
      %v4283 = vshll.u32 %v4202, 16
      %v4285 = vor.u32 %v4282, %v4283
      %v4286 = vrot.slane %v4282, 4
      %v4288 = vshrl.u32 %v4203, 16
      %v4290 = vrot.slane %v4288, 7
      %v4291 = vshll.u32 %v4203, 16
      %v4293 = vor.u32 %v4290, %v4291
      %v4294 = vsel %vm592, %v4286, %v4293
      %v4295 = vrot.slane %v4290, 4
      %v4297 = vshrl.u32 %v4204, 16
      %v4299 = vrot.slane %v4297, 7
      %v4300 = vshll.u32 %v4204, 16
      %v4302 = vor.u32 %v4299, %v4300
      %v4303 = vrot.slane %v4299, 4
      %v4305 = vshrl.u32 %v4205, 16
      %v4307 = vrot.slane %v4305, 7
      %v4308 = vshll.u32 %v4205, 16
      %v4310 = vor.u32 %v4307, %v4308
      %v4311 = vsel %vm592, %v4303, %v4310
      %v4312 = vrot.slane %v4307, 4
      %v4314 = vshrl.u32 %v4206, 16
      %v4316 = vrot.slane %v4314, 7
      %v4317 = vshll.u32 %v4206, 16
      %v4319 = vor.u32 %v4316, %v4317
      %v4320 = vrot.slane %v4316, 4
      %v4322 = vshrl.u32 %v4207, 16
      %v4324 = vrot.slane %v4322, 7
      %v4325 = vshll.u32 %v4207, 16
      %v4327 = vor.u32 %v4324, %v4325
      %v4328 = vsel %vm592, %v4320, %v4327
      %v4329 = vrot.slane %v4324, 4
      %v4331 = vshrl.u32 %v4208, 16
      %v4333 = vrot.slane %v4331, 7
      %v4334 = vshll.u32 %v4208, 16
      %v4336 = vor.u32 %v4333, %v4334
      %v4337 = vrot.slane %v4333, 4
      %v4339 = vshrl.u32 %v4209, 16
      %v4341 = vrot.slane %v4339, 7
      %v4342 = vshll.u32 %v4209, 16
      %v4344 = vor.u32 %v4341, %v4342
      %v4345 = vsel %vm592, %v4337, %v4344
      %v4346 = vrot.slane %v4341, 4
      %v4348 = vshrl.u32 %v4210, 16
      %v4350 = vrot.slane %v4348, 7
      %v4351 = vshll.u32 %v4210, 16
      %v4353 = vor.u32 %v4350, %v4351
      %v4354 = vrot.slane %v4350, 4
      %v4356 = vshrl.u32 %v4211, 16
      %v4358 = vrot.slane %v4356, 7
      %v4359 = vshll.u32 %v4211, 16
      %v4361 = vor.u32 %v4358, %v4359
      %v4362 = vsel %vm592, %v4354, %v4361
      %v4363 = vrot.slane %v4358, 4
      %v4365 = vshrl.u32 %v4212, 16
      %v4367 = vrot.slane %v4365, 7
      %v4368 = vshll.u32 %v4212, 16
      %v4370 = vor.u32 %v4367, %v4368
      %v4371 = vrot.slane %v4367, 4
      %v4373 = vshrl.u32 %v4213, 16
      %v4375 = vrot.slane %v4373, 7
      %v4376 = vshll.u32 %v4213, 16
      %v4378 = vor.u32 %v4375, %v4376
      %v4379 = vsel %vm592, %v4371, %v4378
      %v4380 = vrot.slane %v4375, 4
      %v4382 = vshrl.u32 %v4214, 16
      %v4384 = vrot.slane %v4382, 7
      %v4385 = vshll.u32 %v4214, 16
      %v4387 = vor.u32 %v4384, %v4385
      %v4388 = vrot.slane %v4384, 4
      %v4390 = vshrl.u32 %v4215, 16
      %v4392 = vrot.slane %v4390, 7
      %v4393 = vshll.u32 %v4215, 16
      %v4395 = vor.u32 %v4392, %v4393
      %v4396 = vsel %vm592, %v4388, %v4395
      %v4397 = vrot.slane %v4392, 4
      %v4399 = vshrl.u32 %v4216, 16
      %v4401 = vrot.slane %v4399, 7
      %v4402 = vshll.u32 %v4216, 16
      %v4404 = vor.u32 %v4401, %v4402
      %v4405 = vrot.slane %v4401, 4
      %v4407 = vshrl.u32 %v4217, 16
      %v4409 = vrot.slane %v4407, 7
      %v4410 = vshll.u32 %v4217, 16
      %v4412 = vor.u32 %v4409, %v4410
      %v4413 = vsel %vm592, %v4405, %v4412
      %v4414 = vrot.slane %v4409, 4
      %v4416 = vshrl.u32 %v4218, 16
      %v4418 = vrot.slane %v4416, 7
      %v4419 = vshll.u32 %v4218, 16
      %v4421 = vor.u32 %v4418, %v4419
      %v4422 = vrot.slane %v4418, 4
      %v4424 = vshrl.u32 %v4219, 16
      %v4426 = vrot.slane %v4424, 7
      %v4427 = vshll.u32 %v4219, 16
      %v4429 = vor.u32 %v4426, %v4427
      %v4430 = vsel %vm592, %v4422, %v4429
      %v4431 = vrot.slane %v4426, 4
      %v4433 = vshrl.u32 %v4220, 16
      %v4435 = vrot.slane %v4433, 7
      %v4436 = vshll.u32 %v4220, 16
      %v4438 = vor.u32 %v4435, %v4436
      %v4439 = vrot.slane %v4435, 4
      %v4441 = vshrl.u32 %v4221, 16
      %v4443 = vrot.slane %v4441, 7
      %v4444 = vshll.u32 %v4221, 16
      %v4446 = vor.u32 %v4443, %v4444
      %v4447 = vsel %vm592, %v4439, %v4446
      %v4448 = vrot.slane %v4443, 4
      %v4450 = vshrl.u32 %v4222, 16
      %v4452 = vrot.slane %v4450, 7
      %v4453 = vshll.u32 %v4222, 16
      %v4455 = vor.u32 %v4452, %v4453
      %v4456 = vrot.slane %v4452, 4
      %v4458 = vshrl.u32 %v4223, 16
      %v4460 = vrot.slane %v4458, 7
      %v4461 = vshll.u32 %v4223, 16
      %v4463 = vor.u32 %v4460, %v4461
      %v4464 = vsel %vm592, %v4456, %v4463
      %v4465 = vrot.slane %v4460, 4
      %v4467 = vshrl.u32 %v4224, 16
      %v4469 = vrot.slane %v4467, 7
      %v4470 = vshll.u32 %v4224, 16
      %v4472 = vor.u32 %v4469, %v4470
      %v4473 = vrot.slane %v4469, 4
      %v4475 = vshrl.u32 %v4225, 16
      %v4477 = vrot.slane %v4475, 7
      %v4478 = vshll.u32 %v4225, 16
      %v4480 = vor.u32 %v4477, %v4478
      %v4481 = vsel %vm592, %v4473, %v4480
      %v4482 = vrot.slane %v4477, 4
      %v4484 = vshrl.u32 %v4226, 16
      %v4486 = vrot.slane %v4484, 7
      %v4487 = vshll.u32 %v4226, 16
      %v4489 = vor.u32 %v4486, %v4487
      %v4490 = vrot.slane %v4486, 4
      %v4492 = vshrl.u32 %v4227, 16
      %v4494 = vrot.slane %v4492, 7
      %v4495 = vshll.u32 %v4227, 16
      %v4497 = vor.u32 %v4494, %v4495
      %v4498 = vsel %vm592, %v4490, %v4497
      %v4499 = vrot.slane %v4494, 4
      %s4548 = scalar_lea.vmem [#allocation3], 12
      %v4549 = vld [vmem:[%s4548] sm:$0xf]
      %v4550 = vsel %vm915, %v4234, %v4549
      %4551 = vst [vmem:[%s4548] sm:$0xf] %v4550
      %4552 = vst.msk [vmem:[%s4548 + $0x4] sm:$0xf] %vm226, %v4243
      %v4553 = vld [vmem:[%s4548 + $0x8] sm:$0x1]
      %v4554 = vsel %vm237, %v4244, %v4553
      %4555 = vst [vmem:[%s4548 + $0x8] sm:$0x1] %v4554
      %v4556 = vld [vmem:[%s4548 + $0xc] sm:$0xf]
      %v4557 = vsel %vm915, %v4251, %v4556
      %4558 = vst [vmem:[%s4548 + $0xc] sm:$0xf] %v4557
      %4559 = vst.msk [vmem:[%s4548 + $0x10] sm:$0xf] %vm226, %v4260
      %v4560 = vld [vmem:[%s4548 + $0x14] sm:$0x1]
      %v4561 = vsel %vm237, %v4261, %v4560
      %4562 = vst [vmem:[%s4548 + $0x14] sm:$0x1] %v4561
      %v4563 = vld [vmem:[%s4548 + $0x18] sm:$0xf]
      %v4564 = vsel %vm915, %v4268, %v4563
      %4565 = vst [vmem:[%s4548 + $0x18] sm:$0xf] %v4564
      %4566 = vst.msk [vmem:[%s4548 + $0x1c] sm:$0xf] %vm226, %v4277
      %v4567 = vld [vmem:[%s4548 + $0x20] sm:$0x1]
      %v4568 = vsel %vm237, %v4278, %v4567
      %4569 = vst [vmem:[%s4548 + $0x20] sm:$0x1] %v4568
      %v4570 = vld [vmem:[%s4548 + $0x24] sm:$0xf]
      %v4571 = vsel %vm915, %v4285, %v4570
      %4572 = vst [vmem:[%s4548 + $0x24] sm:$0xf] %v4571
      %4573 = vst.msk [vmem:[%s4548 + $0x28] sm:$0xf] %vm226, %v4294
      %v4574 = vld [vmem:[%s4548 + $0x2c] sm:$0x1]
      %v4575 = vsel %vm237, %v4295, %v4574
      %4576 = vst [vmem:[%s4548 + $0x2c] sm:$0x1] %v4575
      %v4577 = vld [vmem:[%s4548 + $0x30] sm:$0xf]
      %v4578 = vsel %vm915, %v4302, %v4577
      %4579 = vst [vmem:[%s4548 + $0x30] sm:$0xf] %v4578
      %4580 = vst.msk [vmem:[%s4548 + $0x34] sm:$0xf] %vm226, %v4311
      %v4581 = vld [vmem:[%s4548 + $0x38] sm:$0x1]
      %v4582 = vsel %vm237, %v4312, %v4581
      %4583 = vst [vmem:[%s4548 + $0x38] sm:$0x1] %v4582
      %v4584 = vld [vmem:[%s4548 + $0x3c] sm:$0xf]
      %v4585 = vsel %vm915, %v4319, %v4584
      %4586 = vst [vmem:[%s4548 + $0x3c] sm:$0xf] %v4585
      %4587 = vst.msk [vmem:[%s4548 + $0x40] sm:$0xf] %vm226, %v4328
      %v4588 = vld [vmem:[%s4548 + $0x44] sm:$0x1]
      %v4589 = vsel %vm237, %v4329, %v4588
      %4590 = vst [vmem:[%s4548 + $0x44] sm:$0x1] %v4589
      %v4591 = vld [vmem:[%s4548 + $0x48] sm:$0xf]
      %v4592 = vsel %vm915, %v4336, %v4591
      %4593 = vst [vmem:[%s4548 + $0x48] sm:$0xf] %v4592
      %4594 = vst.msk [vmem:[%s4548 + $0x4c] sm:$0xf] %vm226, %v4345
      %v4595 = vld [vmem:[%s4548 + $0x50] sm:$0x1]
      %v4596 = vsel %vm237, %v4346, %v4595
      %4597 = vst [vmem:[%s4548 + $0x50] sm:$0x1] %v4596
      %v4598 = vld [vmem:[%s4548 + $0x54] sm:$0xf]
      %v4599 = vsel %vm915, %v4353, %v4598
      %4600 = vst [vmem:[%s4548 + $0x54] sm:$0xf] %v4599
      %4601 = vst.msk [vmem:[%s4548 + $0x58] sm:$0xf] %vm226, %v4362
      %v4602 = vld [vmem:[%s4548 + $0x5c] sm:$0x1]
      %v4603 = vsel %vm237, %v4363, %v4602
      %4604 = vst [vmem:[%s4548 + $0x5c] sm:$0x1] %v4603
      %v4605 = vld [vmem:[%s4548 + $0x60] sm:$0xf]
      %v4606 = vsel %vm915, %v4370, %v4605
      %4607 = vst [vmem:[%s4548 + $0x60] sm:$0xf] %v4606
      %4608 = vst.msk [vmem:[%s4548 + $0x64] sm:$0xf] %vm226, %v4379
      %v4609 = vld [vmem:[%s4548 + $0x68] sm:$0x1]
      %v4610 = vsel %vm237, %v4380, %v4609
      %4611 = vst [vmem:[%s4548 + $0x68] sm:$0x1] %v4610
      %v4612 = vld [vmem:[%s4548 + $0x6c] sm:$0xf]
      %v4613 = vsel %vm915, %v4387, %v4612
      %4614 = vst [vmem:[%s4548 + $0x6c] sm:$0xf] %v4613
      %4615 = vst.msk [vmem:[%s4548 + $0x70] sm:$0xf] %vm226, %v4396
      %v4616 = vld [vmem:[%s4548 + $0x74] sm:$0x1]
      %v4617 = vsel %vm237, %v4397, %v4616
      %4618 = vst [vmem:[%s4548 + $0x74] sm:$0x1] %v4617
      %v4619 = vld [vmem:[%s4548 + $0x78] sm:$0xf]
      %v4620 = vsel %vm915, %v4404, %v4619
      %4621 = vst [vmem:[%s4548 + $0x78] sm:$0xf] %v4620
      %4622 = vst.msk [vmem:[%s4548 + $0x7c] sm:$0xf] %vm226, %v4413
      %v4623 = vld [vmem:[%s4548 + $0x80] sm:$0x1]
      %v4624 = vsel %vm237, %v4414, %v4623
      %4625 = vst [vmem:[%s4548 + $0x80] sm:$0x1] %v4624
      %v4626 = vld [vmem:[%s4548 + $0x84] sm:$0xf]
      %v4627 = vsel %vm915, %v4421, %v4626
      %4628 = vst [vmem:[%s4548 + $0x84] sm:$0xf] %v4627
      %4629 = vst.msk [vmem:[%s4548 + $0x88] sm:$0xf] %vm226, %v4430
      %v4630 = vld [vmem:[%s4548 + $0x8c] sm:$0x1]
      %v4631 = vsel %vm237, %v4431, %v4630
      %4632 = vst [vmem:[%s4548 + $0x8c] sm:$0x1] %v4631
      %v4633 = vld [vmem:[%s4548 + $0x90] sm:$0xf]
      %v4634 = vsel %vm915, %v4438, %v4633
      %4635 = vst [vmem:[%s4548 + $0x90] sm:$0xf] %v4634
      %4636 = vst.msk [vmem:[%s4548 + $0x94] sm:$0xf] %vm226, %v4447
      %v4637 = vld [vmem:[%s4548 + $0x98] sm:$0x1]
      %v4638 = vsel %vm237, %v4448, %v4637
      %4639 = vst [vmem:[%s4548 + $0x98] sm:$0x1] %v4638
      %v4640 = vld [vmem:[%s4548 + $0x9c] sm:$0xf]
      %v4641 = vsel %vm915, %v4455, %v4640
      %4642 = vst [vmem:[%s4548 + $0x9c] sm:$0xf] %v4641
      %4643 = vst.msk [vmem:[%s4548 + $0xa0] sm:$0xf] %vm226, %v4464
      %v4644 = vld [vmem:[%s4548 + $0xa4] sm:$0x1]
      %v4645 = vsel %vm237, %v4465, %v4644
      %4646 = vst [vmem:[%s4548 + $0xa4] sm:$0x1] %v4645
      %v4647 = vld [vmem:[%s4548 + $0xa8] sm:$0xf]
      %v4648 = vsel %vm915, %v4472, %v4647
      %4649 = vst [vmem:[%s4548 + $0xa8] sm:$0xf] %v4648
      %4650 = vst.msk [vmem:[%s4548 + $0xac] sm:$0xf] %vm226, %v4481
      %v4651 = vld [vmem:[%s4548 + $0xb0] sm:$0x1]
      %v4652 = vsel %vm237, %v4482, %v4651
      %4653 = vst [vmem:[%s4548 + $0xb0] sm:$0x1] %v4652
      %v4654 = vld [vmem:[%s4548 + $0xb4] sm:$0xf]
      %v4655 = vsel %vm915, %v4489, %v4654
      %4656 = vst [vmem:[%s4548 + $0xb4] sm:$0xf] %v4655
      %4657 = vst.msk [vmem:[%s4548 + $0xb8] sm:$0xf] %vm226, %v4498
      %v4658 = vld [vmem:[%s4548 + $0xbc] sm:$0x1]
      %v4659 = vsel %vm237, %v4499, %v4658
      %4660 = vst [vmem:[%s4548 + $0xbc] sm:$0x1] %v4659
      %v4661 = vld [vmem:[#allocation3] sm:$0xf]
      %v4662 = vld [vmem:[#allocation3 + $0x4] sm:$0xf]
      %v4663 = vld [vmem:[#allocation3 + $0xc] sm:$0xf]
      %v4664 = vld [vmem:[#allocation3 + $0x10] sm:$0xf]
      %v4665 = vld [vmem:[#allocation3 + $0x18] sm:$0xf]
      %v4666 = vld [vmem:[#allocation3 + $0x1c] sm:$0xf]
      %v4667 = vld [vmem:[#allocation3 + $0x24] sm:$0xf]
      %v4668 = vld [vmem:[#allocation3 + $0x28] sm:$0xf]
      %v4669 = vld [vmem:[#allocation3 + $0x30] sm:$0xf]
      %v4670 = vld [vmem:[#allocation3 + $0x34] sm:$0xf]
      %v4671 = vld [vmem:[#allocation3 + $0x3c] sm:$0xf]
      %v4672 = vld [vmem:[#allocation3 + $0x40] sm:$0xf]
      %v4673 = vld [vmem:[#allocation3 + $0x48] sm:$0xf]
      %v4674 = vld [vmem:[#allocation3 + $0x4c] sm:$0xf]
      %v4675 = vld [vmem:[#allocation3 + $0x54] sm:$0xf]
      %v4676 = vld [vmem:[#allocation3 + $0x58] sm:$0xf]
      %v4677 = vld [vmem:[#allocation3 + $0x60] sm:$0xf]
      %v4678 = vld [vmem:[#allocation3 + $0x64] sm:$0xf]
      %v4679 = vld [vmem:[#allocation3 + $0x6c] sm:$0xf]
      %v4680 = vld [vmem:[#allocation3 + $0x70] sm:$0xf]
      %v4681 = vld [vmem:[#allocation3 + $0x78] sm:$0xf]
      %v4682 = vld [vmem:[#allocation3 + $0x7c] sm:$0xf]
      %v4683 = vld [vmem:[#allocation3 + $0x84] sm:$0xf]
      %v4684 = vld [vmem:[#allocation3 + $0x88] sm:$0xf]
      %v4685 = vld [vmem:[#allocation3 + $0x90] sm:$0xf]
      %v4686 = vld [vmem:[#allocation3 + $0x94] sm:$0xf]
      %v4687 = vld [vmem:[#allocation3 + $0x9c] sm:$0xf]
      %v4688 = vld [vmem:[#allocation3 + $0xa0] sm:$0xf]
      %v4689 = vld [vmem:[#allocation3 + $0xa8] sm:$0xf]
      %v4690 = vld [vmem:[#allocation3 + $0xac] sm:$0xf]
      %v4691 = vld [vmem:[#allocation3 + $0xb4] sm:$0xf]
      %v4692 = vld [vmem:[#allocation3 + $0xb8] sm:$0xf]
      %v4693 = vld [vmem:[#allocation3 + $0x8] sm:$0x1]
      %v4694 = vld [vmem:[#allocation3 + $0x14] sm:$0x1]
      %v4695 = vld [vmem:[#allocation3 + $0x20] sm:$0x1]
      %v4696 = vld [vmem:[#allocation3 + $0x2c] sm:$0x1]
      %v4697 = vld [vmem:[#allocation3 + $0x38] sm:$0x1]
      %v4698 = vld [vmem:[#allocation3 + $0x44] sm:$0x1]
      %v4699 = vld [vmem:[#allocation3 + $0x50] sm:$0x1]
      %v4700 = vld [vmem:[#allocation3 + $0x5c] sm:$0x1]
      %v4701 = vld [vmem:[#allocation3 + $0x68] sm:$0x1]
      %v4702 = vld [vmem:[#allocation3 + $0x74] sm:$0x1]
      %v4703 = vld [vmem:[#allocation3 + $0x80] sm:$0x1]
      %v4704 = vld [vmem:[#allocation3 + $0x8c] sm:$0x1]
      %v4705 = vld [vmem:[#allocation3 + $0x98] sm:$0x1]
      %v4706 = vld [vmem:[#allocation3 + $0xa4] sm:$0x1]
      %v4707 = vld [vmem:[#allocation3 + $0xb0] sm:$0x1]
      %v4708 = vld [vmem:[#allocation3 + $0xbc] sm:$0x1]
      %v4710 = vshrl.u32 %v4661, 16
      %v4712 = vrot.slane %v4710, 4
      %v4713 = vshll.u32 %v4661, 16
      %v4715 = vrot.slane %v4713, 5
      %v4716 = vor.u32 %v4712, %v4715
      %v4717 = vrot.slane %v4716, 4
      %v4719 = vshll.u32 %v4662, 16
      %v4721 = vrot.slane %v4719, 5
      %v4722 = vsel %vm1078, %v4717, %v4721
      %v4723 = vshrl.u32 %v4662, 16
      %v4725 = vrot.slane %v4723, 4
      %v4726 = vor.u32 %v4725, %v4721
      %v4727 = vrot.slane %v4726, 4
      %v4729 = vshll.u32 %v4693, 16
      %v4731 = vrot.slane %v4729, 5
      %v4732 = vsel %vm1078, %v4727, %v4731
      %v4734 = vshrl.u32 %v4663, 16
      %v4736 = vrot.slane %v4734, 4
      %v4737 = vshll.u32 %v4663, 16
      %v4739 = vrot.slane %v4737, 5
      %v4740 = vor.u32 %v4736, %v4739
      %v4741 = vrot.slane %v4740, 4
      %v4743 = vshll.u32 %v4664, 16
      %v4745 = vrot.slane %v4743, 5
      %v4746 = vsel %vm1078, %v4741, %v4745
      %v4747 = vshrl.u32 %v4664, 16
      %v4749 = vrot.slane %v4747, 4
      %v4750 = vor.u32 %v4749, %v4745
      %v4751 = vrot.slane %v4750, 4
      %v4753 = vshll.u32 %v4694, 16
      %v4755 = vrot.slane %v4753, 5
      %v4756 = vsel %vm1078, %v4751, %v4755
      %v4758 = vshrl.u32 %v4665, 16
      %v4760 = vrot.slane %v4758, 4
      %v4761 = vshll.u32 %v4665, 16
      %v4763 = vrot.slane %v4761, 5
      %v4764 = vor.u32 %v4760, %v4763
      %v4765 = vrot.slane %v4764, 4
      %v4767 = vshll.u32 %v4666, 16
      %v4769 = vrot.slane %v4767, 5
      %v4770 = vsel %vm1078, %v4765, %v4769
      %v4771 = vshrl.u32 %v4666, 16
      %v4773 = vrot.slane %v4771, 4
      %v4774 = vor.u32 %v4773, %v4769
      %v4775 = vrot.slane %v4774, 4
      %v4777 = vshll.u32 %v4695, 16
      %v4779 = vrot.slane %v4777, 5
      %v4780 = vsel %vm1078, %v4775, %v4779
      %v4782 = vshrl.u32 %v4667, 16
      %v4784 = vrot.slane %v4782, 4
      %v4785 = vshll.u32 %v4667, 16
      %v4787 = vrot.slane %v4785, 5
      %v4788 = vor.u32 %v4784, %v4787
      %v4789 = vrot.slane %v4788, 4
      %v4791 = vshll.u32 %v4668, 16
      %v4793 = vrot.slane %v4791, 5
      %v4794 = vsel %vm1078, %v4789, %v4793
      %v4795 = vshrl.u32 %v4668, 16
      %v4797 = vrot.slane %v4795, 4
      %v4798 = vor.u32 %v4797, %v4793
      %v4799 = vrot.slane %v4798, 4
      %v4801 = vshll.u32 %v4696, 16
      %v4803 = vrot.slane %v4801, 5
      %v4804 = vsel %vm1078, %v4799, %v4803
      %v4806 = vshrl.u32 %v4669, 16
      %v4808 = vrot.slane %v4806, 4
      %v4809 = vshll.u32 %v4669, 16
      %v4811 = vrot.slane %v4809, 5
      %v4812 = vor.u32 %v4808, %v4811
      %v4813 = vrot.slane %v4812, 4
      %v4815 = vshll.u32 %v4670, 16
      %v4817 = vrot.slane %v4815, 5
      %v4818 = vsel %vm1078, %v4813, %v4817
      %v4819 = vshrl.u32 %v4670, 16
      %v4821 = vrot.slane %v4819, 4
      %v4822 = vor.u32 %v4821, %v4817
      %v4823 = vrot.slane %v4822, 4
      %v4825 = vshll.u32 %v4697, 16
      %v4827 = vrot.slane %v4825, 5
      %v4828 = vsel %vm1078, %v4823, %v4827
      %v4830 = vshrl.u32 %v4671, 16
      %v4832 = vrot.slane %v4830, 4
      %v4833 = vshll.u32 %v4671, 16
      %v4835 = vrot.slane %v4833, 5
      %v4836 = vor.u32 %v4832, %v4835
      %v4837 = vrot.slane %v4836, 4
      %v4839 = vshll.u32 %v4672, 16
      %v4841 = vrot.slane %v4839, 5
      %v4842 = vsel %vm1078, %v4837, %v4841
      %v4843 = vshrl.u32 %v4672, 16
      %v4845 = vrot.slane %v4843, 4
      %v4846 = vor.u32 %v4845, %v4841
      %v4847 = vrot.slane %v4846, 4
      %v4849 = vshll.u32 %v4698, 16
      %v4851 = vrot.slane %v4849, 5
      %v4852 = vsel %vm1078, %v4847, %v4851
      %v4854 = vshrl.u32 %v4673, 16
      %v4856 = vrot.slane %v4854, 4
      %v4857 = vshll.u32 %v4673, 16
      %v4859 = vrot.slane %v4857, 5
      %v4860 = vor.u32 %v4856, %v4859
      %v4861 = vrot.slane %v4860, 4
      %v4863 = vshll.u32 %v4674, 16
      %v4865 = vrot.slane %v4863, 5
      %v4866 = vsel %vm1078, %v4861, %v4865
      %v4867 = vshrl.u32 %v4674, 16
      %v4869 = vrot.slane %v4867, 4
      %v4870 = vor.u32 %v4869, %v4865
      %v4871 = vrot.slane %v4870, 4
      %v4873 = vshll.u32 %v4699, 16
      %v4875 = vrot.slane %v4873, 5
      %v4876 = vsel %vm1078, %v4871, %v4875
      %v4878 = vshrl.u32 %v4675, 16
      %v4880 = vrot.slane %v4878, 4
      %v4881 = vshll.u32 %v4675, 16
      %v4883 = vrot.slane %v4881, 5
      %v4884 = vor.u32 %v4880, %v4883
      %v4885 = vrot.slane %v4884, 4
      %v4887 = vshll.u32 %v4676, 16
      %v4889 = vrot.slane %v4887, 5
      %v4890 = vsel %vm1078, %v4885, %v4889
      %v4891 = vshrl.u32 %v4676, 16
      %v4893 = vrot.slane %v4891, 4
      %v4894 = vor.u32 %v4893, %v4889
      %v4895 = vrot.slane %v4894, 4
      %v4897 = vshll.u32 %v4700, 16
      %v4899 = vrot.slane %v4897, 5
      %v4900 = vsel %vm1078, %v4895, %v4899
      %v4902 = vshrl.u32 %v4677, 16
      %v4904 = vrot.slane %v4902, 4
      %v4905 = vshll.u32 %v4677, 16
      %v4907 = vrot.slane %v4905, 5
      %v4908 = vor.u32 %v4904, %v4907
      %v4909 = vrot.slane %v4908, 4
      %v4911 = vshll.u32 %v4678, 16
      %v4913 = vrot.slane %v4911, 5
      %v4914 = vsel %vm1078, %v4909, %v4913
      %v4915 = vshrl.u32 %v4678, 16
      %v4917 = vrot.slane %v4915, 4
      %v4918 = vor.u32 %v4917, %v4913
      %v4919 = vrot.slane %v4918, 4
      %v4921 = vshll.u32 %v4701, 16
      %v4923 = vrot.slane %v4921, 5
      %v4924 = vsel %vm1078, %v4919, %v4923
      %v4926 = vshrl.u32 %v4679, 16
      %v4928 = vrot.slane %v4926, 4
      %v4929 = vshll.u32 %v4679, 16
      %v4931 = vrot.slane %v4929, 5
      %v4932 = vor.u32 %v4928, %v4931
      %v4933 = vrot.slane %v4932, 4
      %v4935 = vshll.u32 %v4680, 16
      %v4937 = vrot.slane %v4935, 5
      %v4938 = vsel %vm1078, %v4933, %v4937
      %v4939 = vshrl.u32 %v4680, 16
      %v4941 = vrot.slane %v4939, 4
      %v4942 = vor.u32 %v4941, %v4937
      %v4943 = vrot.slane %v4942, 4
      %v4945 = vshll.u32 %v4702, 16
      %v4947 = vrot.slane %v4945, 5
      %v4948 = vsel %vm1078, %v4943, %v4947
      %v4950 = vshrl.u32 %v4681, 16
      %v4952 = vrot.slane %v4950, 4
      %v4953 = vshll.u32 %v4681, 16
      %v4955 = vrot.slane %v4953, 5
      %v4956 = vor.u32 %v4952, %v4955
      %v4957 = vrot.slane %v4956, 4
      %v4959 = vshll.u32 %v4682, 16
      %v4961 = vrot.slane %v4959, 5
      %v4962 = vsel %vm1078, %v4957, %v4961
      %v4963 = vshrl.u32 %v4682, 16
      %v4965 = vrot.slane %v4963, 4
      %v4966 = vor.u32 %v4965, %v4961
      %v4967 = vrot.slane %v4966, 4
      %v4969 = vshll.u32 %v4703, 16
      %v4971 = vrot.slane %v4969, 5
      %v4972 = vsel %vm1078, %v4967, %v4971
      %v4974 = vshrl.u32 %v4683, 16
      %v4976 = vrot.slane %v4974, 4
      %v4977 = vshll.u32 %v4683, 16
      %v4979 = vrot.slane %v4977, 5
      %v4980 = vor.u32 %v4976, %v4979
      %v4981 = vrot.slane %v4980, 4
      %v4983 = vshll.u32 %v4684, 16
      %v4985 = vrot.slane %v4983, 5
      %v4986 = vsel %vm1078, %v4981, %v4985
      %v4987 = vshrl.u32 %v4684, 16
      %v4989 = vrot.slane %v4987, 4
      %v4990 = vor.u32 %v4989, %v4985
      %v4991 = vrot.slane %v4990, 4
      %v4993 = vshll.u32 %v4704, 16
      %v4995 = vrot.slane %v4993, 5
      %v4996 = vsel %vm1078, %v4991, %v4995
      %v4998 = vshrl.u32 %v4685, 16
      %v5000 = vrot.slane %v4998, 4
      %v5001 = vshll.u32 %v4685, 16
      %v5003 = vrot.slane %v5001, 5
      %v5004 = vor.u32 %v5000, %v5003
      %v5005 = vrot.slane %v5004, 4
      %v5007 = vshll.u32 %v4686, 16
      %v5009 = vrot.slane %v5007, 5
      %v5010 = vsel %vm1078, %v5005, %v5009
      %v5011 = vshrl.u32 %v4686, 16
      %v5013 = vrot.slane %v5011, 4
      %v5014 = vor.u32 %v5013, %v5009
      %v5015 = vrot.slane %v5014, 4
      %v5017 = vshll.u32 %v4705, 16
      %v5019 = vrot.slane %v5017, 5
      %v5020 = vsel %vm1078, %v5015, %v5019
      %v5022 = vshrl.u32 %v4687, 16
      %v5024 = vrot.slane %v5022, 4
      %v5025 = vshll.u32 %v4687, 16
      %v5027 = vrot.slane %v5025, 5
      %v5028 = vor.u32 %v5024, %v5027
      %v5029 = vrot.slane %v5028, 4
      %v5031 = vshll.u32 %v4688, 16
      %v5033 = vrot.slane %v5031, 5
      %v5034 = vsel %vm1078, %v5029, %v5033
      %v5035 = vshrl.u32 %v4688, 16
      %v5037 = vrot.slane %v5035, 4
      %v5038 = vor.u32 %v5037, %v5033
      %v5039 = vrot.slane %v5038, 4
      %v5041 = vshll.u32 %v4706, 16
      %v5043 = vrot.slane %v5041, 5
      %v5044 = vsel %vm1078, %v5039, %v5043
      %v5046 = vshrl.u32 %v4689, 16
      %v5048 = vrot.slane %v5046, 4
      %v5049 = vshll.u32 %v4689, 16
      %v5051 = vrot.slane %v5049, 5
      %v5052 = vor.u32 %v5048, %v5051
      %v5053 = vrot.slane %v5052, 4
      %v5055 = vshll.u32 %v4690, 16
      %v5057 = vrot.slane %v5055, 5
      %v5058 = vsel %vm1078, %v5053, %v5057
      %v5059 = vshrl.u32 %v4690, 16
      %v5061 = vrot.slane %v5059, 4
      %v5062 = vor.u32 %v5061, %v5057
      %v5063 = vrot.slane %v5062, 4
      %v5065 = vshll.u32 %v4707, 16
      %v5067 = vrot.slane %v5065, 5
      %v5068 = vsel %vm1078, %v5063, %v5067
      %v5070 = vshrl.u32 %v4691, 16
      %v5072 = vrot.slane %v5070, 4
      %v5073 = vshll.u32 %v4691, 16
      %v5075 = vrot.slane %v5073, 5
      %v5076 = vor.u32 %v5072, %v5075
      %v5077 = vrot.slane %v5076, 4
      %v5079 = vshll.u32 %v4692, 16
      %v5081 = vrot.slane %v5079, 5
      %v5082 = vsel %vm1078, %v5077, %v5081
      %v5083 = vshrl.u32 %v4692, 16
      %v5085 = vrot.slane %v5083, 4
      %v5086 = vor.u32 %v5085, %v5081
      %v5087 = vrot.slane %v5086, 4
      %v5089 = vshll.u32 %v4708, 16
      %v5091 = vrot.slane %v5089, 5
      %v5092 = vsel %vm1078, %v5087, %v5091
      %v5093 = vld [vmem:[#allocation3] sm:$0xe]
      %v5094 = vld [vmem:[#allocation3 + $0xc] sm:$0xe]
      %v5095 = vld [vmem:[#allocation3 + $0x18] sm:$0xe]
      %v5096 = vld [vmem:[#allocation3 + $0x24] sm:$0xe]
      %v5097 = vld [vmem:[#allocation3 + $0x30] sm:$0xe]
      %v5098 = vld [vmem:[#allocation3 + $0x3c] sm:$0xe]
      %v5099 = vld [vmem:[#allocation3 + $0x48] sm:$0xe]
      %v5100 = vld [vmem:[#allocation3 + $0x54] sm:$0xe]
      %v5101 = vld [vmem:[#allocation3 + $0x60] sm:$0xe]
      %v5102 = vld [vmem:[#allocation3 + $0x6c] sm:$0xe]
      %v5103 = vld [vmem:[#allocation3 + $0x78] sm:$0xe]
      %v5104 = vld [vmem:[#allocation3 + $0x84] sm:$0xe]
      %v5105 = vld [vmem:[#allocation3 + $0x90] sm:$0xe]
      %v5106 = vld [vmem:[#allocation3 + $0x9c] sm:$0xe]
      %v5107 = vld [vmem:[#allocation3 + $0xa8] sm:$0xe]
      %v5108 = vld [vmem:[#allocation3 + $0xb4] sm:$0xe]
      %v5157 = vrot.slane %v5093, 5
      %v5158 = vrot.slane %v5157, 4
      %v5159 = vrot.slane %v4662, 5
      %v5160 = vsel %vm1529, %v5158, %v5159
      %v5161 = vrot.slane %v5159, 4
      %v5162 = vrot.slane %v4693, 5
      %v5163 = vsel %vm1529, %v5161, %v5162
      %v5164 = vrot.slane %v5094, 5
      %v5165 = vrot.slane %v5164, 4
      %v5166 = vrot.slane %v4664, 5
      %v5167 = vsel %vm1529, %v5165, %v5166
      %v5168 = vrot.slane %v5166, 4
      %v5169 = vrot.slane %v4694, 5
      %v5170 = vsel %vm1529, %v5168, %v5169
      %v5171 = vrot.slane %v5095, 5
      %v5172 = vrot.slane %v5171, 4
      %v5173 = vrot.slane %v4666, 5
      %v5174 = vsel %vm1529, %v5172, %v5173
      %v5175 = vrot.slane %v5173, 4
      %v5176 = vrot.slane %v4695, 5
      %v5177 = vsel %vm1529, %v5175, %v5176
      %v5178 = vrot.slane %v5096, 5
      %v5179 = vrot.slane %v5178, 4
      %v5180 = vrot.slane %v4668, 5
      %v5181 = vsel %vm1529, %v5179, %v5180
      %v5182 = vrot.slane %v5180, 4
      %v5183 = vrot.slane %v4696, 5
      %v5184 = vsel %vm1529, %v5182, %v5183
      %v5185 = vrot.slane %v5097, 5
      %v5186 = vrot.slane %v5185, 4
      %v5187 = vrot.slane %v4670, 5
      %v5188 = vsel %vm1529, %v5186, %v5187
      %v5189 = vrot.slane %v5187, 4
      %v5190 = vrot.slane %v4697, 5
      %v5191 = vsel %vm1529, %v5189, %v5190
      %v5192 = vrot.slane %v5098, 5
      %v5193 = vrot.slane %v5192, 4
      %v5194 = vrot.slane %v4672, 5
      %v5195 = vsel %vm1529, %v5193, %v5194
      %v5196 = vrot.slane %v5194, 4
      %v5197 = vrot.slane %v4698, 5
      %v5198 = vsel %vm1529, %v5196, %v5197
      %v5199 = vrot.slane %v5099, 5
      %v5200 = vrot.slane %v5199, 4
      %v5201 = vrot.slane %v4674, 5
      %v5202 = vsel %vm1529, %v5200, %v5201
      %v5203 = vrot.slane %v5201, 4
      %v5204 = vrot.slane %v4699, 5
      %v5205 = vsel %vm1529, %v5203, %v5204
      %v5206 = vrot.slane %v5100, 5
      %v5207 = vrot.slane %v5206, 4
      %v5208 = vrot.slane %v4676, 5
      %v5209 = vsel %vm1529, %v5207, %v5208
      %v5210 = vrot.slane %v5208, 4
      %v5211 = vrot.slane %v4700, 5
      %v5212 = vsel %vm1529, %v5210, %v5211
      %v5213 = vrot.slane %v5101, 5
      %v5214 = vrot.slane %v5213, 4
      %v5215 = vrot.slane %v4678, 5
      %v5216 = vsel %vm1529, %v5214, %v5215
      %v5217 = vrot.slane %v5215, 4
      %v5218 = vrot.slane %v4701, 5
      %v5219 = vsel %vm1529, %v5217, %v5218
      %v5220 = vrot.slane %v5102, 5
      %v5221 = vrot.slane %v5220, 4
      %v5222 = vrot.slane %v4680, 5
      %v5223 = vsel %vm1529, %v5221, %v5222
      %v5224 = vrot.slane %v5222, 4
      %v5225 = vrot.slane %v4702, 5
      %v5226 = vsel %vm1529, %v5224, %v5225
      %v5227 = vrot.slane %v5103, 5
      %v5228 = vrot.slane %v5227, 4
      %v5229 = vrot.slane %v4682, 5
      %v5230 = vsel %vm1529, %v5228, %v5229
      %v5231 = vrot.slane %v5229, 4
      %v5232 = vrot.slane %v4703, 5
      %v5233 = vsel %vm1529, %v5231, %v5232
      %v5234 = vrot.slane %v5104, 5
      %v5235 = vrot.slane %v5234, 4
      %v5236 = vrot.slane %v4684, 5
      %v5237 = vsel %vm1529, %v5235, %v5236
      %v5238 = vrot.slane %v5236, 4
      %v5239 = vrot.slane %v4704, 5
      %v5240 = vsel %vm1529, %v5238, %v5239
      %v5241 = vrot.slane %v5105, 5
      %v5242 = vrot.slane %v5241, 4
      %v5243 = vrot.slane %v4686, 5
      %v5244 = vsel %vm1529, %v5242, %v5243
      %v5245 = vrot.slane %v5243, 4
      %v5246 = vrot.slane %v4705, 5
      %v5247 = vsel %vm1529, %v5245, %v5246
      %v5248 = vrot.slane %v5106, 5
      %v5249 = vrot.slane %v5248, 4
      %v5250 = vrot.slane %v4688, 5
      %v5251 = vsel %vm1529, %v5249, %v5250
      %v5252 = vrot.slane %v5250, 4
      %v5253 = vrot.slane %v4706, 5
      %v5254 = vsel %vm1529, %v5252, %v5253
      %v5255 = vrot.slane %v5107, 5
      %v5256 = vrot.slane %v5255, 4
      %v5257 = vrot.slane %v4690, 5
      %v5258 = vsel %vm1529, %v5256, %v5257
      %v5259 = vrot.slane %v5257, 4
      %v5260 = vrot.slane %v4707, 5
      %v5261 = vsel %vm1529, %v5259, %v5260
      %v5262 = vrot.slane %v5108, 5
      %v5263 = vrot.slane %v5262, 4
      %v5264 = vrot.slane %v4692, 5
      %v5265 = vsel %vm1529, %v5263, %v5264
      %v5266 = vrot.slane %v5264, 4
      %v5267 = vrot.slane %v4708, 5
      %v5268 = vsel %vm1529, %v5266, %v5267
      %v5269 = vld [vmem:[%s4548] sm:$0xf]
      %v5270 = vld [vmem:[%s4548 + $0x4] sm:$0xf]
      %v5271 = vld [vmem:[%s4548 + $0xc] sm:$0xf]
      %v5272 = vld [vmem:[%s4548 + $0x10] sm:$0xf]
      %v5273 = vld [vmem:[%s4548 + $0x18] sm:$0xf]
      %v5274 = vld [vmem:[%s4548 + $0x1c] sm:$0xf]
      %v5275 = vld [vmem:[%s4548 + $0x24] sm:$0xf]
      %v5276 = vld [vmem:[%s4548 + $0x28] sm:$0xf]
      %v5277 = vld [vmem:[%s4548 + $0x30] sm:$0xf]
      %v5278 = vld [vmem:[%s4548 + $0x34] sm:$0xf]
      %v5279 = vld [vmem:[%s4548 + $0x3c] sm:$0xf]
      %v5280 = vld [vmem:[%s4548 + $0x40] sm:$0xf]
      %v5281 = vld [vmem:[%s4548 + $0x48] sm:$0xf]
      %v5282 = vld [vmem:[%s4548 + $0x4c] sm:$0xf]
      %v5283 = vld [vmem:[%s4548 + $0x54] sm:$0xf]
      %v5284 = vld [vmem:[%s4548 + $0x58] sm:$0xf]
      %v5285 = vld [vmem:[%s4548 + $0x60] sm:$0xf]
      %v5286 = vld [vmem:[%s4548 + $0x64] sm:$0xf]
      %v5287 = vld [vmem:[%s4548 + $0x6c] sm:$0xf]
      %v5288 = vld [vmem:[%s4548 + $0x70] sm:$0xf]
      %v5289 = vld [vmem:[%s4548 + $0x78] sm:$0xf]
      %v5290 = vld [vmem:[%s4548 + $0x7c] sm:$0xf]
      %v5291 = vld [vmem:[%s4548 + $0x84] sm:$0xf]
      %v5292 = vld [vmem:[%s4548 + $0x88] sm:$0xf]
      %v5293 = vld [vmem:[%s4548 + $0x90] sm:$0xf]
      %v5294 = vld [vmem:[%s4548 + $0x94] sm:$0xf]
      %v5295 = vld [vmem:[%s4548 + $0x9c] sm:$0xf]
      %v5296 = vld [vmem:[%s4548 + $0xa0] sm:$0xf]
      %v5297 = vld [vmem:[%s4548 + $0xa8] sm:$0xf]
      %v5298 = vld [vmem:[%s4548 + $0xac] sm:$0xf]
      %v5299 = vld [vmem:[%s4548 + $0xb4] sm:$0xf]
      %v5300 = vld [vmem:[%s4548 + $0xb8] sm:$0xf]
      %v5301 = vld [vmem:[%s4548 + $0x8] sm:$0x1]
      %v5302 = vld [vmem:[%s4548 + $0x14] sm:$0x1]
      %v5303 = vld [vmem:[%s4548 + $0x20] sm:$0x1]
      %v5304 = vld [vmem:[%s4548 + $0x2c] sm:$0x1]
      %v5305 = vld [vmem:[%s4548 + $0x38] sm:$0x1]
      %v5306 = vld [vmem:[%s4548 + $0x44] sm:$0x1]
      %v5307 = vld [vmem:[%s4548 + $0x50] sm:$0x1]
      %v5308 = vld [vmem:[%s4548 + $0x5c] sm:$0x1]
      %v5309 = vld [vmem:[%s4548 + $0x68] sm:$0x1]
      %v5310 = vld [vmem:[%s4548 + $0x74] sm:$0x1]
      %v5311 = vld [vmem:[%s4548 + $0x80] sm:$0x1]
      %v5312 = vld [vmem:[%s4548 + $0x8c] sm:$0x1]
      %v5313 = vld [vmem:[%s4548 + $0x98] sm:$0x1]
      %v5314 = vld [vmem:[%s4548 + $0xa4] sm:$0x1]
      %v5315 = vld [vmem:[%s4548 + $0xb0] sm:$0x1]
      %v5316 = vld [vmem:[%s4548 + $0xbc] sm:$0x1]
      %v5318 = vshrl.u32 %v5269, 16
      %v5320 = vrot.slane %v5318, 4
      %v5321 = vshll.u32 %v5269, 16
      %v5323 = vrot.slane %v5321, 5
      %v5324 = vor.u32 %v5320, %v5323
      %v5325 = vrot.slane %v5324, 4
      %v5327 = vshll.u32 %v5270, 16
      %v5329 = vrot.slane %v5327, 5
      %v5330 = vsel %vm1078, %v5325, %v5329
      %v5331 = vshrl.u32 %v5270, 16
      %v5333 = vrot.slane %v5331, 4
      %v5334 = vor.u32 %v5333, %v5329
      %v5335 = vrot.slane %v5334, 4
      %v5337 = vshll.u32 %v5301, 16
      %v5339 = vrot.slane %v5337, 5
      %v5340 = vsel %vm1078, %v5335, %v5339
      %v5342 = vshrl.u32 %v5271, 16
      %v5344 = vrot.slane %v5342, 4
      %v5345 = vshll.u32 %v5271, 16
      %v5347 = vrot.slane %v5345, 5
      %v5348 = vor.u32 %v5344, %v5347
      %v5349 = vrot.slane %v5348, 4
      %v5351 = vshll.u32 %v5272, 16
      %v5353 = vrot.slane %v5351, 5
      %v5354 = vsel %vm1078, %v5349, %v5353
      %v5355 = vshrl.u32 %v5272, 16
      %v5357 = vrot.slane %v5355, 4
      %v5358 = vor.u32 %v5357, %v5353
      %v5359 = vrot.slane %v5358, 4
      %v5361 = vshll.u32 %v5302, 16
      %v5363 = vrot.slane %v5361, 5
      %v5364 = vsel %vm1078, %v5359, %v5363
      %v5366 = vshrl.u32 %v5273, 16
      %v5368 = vrot.slane %v5366, 4
      %v5369 = vshll.u32 %v5273, 16
      %v5371 = vrot.slane %v5369, 5
      %v5372 = vor.u32 %v5368, %v5371
      %v5373 = vrot.slane %v5372, 4
      %v5375 = vshll.u32 %v5274, 16
      %v5377 = vrot.slane %v5375, 5
      %v5378 = vsel %vm1078, %v5373, %v5377
      %v5379 = vshrl.u32 %v5274, 16
      %v5381 = vrot.slane %v5379, 4
      %v5382 = vor.u32 %v5381, %v5377
      %v5383 = vrot.slane %v5382, 4
      %v5385 = vshll.u32 %v5303, 16
      %v5387 = vrot.slane %v5385, 5
      %v5388 = vsel %vm1078, %v5383, %v5387
      %v5390 = vshrl.u32 %v5275, 16
      %v5392 = vrot.slane %v5390, 4
      %v5393 = vshll.u32 %v5275, 16
      %v5395 = vrot.slane %v5393, 5
      %v5396 = vor.u32 %v5392, %v5395
      %v5397 = vrot.slane %v5396, 4
      %v5399 = vshll.u32 %v5276, 16
      %v5401 = vrot.slane %v5399, 5
      %v5402 = vsel %vm1078, %v5397, %v5401
      %v5403 = vshrl.u32 %v5276, 16
      %v5405 = vrot.slane %v5403, 4
      %v5406 = vor.u32 %v5405, %v5401
      %v5407 = vrot.slane %v5406, 4
      %v5409 = vshll.u32 %v5304, 16
      %v5411 = vrot.slane %v5409, 5
      %v5412 = vsel %vm1078, %v5407, %v5411
      %v5414 = vshrl.u32 %v5277, 16
      %v5416 = vrot.slane %v5414, 4
      %v5417 = vshll.u32 %v5277, 16
      %v5419 = vrot.slane %v5417, 5
      %v5420 = vor.u32 %v5416, %v5419
      %v5421 = vrot.slane %v5420, 4
      %v5423 = vshll.u32 %v5278, 16
      %v5425 = vrot.slane %v5423, 5
      %v5426 = vsel %vm1078, %v5421, %v5425
      %v5427 = vshrl.u32 %v5278, 16
      %v5429 = vrot.slane %v5427, 4
      %v5430 = vor.u32 %v5429, %v5425
      %v5431 = vrot.slane %v5430, 4
      %v5433 = vshll.u32 %v5305, 16
      %v5435 = vrot.slane %v5433, 5
      %v5436 = vsel %vm1078, %v5431, %v5435
      %v5438 = vshrl.u32 %v5279, 16
      %v5440 = vrot.slane %v5438, 4
      %v5441 = vshll.u32 %v5279, 16
      %v5443 = vrot.slane %v5441, 5
      %v5444 = vor.u32 %v5440, %v5443
      %v5445 = vrot.slane %v5444, 4
      %v5447 = vshll.u32 %v5280, 16
      %v5449 = vrot.slane %v5447, 5
      %v5450 = vsel %vm1078, %v5445, %v5449
      %v5451 = vshrl.u32 %v5280, 16
      %v5453 = vrot.slane %v5451, 4
      %v5454 = vor.u32 %v5453, %v5449
      %v5455 = vrot.slane %v5454, 4
      %v5457 = vshll.u32 %v5306, 16
      %v5459 = vrot.slane %v5457, 5
      %v5460 = vsel %vm1078, %v5455, %v5459
      %v5462 = vshrl.u32 %v5281, 16
      %v5464 = vrot.slane %v5462, 4
      %v5465 = vshll.u32 %v5281, 16
      %v5467 = vrot.slane %v5465, 5
      %v5468 = vor.u32 %v5464, %v5467
      %v5469 = vrot.slane %v5468, 4
      %v5471 = vshll.u32 %v5282, 16
      %v5473 = vrot.slane %v5471, 5
      %v5474 = vsel %vm1078, %v5469, %v5473
      %v5475 = vshrl.u32 %v5282, 16
      %v5477 = vrot.slane %v5475, 4
      %v5478 = vor.u32 %v5477, %v5473
      %v5479 = vrot.slane %v5478, 4
      %v5481 = vshll.u32 %v5307, 16
      %v5483 = vrot.slane %v5481, 5
      %v5484 = vsel %vm1078, %v5479, %v5483
      %v5486 = vshrl.u32 %v5283, 16
      %v5488 = vrot.slane %v5486, 4
      %v5489 = vshll.u32 %v5283, 16
      %v5491 = vrot.slane %v5489, 5
      %v5492 = vor.u32 %v5488, %v5491
      %v5493 = vrot.slane %v5492, 4
      %v5495 = vshll.u32 %v5284, 16
      %v5497 = vrot.slane %v5495, 5
      %v5498 = vsel %vm1078, %v5493, %v5497
      %v5499 = vshrl.u32 %v5284, 16
      %v5501 = vrot.slane %v5499, 4
      %v5502 = vor.u32 %v5501, %v5497
      %v5503 = vrot.slane %v5502, 4
      %v5505 = vshll.u32 %v5308, 16
      %v5507 = vrot.slane %v5505, 5
      %v5508 = vsel %vm1078, %v5503, %v5507
      %v5510 = vshrl.u32 %v5285, 16
      %v5512 = vrot.slane %v5510, 4
      %v5513 = vshll.u32 %v5285, 16
      %v5515 = vrot.slane %v5513, 5
      %v5516 = vor.u32 %v5512, %v5515
      %v5517 = vrot.slane %v5516, 4
      %v5519 = vshll.u32 %v5286, 16
      %v5521 = vrot.slane %v5519, 5
      %v5522 = vsel %vm1078, %v5517, %v5521
      %v5523 = vshrl.u32 %v5286, 16
      %v5525 = vrot.slane %v5523, 4
      %v5526 = vor.u32 %v5525, %v5521
      %v5527 = vrot.slane %v5526, 4
      %v5529 = vshll.u32 %v5309, 16
      %v5531 = vrot.slane %v5529, 5
      %v5532 = vsel %vm1078, %v5527, %v5531
      %v5534 = vshrl.u32 %v5287, 16
      %v5536 = vrot.slane %v5534, 4
      %v5537 = vshll.u32 %v5287, 16
      %v5539 = vrot.slane %v5537, 5
      %v5540 = vor.u32 %v5536, %v5539
      %v5541 = vrot.slane %v5540, 4
      %v5543 = vshll.u32 %v5288, 16
      %v5545 = vrot.slane %v5543, 5
      %v5546 = vsel %vm1078, %v5541, %v5545
      %v5547 = vshrl.u32 %v5288, 16
      %v5549 = vrot.slane %v5547, 4
      %v5550 = vor.u32 %v5549, %v5545
      %v5551 = vrot.slane %v5550, 4
      %v5553 = vshll.u32 %v5310, 16
      %v5555 = vrot.slane %v5553, 5
      %v5556 = vsel %vm1078, %v5551, %v5555
      %v5558 = vshrl.u32 %v5289, 16
      %v5560 = vrot.slane %v5558, 4
      %v5561 = vshll.u32 %v5289, 16
      %v5563 = vrot.slane %v5561, 5
      %v5564 = vor.u32 %v5560, %v5563
      %v5565 = vrot.slane %v5564, 4
      %v5567 = vshll.u32 %v5290, 16
      %v5569 = vrot.slane %v5567, 5
      %v5570 = vsel %vm1078, %v5565, %v5569
      %v5571 = vshrl.u32 %v5290, 16
      %v5573 = vrot.slane %v5571, 4
      %v5574 = vor.u32 %v5573, %v5569
      %v5575 = vrot.slane %v5574, 4
      %v5577 = vshll.u32 %v5311, 16
      %v5579 = vrot.slane %v5577, 5
      %v5580 = vsel %vm1078, %v5575, %v5579
      %v5582 = vshrl.u32 %v5291, 16
      %v5584 = vrot.slane %v5582, 4
      %v5585 = vshll.u32 %v5291, 16
      %v5587 = vrot.slane %v5585, 5
      %v5588 = vor.u32 %v5584, %v5587
      %v5589 = vrot.slane %v5588, 4
      %v5591 = vshll.u32 %v5292, 16
      %v5593 = vrot.slane %v5591, 5
      %v5594 = vsel %vm1078, %v5589, %v5593
      %v5595 = vshrl.u32 %v5292, 16
      %v5597 = vrot.slane %v5595, 4
      %v5598 = vor.u32 %v5597, %v5593
      %v5599 = vrot.slane %v5598, 4
      %v5601 = vshll.u32 %v5312, 16
      %v5603 = vrot.slane %v5601, 5
      %v5604 = vsel %vm1078, %v5599, %v5603
      %v5606 = vshrl.u32 %v5293, 16
      %v5608 = vrot.slane %v5606, 4
      %v5609 = vshll.u32 %v5293, 16
      %v5611 = vrot.slane %v5609, 5
      %v5612 = vor.u32 %v5608, %v5611
      %v5613 = vrot.slane %v5612, 4
      %v5615 = vshll.u32 %v5294, 16
      %v5617 = vrot.slane %v5615, 5
      %v5618 = vsel %vm1078, %v5613, %v5617
      %v5619 = vshrl.u32 %v5294, 16
      %v5621 = vrot.slane %v5619, 4
      %v5622 = vor.u32 %v5621, %v5617
      %v5623 = vrot.slane %v5622, 4
      %v5625 = vshll.u32 %v5313, 16
      %v5627 = vrot.slane %v5625, 5
      %v5628 = vsel %vm1078, %v5623, %v5627
      %v5630 = vshrl.u32 %v5295, 16
      %v5632 = vrot.slane %v5630, 4
      %v5633 = vshll.u32 %v5295, 16
      %v5635 = vrot.slane %v5633, 5
      %v5636 = vor.u32 %v5632, %v5635
      %v5637 = vrot.slane %v5636, 4
      %v5639 = vshll.u32 %v5296, 16
      %v5641 = vrot.slane %v5639, 5
      %v5642 = vsel %vm1078, %v5637, %v5641
      %v5643 = vshrl.u32 %v5296, 16
      %v5645 = vrot.slane %v5643, 4
      %v5646 = vor.u32 %v5645, %v5641
      %v5647 = vrot.slane %v5646, 4
      %v5649 = vshll.u32 %v5314, 16
      %v5651 = vrot.slane %v5649, 5
      %v5652 = vsel %vm1078, %v5647, %v5651
      %v5654 = vshrl.u32 %v5297, 16
      %v5656 = vrot.slane %v5654, 4
      %v5657 = vshll.u32 %v5297, 16
      %v5659 = vrot.slane %v5657, 5
      %v5660 = vor.u32 %v5656, %v5659
      %v5661 = vrot.slane %v5660, 4
      %v5663 = vshll.u32 %v5298, 16
      %v5665 = vrot.slane %v5663, 5
      %v5666 = vsel %vm1078, %v5661, %v5665
      %v5667 = vshrl.u32 %v5298, 16
      %v5669 = vrot.slane %v5667, 4
      %v5670 = vor.u32 %v5669, %v5665
      %v5671 = vrot.slane %v5670, 4
      %v5673 = vshll.u32 %v5315, 16
      %v5675 = vrot.slane %v5673, 5
      %v5676 = vsel %vm1078, %v5671, %v5675
      %v5678 = vshrl.u32 %v5299, 16
      %v5680 = vrot.slane %v5678, 4
      %v5681 = vshll.u32 %v5299, 16
      %v5683 = vrot.slane %v5681, 5
      %v5684 = vor.u32 %v5680, %v5683
      %v5685 = vrot.slane %v5684, 4
      %v5687 = vshll.u32 %v5300, 16
      %v5689 = vrot.slane %v5687, 5
      %v5690 = vsel %vm1078, %v5685, %v5689
      %v5691 = vshrl.u32 %v5300, 16
      %v5693 = vrot.slane %v5691, 4
      %v5694 = vor.u32 %v5693, %v5689
      %v5695 = vrot.slane %v5694, 4
      %v5697 = vshll.u32 %v5316, 16
      %v5699 = vrot.slane %v5697, 5
      %v5700 = vsel %vm1078, %v5695, %v5699
      %v5701 = vld [vmem:[%s4548] sm:$0xe]
      %v5702 = vld [vmem:[%s4548 + $0xc] sm:$0xe]
      %v5703 = vld [vmem:[%s4548 + $0x18] sm:$0xe]
      %v5704 = vld [vmem:[%s4548 + $0x24] sm:$0xe]
      %v5705 = vld [vmem:[%s4548 + $0x30] sm:$0xe]
      %v5706 = vld [vmem:[%s4548 + $0x3c] sm:$0xe]
      %v5707 = vld [vmem:[%s4548 + $0x48] sm:$0xe]
      %v5708 = vld [vmem:[%s4548 + $0x54] sm:$0xe]
      %v5709 = vld [vmem:[%s4548 + $0x60] sm:$0xe]
      %v5710 = vld [vmem:[%s4548 + $0x6c] sm:$0xe]
      %v5711 = vld [vmem:[%s4548 + $0x78] sm:$0xe]
      %v5712 = vld [vmem:[%s4548 + $0x84] sm:$0xe]
      %v5713 = vld [vmem:[%s4548 + $0x90] sm:$0xe]
      %v5714 = vld [vmem:[%s4548 + $0x9c] sm:$0xe]
      %v5715 = vld [vmem:[%s4548 + $0xa8] sm:$0xe]
      %v5716 = vld [vmem:[%s4548 + $0xb4] sm:$0xe]
      %v5765 = vrot.slane %v5701, 5
      %v5766 = vrot.slane %v5765, 4
      %v5767 = vrot.slane %v5270, 5
      %v5768 = vsel %vm1529, %v5766, %v5767
      %v5769 = vrot.slane %v5767, 4
      %v5770 = vrot.slane %v5301, 5
      %v5771 = vsel %vm1529, %v5769, %v5770
      %v5772 = vrot.slane %v5702, 5
      %v5773 = vrot.slane %v5772, 4
      %v5774 = vrot.slane %v5272, 5
      %v5775 = vsel %vm1529, %v5773, %v5774
      %v5776 = vrot.slane %v5774, 4
      %v5777 = vrot.slane %v5302, 5
      %v5778 = vsel %vm1529, %v5776, %v5777
      %v5779 = vrot.slane %v5703, 5
      %v5780 = vrot.slane %v5779, 4
      %v5781 = vrot.slane %v5274, 5
      %v5782 = vsel %vm1529, %v5780, %v5781
      %v5783 = vrot.slane %v5781, 4
      %v5784 = vrot.slane %v5303, 5
      %v5785 = vsel %vm1529, %v5783, %v5784
      %v5786 = vrot.slane %v5704, 5
      %v5787 = vrot.slane %v5786, 4
      %v5788 = vrot.slane %v5276, 5
      %v5789 = vsel %vm1529, %v5787, %v5788
      %v5790 = vrot.slane %v5788, 4
      %v5791 = vrot.slane %v5304, 5
      %v5792 = vsel %vm1529, %v5790, %v5791
      %v5793 = vrot.slane %v5705, 5
      %v5794 = vrot.slane %v5793, 4
      %v5795 = vrot.slane %v5278, 5
      %v5796 = vsel %vm1529, %v5794, %v5795
      %v5797 = vrot.slane %v5795, 4
      %v5798 = vrot.slane %v5305, 5
      %v5799 = vsel %vm1529, %v5797, %v5798
      %v5800 = vrot.slane %v5706, 5
      %v5801 = vrot.slane %v5800, 4
      %v5802 = vrot.slane %v5280, 5
      %v5803 = vsel %vm1529, %v5801, %v5802
      %v5804 = vrot.slane %v5802, 4
      %v5805 = vrot.slane %v5306, 5
      %v5806 = vsel %vm1529, %v5804, %v5805
      %v5807 = vrot.slane %v5707, 5
      %v5808 = vrot.slane %v5807, 4
      %v5809 = vrot.slane %v5282, 5
      %v5810 = vsel %vm1529, %v5808, %v5809
      %v5811 = vrot.slane %v5809, 4
      %v5812 = vrot.slane %v5307, 5
      %v5813 = vsel %vm1529, %v5811, %v5812
      %v5814 = vrot.slane %v5708, 5
      %v5815 = vrot.slane %v5814, 4
      %v5816 = vrot.slane %v5284, 5
      %v5817 = vsel %vm1529, %v5815, %v5816
      %v5818 = vrot.slane %v5816, 4
      %v5819 = vrot.slane %v5308, 5
      %v5820 = vsel %vm1529, %v5818, %v5819
      %v5821 = vrot.slane %v5709, 5
      %v5822 = vrot.slane %v5821, 4
      %v5823 = vrot.slane %v5286, 5
      %v5824 = vsel %vm1529, %v5822, %v5823
      %v5825 = vrot.slane %v5823, 4
      %v5826 = vrot.slane %v5309, 5
      %v5827 = vsel %vm1529, %v5825, %v5826
      %v5828 = vrot.slane %v5710, 5
      %v5829 = vrot.slane %v5828, 4
      %v5830 = vrot.slane %v5288, 5
      %v5831 = vsel %vm1529, %v5829, %v5830
      %v5832 = vrot.slane %v5830, 4
      %v5833 = vrot.slane %v5310, 5
      %v5834 = vsel %vm1529, %v5832, %v5833
      %v5835 = vrot.slane %v5711, 5
      %v5836 = vrot.slane %v5835, 4
      %v5837 = vrot.slane %v5290, 5
      %v5838 = vsel %vm1529, %v5836, %v5837
      %v5839 = vrot.slane %v5837, 4
      %v5840 = vrot.slane %v5311, 5
      %v5841 = vsel %vm1529, %v5839, %v5840
      %v5842 = vrot.slane %v5712, 5
      %v5843 = vrot.slane %v5842, 4
      %v5844 = vrot.slane %v5292, 5
      %v5845 = vsel %vm1529, %v5843, %v5844
      %v5846 = vrot.slane %v5844, 4
      %v5847 = vrot.slane %v5312, 5
      %v5848 = vsel %vm1529, %v5846, %v5847
      %v5849 = vrot.slane %v5713, 5
      %v5850 = vrot.slane %v5849, 4
      %v5851 = vrot.slane %v5294, 5
      %v5852 = vsel %vm1529, %v5850, %v5851
      %v5853 = vrot.slane %v5851, 4
      %v5854 = vrot.slane %v5313, 5
      %v5855 = vsel %vm1529, %v5853, %v5854
      %v5856 = vrot.slane %v5714, 5
      %v5857 = vrot.slane %v5856, 4
      %v5858 = vrot.slane %v5296, 5
      %v5859 = vsel %vm1529, %v5857, %v5858
      %v5860 = vrot.slane %v5858, 4
      %v5861 = vrot.slane %v5314, 5
      %v5862 = vsel %vm1529, %v5860, %v5861
      %v5863 = vrot.slane %v5715, 5
      %v5864 = vrot.slane %v5863, 4
      %v5865 = vrot.slane %v5298, 5
      %v5866 = vsel %vm1529, %v5864, %v5865
      %v5867 = vrot.slane %v5865, 4
      %v5868 = vrot.slane %v5315, 5
      %v5869 = vsel %vm1529, %v5867, %v5868
      %v5870 = vrot.slane %v5716, 5
      %v5871 = vrot.slane %v5870, 4
      %v5872 = vrot.slane %v5300, 5
      %v5873 = vsel %vm1529, %v5871, %v5872
      %v5874 = vrot.slane %v5872, 4
      %v5875 = vrot.slane %v5316, 5
      %v5876 = vsel %vm1529, %v5874, %v5875
      %s5877 = scalar_lea.vmem [#allocation3], 24
      %v5878 = vld [vmem:[%s5877] sm:$0xf]
      %v5879 = vld [vmem:[%s5877 + $0x4] sm:$0xf]
      %v5880 = vld [vmem:[%s5877 + $0xc] sm:$0xf]
      %v5881 = vld [vmem:[%s5877 + $0x10] sm:$0xf]
      %v5882 = vld [vmem:[%s5877 + $0x18] sm:$0xf]
      %v5883 = vld [vmem:[%s5877 + $0x1c] sm:$0xf]
      %v5884 = vld [vmem:[%s5877 + $0x24] sm:$0xf]
      %v5885 = vld [vmem:[%s5877 + $0x28] sm:$0xf]
      %v5886 = vld [vmem:[%s5877 + $0x30] sm:$0xf]
      %v5887 = vld [vmem:[%s5877 + $0x34] sm:$0xf]
      %v5888 = vld [vmem:[%s5877 + $0x3c] sm:$0xf]
      %v5889 = vld [vmem:[%s5877 + $0x40] sm:$0xf]
      %v5890 = vld [vmem:[%s5877 + $0x48] sm:$0xf]
      %v5891 = vld [vmem:[%s5877 + $0x4c] sm:$0xf]
      %v5892 = vld [vmem:[%s5877 + $0x54] sm:$0xf]
      %v5893 = vld [vmem:[%s5877 + $0x58] sm:$0xf]
      %v5894 = vld [vmem:[%s5877 + $0x60] sm:$0xf]
      %v5895 = vld [vmem:[%s5877 + $0x64] sm:$0xf]
      %v5896 = vld [vmem:[%s5877 + $0x6c] sm:$0xf]
      %v5897 = vld [vmem:[%s5877 + $0x70] sm:$0xf]
      %v5898 = vld [vmem:[%s5877 + $0x78] sm:$0xf]
      %v5899 = vld [vmem:[%s5877 + $0x7c] sm:$0xf]
      %v5900 = vld [vmem:[%s5877 + $0x84] sm:$0xf]
      %v5901 = vld [vmem:[%s5877 + $0x88] sm:$0xf]
      %v5902 = vld [vmem:[%s5877 + $0x90] sm:$0xf]
      %v5903 = vld [vmem:[%s5877 + $0x94] sm:$0xf]
      %v5904 = vld [vmem:[%s5877 + $0x9c] sm:$0xf]
      %v5905 = vld [vmem:[%s5877 + $0xa0] sm:$0xf]
      %v5906 = vld [vmem:[%s5877 + $0xa8] sm:$0xf]
      %v5907 = vld [vmem:[%s5877 + $0xac] sm:$0xf]
      %v5908 = vld [vmem:[%s5877 + $0xb4] sm:$0xf]
      %v5909 = vld [vmem:[%s5877 + $0xb8] sm:$0xf]
      %v5910 = vld [vmem:[%s5877 + $0x8] sm:$0x1]
      %v5911 = vld [vmem:[%s5877 + $0x14] sm:$0x1]
      %v5912 = vld [vmem:[%s5877 + $0x20] sm:$0x1]
      %v5913 = vld [vmem:[%s5877 + $0x2c] sm:$0x1]
      %v5914 = vld [vmem:[%s5877 + $0x38] sm:$0x1]
      %v5915 = vld [vmem:[%s5877 + $0x44] sm:$0x1]
      %v5916 = vld [vmem:[%s5877 + $0x50] sm:$0x1]
      %v5917 = vld [vmem:[%s5877 + $0x5c] sm:$0x1]
      %v5918 = vld [vmem:[%s5877 + $0x68] sm:$0x1]
      %v5919 = vld [vmem:[%s5877 + $0x74] sm:$0x1]
      %v5920 = vld [vmem:[%s5877 + $0x80] sm:$0x1]
      %v5921 = vld [vmem:[%s5877 + $0x8c] sm:$0x1]
      %v5922 = vld [vmem:[%s5877 + $0x98] sm:$0x1]
      %v5923 = vld [vmem:[%s5877 + $0xa4] sm:$0x1]
      %v5924 = vld [vmem:[%s5877 + $0xb0] sm:$0x1]
      %v5925 = vld [vmem:[%s5877 + $0xbc] sm:$0x1]
      %v5927 = vshrl.u32 %v5878, 16
      %v5929 = vrot.slane %v5927, 4
      %v5930 = vshll.u32 %v5878, 16
      %v5932 = vrot.slane %v5930, 5
      %v5933 = vor.u32 %v5929, %v5932
      %v5934 = vrot.slane %v5933, 4
      %v5936 = vshll.u32 %v5879, 16
      %v5938 = vrot.slane %v5936, 5
      %v5939 = vsel %vm1078, %v5934, %v5938
      %v5940 = vshrl.u32 %v5879, 16
      %v5942 = vrot.slane %v5940, 4
      %v5943 = vor.u32 %v5942, %v5938
      %v5944 = vrot.slane %v5943, 4
      %v5946 = vshll.u32 %v5910, 16
      %v5948 = vrot.slane %v5946, 5
      %v5949 = vsel %vm1078, %v5944, %v5948
      %v5951 = vshrl.u32 %v5880, 16
      %v5953 = vrot.slane %v5951, 4
      %v5954 = vshll.u32 %v5880, 16
      %v5956 = vrot.slane %v5954, 5
      %v5957 = vor.u32 %v5953, %v5956
      %v5958 = vrot.slane %v5957, 4
      %v5960 = vshll.u32 %v5881, 16
      %v5962 = vrot.slane %v5960, 5
      %v5963 = vsel %vm1078, %v5958, %v5962
      %v5964 = vshrl.u32 %v5881, 16
      %v5966 = vrot.slane %v5964, 4
      %v5967 = vor.u32 %v5966, %v5962
      %v5968 = vrot.slane %v5967, 4
      %v5970 = vshll.u32 %v5911, 16
      %v5972 = vrot.slane %v5970, 5
      %v5973 = vsel %vm1078, %v5968, %v5972
      %v5975 = vshrl.u32 %v5882, 16
      %v5977 = vrot.slane %v5975, 4
      %v5978 = vshll.u32 %v5882, 16
      %v5980 = vrot.slane %v5978, 5
      %v5981 = vor.u32 %v5977, %v5980
      %v5982 = vrot.slane %v5981, 4
      %v5984 = vshll.u32 %v5883, 16
      %v5986 = vrot.slane %v5984, 5
      %v5987 = vsel %vm1078, %v5982, %v5986
      %v5988 = vshrl.u32 %v5883, 16
      %v5990 = vrot.slane %v5988, 4
      %v5991 = vor.u32 %v5990, %v5986
      %v5992 = vrot.slane %v5991, 4
      %v5994 = vshll.u32 %v5912, 16
      %v5996 = vrot.slane %v5994, 5
      %v5997 = vsel %vm1078, %v5992, %v5996
      %v5999 = vshrl.u32 %v5884, 16
      %v6001 = vrot.slane %v5999, 4
      %v6002 = vshll.u32 %v5884, 16
      %v6004 = vrot.slane %v6002, 5
      %v6005 = vor.u32 %v6001, %v6004
      %v6006 = vrot.slane %v6005, 4
      %v6008 = vshll.u32 %v5885, 16
      %v6010 = vrot.slane %v6008, 5
      %v6011 = vsel %vm1078, %v6006, %v6010
      %v6012 = vshrl.u32 %v5885, 16
      %v6014 = vrot.slane %v6012, 4
      %v6015 = vor.u32 %v6014, %v6010
      %v6016 = vrot.slane %v6015, 4
      %v6018 = vshll.u32 %v5913, 16
      %v6020 = vrot.slane %v6018, 5
      %v6021 = vsel %vm1078, %v6016, %v6020
      %v6023 = vshrl.u32 %v5886, 16
      %v6025 = vrot.slane %v6023, 4
      %v6026 = vshll.u32 %v5886, 16
      %v6028 = vrot.slane %v6026, 5
      %v6029 = vor.u32 %v6025, %v6028
      %v6030 = vrot.slane %v6029, 4
      %v6032 = vshll.u32 %v5887, 16
      %v6034 = vrot.slane %v6032, 5
      %v6035 = vsel %vm1078, %v6030, %v6034
      %v6036 = vshrl.u32 %v5887, 16
      %v6038 = vrot.slane %v6036, 4
      %v6039 = vor.u32 %v6038, %v6034
      %v6040 = vrot.slane %v6039, 4
      %v6042 = vshll.u32 %v5914, 16
      %v6044 = vrot.slane %v6042, 5
      %v6045 = vsel %vm1078, %v6040, %v6044
      %v6047 = vshrl.u32 %v5888, 16
      %v6049 = vrot.slane %v6047, 4
      %v6050 = vshll.u32 %v5888, 16
      %v6052 = vrot.slane %v6050, 5
      %v6053 = vor.u32 %v6049, %v6052
      %v6054 = vrot.slane %v6053, 4
      %v6056 = vshll.u32 %v5889, 16
      %v6058 = vrot.slane %v6056, 5
      %v6059 = vsel %vm1078, %v6054, %v6058
      %v6060 = vshrl.u32 %v5889, 16
      %v6062 = vrot.slane %v6060, 4
      %v6063 = vor.u32 %v6062, %v6058
      %v6064 = vrot.slane %v6063, 4
      %v6066 = vshll.u32 %v5915, 16
      %v6068 = vrot.slane %v6066, 5
      %v6069 = vsel %vm1078, %v6064, %v6068
      %v6071 = vshrl.u32 %v5890, 16
      %v6073 = vrot.slane %v6071, 4
      %v6074 = vshll.u32 %v5890, 16
      %v6076 = vrot.slane %v6074, 5
      %v6077 = vor.u32 %v6073, %v6076
      %v6078 = vrot.slane %v6077, 4
      %v6080 = vshll.u32 %v5891, 16
      %v6082 = vrot.slane %v6080, 5
      %v6083 = vsel %vm1078, %v6078, %v6082
      %v6084 = vshrl.u32 %v5891, 16
      %v6086 = vrot.slane %v6084, 4
      %v6087 = vor.u32 %v6086, %v6082
      %v6088 = vrot.slane %v6087, 4
      %v6090 = vshll.u32 %v5916, 16
      %v6092 = vrot.slane %v6090, 5
      %v6093 = vsel %vm1078, %v6088, %v6092
      %v6095 = vshrl.u32 %v5892, 16
      %v6097 = vrot.slane %v6095, 4
      %v6098 = vshll.u32 %v5892, 16
      %v6100 = vrot.slane %v6098, 5
      %v6101 = vor.u32 %v6097, %v6100
      %v6102 = vrot.slane %v6101, 4
      %v6104 = vshll.u32 %v5893, 16
      %v6106 = vrot.slane %v6104, 5
      %v6107 = vsel %vm1078, %v6102, %v6106
      %v6108 = vshrl.u32 %v5893, 16
      %v6110 = vrot.slane %v6108, 4
      %v6111 = vor.u32 %v6110, %v6106
      %v6112 = vrot.slane %v6111, 4
      %v6114 = vshll.u32 %v5917, 16
      %v6116 = vrot.slane %v6114, 5
      %v6117 = vsel %vm1078, %v6112, %v6116
      %v6119 = vshrl.u32 %v5894, 16
      %v6121 = vrot.slane %v6119, 4
      %v6122 = vshll.u32 %v5894, 16
      %v6124 = vrot.slane %v6122, 5
      %v6125 = vor.u32 %v6121, %v6124
      %v6126 = vrot.slane %v6125, 4
      %v6128 = vshll.u32 %v5895, 16
      %v6130 = vrot.slane %v6128, 5
      %v6131 = vsel %vm1078, %v6126, %v6130
      %v6132 = vshrl.u32 %v5895, 16
      %v6134 = vrot.slane %v6132, 4
      %v6135 = vor.u32 %v6134, %v6130
      %v6136 = vrot.slane %v6135, 4
      %v6138 = vshll.u32 %v5918, 16
      %v6140 = vrot.slane %v6138, 5
      %v6141 = vsel %vm1078, %v6136, %v6140
      %v6143 = vshrl.u32 %v5896, 16
      %v6145 = vrot.slane %v6143, 4
      %v6146 = vshll.u32 %v5896, 16
      %v6148 = vrot.slane %v6146, 5
      %v6149 = vor.u32 %v6145, %v6148
      %v6150 = vrot.slane %v6149, 4
      %v6152 = vshll.u32 %v5897, 16
      %v6154 = vrot.slane %v6152, 5
      %v6155 = vsel %vm1078, %v6150, %v6154
      %v6156 = vshrl.u32 %v5897, 16
      %v6158 = vrot.slane %v6156, 4
      %v6159 = vor.u32 %v6158, %v6154
      %v6160 = vrot.slane %v6159, 4
      %v6162 = vshll.u32 %v5919, 16
      %v6164 = vrot.slane %v6162, 5
      %v6165 = vsel %vm1078, %v6160, %v6164
      %v6167 = vshrl.u32 %v5898, 16
      %v6169 = vrot.slane %v6167, 4
      %v6170 = vshll.u32 %v5898, 16
      %v6172 = vrot.slane %v6170, 5
      %v6173 = vor.u32 %v6169, %v6172
      %v6174 = vrot.slane %v6173, 4
      %v6176 = vshll.u32 %v5899, 16
      %v6178 = vrot.slane %v6176, 5
      %v6179 = vsel %vm1078, %v6174, %v6178
      %v6180 = vshrl.u32 %v5899, 16
      %v6182 = vrot.slane %v6180, 4
      %v6183 = vor.u32 %v6182, %v6178
      %v6184 = vrot.slane %v6183, 4
      %v6186 = vshll.u32 %v5920, 16
      %v6188 = vrot.slane %v6186, 5
      %v6189 = vsel %vm1078, %v6184, %v6188
      %v6191 = vshrl.u32 %v5900, 16
      %v6193 = vrot.slane %v6191, 4
      %v6194 = vshll.u32 %v5900, 16
      %v6196 = vrot.slane %v6194, 5
      %v6197 = vor.u32 %v6193, %v6196
      %v6198 = vrot.slane %v6197, 4
      %v6200 = vshll.u32 %v5901, 16
      %v6202 = vrot.slane %v6200, 5
      %v6203 = vsel %vm1078, %v6198, %v6202
      %v6204 = vshrl.u32 %v5901, 16
      %v6206 = vrot.slane %v6204, 4
      %v6207 = vor.u32 %v6206, %v6202
      %v6208 = vrot.slane %v6207, 4
      %v6210 = vshll.u32 %v5921, 16
      %v6212 = vrot.slane %v6210, 5
      %v6213 = vsel %vm1078, %v6208, %v6212
      %v6215 = vshrl.u32 %v5902, 16
      %v6217 = vrot.slane %v6215, 4
      %v6218 = vshll.u32 %v5902, 16
      %v6220 = vrot.slane %v6218, 5
      %v6221 = vor.u32 %v6217, %v6220
      %v6222 = vrot.slane %v6221, 4
      %v6224 = vshll.u32 %v5903, 16
      %v6226 = vrot.slane %v6224, 5
      %v6227 = vsel %vm1078, %v6222, %v6226
      %v6228 = vshrl.u32 %v5903, 16
      %v6230 = vrot.slane %v6228, 4
      %v6231 = vor.u32 %v6230, %v6226
      %v6232 = vrot.slane %v6231, 4
      %v6234 = vshll.u32 %v5922, 16
      %v6236 = vrot.slane %v6234, 5
      %v6237 = vsel %vm1078, %v6232, %v6236
      %v6239 = vshrl.u32 %v5904, 16
      %v6241 = vrot.slane %v6239, 4
      %v6242 = vshll.u32 %v5904, 16
      %v6244 = vrot.slane %v6242, 5
      %v6245 = vor.u32 %v6241, %v6244
      %v6246 = vrot.slane %v6245, 4
      %v6248 = vshll.u32 %v5905, 16
      %v6250 = vrot.slane %v6248, 5
      %v6251 = vsel %vm1078, %v6246, %v6250
      %v6252 = vshrl.u32 %v5905, 16
      %v6254 = vrot.slane %v6252, 4
      %v6255 = vor.u32 %v6254, %v6250
      %v6256 = vrot.slane %v6255, 4
      %v6258 = vshll.u32 %v5923, 16
      %v6260 = vrot.slane %v6258, 5
      %v6261 = vsel %vm1078, %v6256, %v6260
      %v6263 = vshrl.u32 %v5906, 16
      %v6265 = vrot.slane %v6263, 4
      %v6266 = vshll.u32 %v5906, 16
      %v6268 = vrot.slane %v6266, 5
      %v6269 = vor.u32 %v6265, %v6268
      %v6270 = vrot.slane %v6269, 4
      %v6272 = vshll.u32 %v5907, 16
      %v6274 = vrot.slane %v6272, 5
      %v6275 = vsel %vm1078, %v6270, %v6274
      %v6276 = vshrl.u32 %v5907, 16
      %v6278 = vrot.slane %v6276, 4
      %v6279 = vor.u32 %v6278, %v6274
      %v6280 = vrot.slane %v6279, 4
      %v6282 = vshll.u32 %v5924, 16
      %v6284 = vrot.slane %v6282, 5
      %v6285 = vsel %vm1078, %v6280, %v6284
      %v6287 = vshrl.u32 %v5908, 16
      %v6289 = vrot.slane %v6287, 4
      %v6290 = vshll.u32 %v5908, 16
      %v6292 = vrot.slane %v6290, 5
      %v6293 = vor.u32 %v6289, %v6292
      %v6294 = vrot.slane %v6293, 4
      %v6296 = vshll.u32 %v5909, 16
      %v6298 = vrot.slane %v6296, 5
      %v6299 = vsel %vm1078, %v6294, %v6298
      %v6300 = vshrl.u32 %v5909, 16
      %v6302 = vrot.slane %v6300, 4
      %v6303 = vor.u32 %v6302, %v6298
      %v6304 = vrot.slane %v6303, 4
      %v6306 = vshll.u32 %v5925, 16
      %v6308 = vrot.slane %v6306, 5
      %v6309 = vsel %vm1078, %v6304, %v6308
      %v6310 = vld [vmem:[%s5877] sm:$0xe]
      %v6311 = vld [vmem:[%s5877 + $0xc] sm:$0xe]
      %v6312 = vld [vmem:[%s5877 + $0x18] sm:$0xe]
      %v6313 = vld [vmem:[%s5877 + $0x24] sm:$0xe]
      %v6314 = vld [vmem:[%s5877 + $0x30] sm:$0xe]
      %v6315 = vld [vmem:[%s5877 + $0x3c] sm:$0xe]
      %v6316 = vld [vmem:[%s5877 + $0x48] sm:$0xe]
      %v6317 = vld [vmem:[%s5877 + $0x54] sm:$0xe]
      %v6318 = vld [vmem:[%s5877 + $0x60] sm:$0xe]
      %v6319 = vld [vmem:[%s5877 + $0x6c] sm:$0xe]
      %v6320 = vld [vmem:[%s5877 + $0x78] sm:$0xe]
      %v6321 = vld [vmem:[%s5877 + $0x84] sm:$0xe]
      %v6322 = vld [vmem:[%s5877 + $0x90] sm:$0xe]
      %v6323 = vld [vmem:[%s5877 + $0x9c] sm:$0xe]
      %v6324 = vld [vmem:[%s5877 + $0xa8] sm:$0xe]
      %v6325 = vld [vmem:[%s5877 + $0xb4] sm:$0xe]
      %v6374 = vrot.slane %v6310, 5
      %v6375 = vrot.slane %v6374, 4
      %v6376 = vrot.slane %v5879, 5
      %v6377 = vsel %vm1529, %v6375, %v6376
      %v6378 = vrot.slane %v6376, 4
      %v6379 = vrot.slane %v5910, 5
      %v6380 = vsel %vm1529, %v6378, %v6379
      %v6381 = vrot.slane %v6311, 5
      %v6382 = vrot.slane %v6381, 4
      %v6383 = vrot.slane %v5881, 5
      %v6384 = vsel %vm1529, %v6382, %v6383
      %v6385 = vrot.slane %v6383, 4
      %v6386 = vrot.slane %v5911, 5
      %v6387 = vsel %vm1529, %v6385, %v6386
      %v6388 = vrot.slane %v6312, 5
      %v6389 = vrot.slane %v6388, 4
      %v6390 = vrot.slane %v5883, 5
      %v6391 = vsel %vm1529, %v6389, %v6390
      %v6392 = vrot.slane %v6390, 4
      %v6393 = vrot.slane %v5912, 5
      %v6394 = vsel %vm1529, %v6392, %v6393
      %v6395 = vrot.slane %v6313, 5
      %v6396 = vrot.slane %v6395, 4
      %v6397 = vrot.slane %v5885, 5
      %v6398 = vsel %vm1529, %v6396, %v6397
      %v6399 = vrot.slane %v6397, 4
      %v6400 = vrot.slane %v5913, 5
      %v6401 = vsel %vm1529, %v6399, %v6400
      %v6402 = vrot.slane %v6314, 5
      %v6403 = vrot.slane %v6402, 4
      %v6404 = vrot.slane %v5887, 5
      %v6405 = vsel %vm1529, %v6403, %v6404
      %v6406 = vrot.slane %v6404, 4
      %v6407 = vrot.slane %v5914, 5
      %v6408 = vsel %vm1529, %v6406, %v6407
      %v6409 = vrot.slane %v6315, 5
      %v6410 = vrot.slane %v6409, 4
      %v6411 = vrot.slane %v5889, 5
      %v6412 = vsel %vm1529, %v6410, %v6411
      %v6413 = vrot.slane %v6411, 4
      %v6414 = vrot.slane %v5915, 5
      %v6415 = vsel %vm1529, %v6413, %v6414
      %v6416 = vrot.slane %v6316, 5
      %v6417 = vrot.slane %v6416, 4
      %v6418 = vrot.slane %v5891, 5
      %v6419 = vsel %vm1529, %v6417, %v6418
      %v6420 = vrot.slane %v6418, 4
      %v6421 = vrot.slane %v5916, 5
      %v6422 = vsel %vm1529, %v6420, %v6421
      %v6423 = vrot.slane %v6317, 5
      %v6424 = vrot.slane %v6423, 4
      %v6425 = vrot.slane %v5893, 5
      %v6426 = vsel %vm1529, %v6424, %v6425
      %v6427 = vrot.slane %v6425, 4
      %v6428 = vrot.slane %v5917, 5
      %v6429 = vsel %vm1529, %v6427, %v6428
      %v6430 = vrot.slane %v6318, 5
      %v6431 = vrot.slane %v6430, 4
      %v6432 = vrot.slane %v5895, 5
      %v6433 = vsel %vm1529, %v6431, %v6432
      %v6434 = vrot.slane %v6432, 4
      %v6435 = vrot.slane %v5918, 5
      %v6436 = vsel %vm1529, %v6434, %v6435
      %v6437 = vrot.slane %v6319, 5
      %v6438 = vrot.slane %v6437, 4
      %v6439 = vrot.slane %v5897, 5
      %v6440 = vsel %vm1529, %v6438, %v6439
      %v6441 = vrot.slane %v6439, 4
      %v6442 = vrot.slane %v5919, 5
      %v6443 = vsel %vm1529, %v6441, %v6442
      %v6444 = vrot.slane %v6320, 5
      %v6445 = vrot.slane %v6444, 4
      %v6446 = vrot.slane %v5899, 5
      %v6447 = vsel %vm1529, %v6445, %v6446
      %v6448 = vrot.slane %v6446, 4
      %v6449 = vrot.slane %v5920, 5
      %v6450 = vsel %vm1529, %v6448, %v6449
      %v6451 = vrot.slane %v6321, 5
      %v6452 = vrot.slane %v6451, 4
      %v6453 = vrot.slane %v5901, 5
      %v6454 = vsel %vm1529, %v6452, %v6453
      %v6455 = vrot.slane %v6453, 4
      %v6456 = vrot.slane %v5921, 5
      %v6457 = vsel %vm1529, %v6455, %v6456
      %v6458 = vrot.slane %v6322, 5
      %v6459 = vrot.slane %v6458, 4
      %v6460 = vrot.slane %v5903, 5
      %v6461 = vsel %vm1529, %v6459, %v6460
      %v6462 = vrot.slane %v6460, 4
      %v6463 = vrot.slane %v5922, 5
      %v6464 = vsel %vm1529, %v6462, %v6463
      %v6465 = vrot.slane %v6323, 5
      %v6466 = vrot.slane %v6465, 4
      %v6467 = vrot.slane %v5905, 5
      %v6468 = vsel %vm1529, %v6466, %v6467
      %v6469 = vrot.slane %v6467, 4
      %v6470 = vrot.slane %v5923, 5
      %v6471 = vsel %vm1529, %v6469, %v6470
      %v6472 = vrot.slane %v6324, 5
      %v6473 = vrot.slane %v6472, 4
      %v6474 = vrot.slane %v5907, 5
      %v6475 = vsel %vm1529, %v6473, %v6474
      %v6476 = vrot.slane %v6474, 4
      %v6477 = vrot.slane %v5924, 5
      %v6478 = vsel %vm1529, %v6476, %v6477
      %v6479 = vrot.slane %v6325, 5
      %v6480 = vrot.slane %v6479, 4
      %v6481 = vrot.slane %v5909, 5
      %v6482 = vsel %vm1529, %v6480, %v6481
      %v6483 = vrot.slane %v6481, 4
      %v6484 = vrot.slane %v5925, 5
      %v6485 = vsel %vm1529, %v6483, %v6484
      %v6502 = vunpack.c.l.b16 %v4661
      %v6503 = vunpack.c.l.b16 %v4662
      %v6504 = vunpack.c.l.b16 %v4663
      %v6505 = vunpack.c.l.b16 %v4664
      %v6506 = vunpack.c.l.b16 %v4665
      %v6507 = vunpack.c.l.b16 %v4666
      %v6508 = vunpack.c.l.b16 %v4667
      %v6509 = vunpack.c.l.b16 %v4668
      %v6510 = vunpack.c.l.b16 %v4669
      %v6511 = vunpack.c.l.b16 %v4670
      %v6512 = vunpack.c.l.b16 %v4671
      %v6513 = vunpack.c.l.b16 %v4672
      %v6514 = vunpack.c.l.b16 %v4673
      %v6515 = vunpack.c.l.b16 %v4674
      %v6516 = vunpack.c.l.b16 %v4675
      %v6517 = vunpack.c.l.b16 %v4676
      %v6518 = vunpack.c.l.b16 %v4677
      %v6519 = vunpack.c.l.b16 %v4678
      %v6520 = vunpack.c.l.b16 %v4679
      %v6521 = vunpack.c.l.b16 %v4680
      %v6522 = vunpack.c.l.b16 %v4681
      %v6523 = vunpack.c.l.b16 %v4682
      %v6524 = vunpack.c.l.b16 %v4683
      %v6525 = vunpack.c.l.b16 %v4684
      %v6526 = vunpack.c.l.b16 %v4685
      %v6527 = vunpack.c.l.b16 %v4686
      %v6528 = vunpack.c.l.b16 %v4687
      %v6529 = vunpack.c.l.b16 %v4688
      %v6530 = vunpack.c.l.b16 %v4689
      %v6531 = vunpack.c.l.b16 %v4690
      %v6532 = vunpack.c.l.b16 %v4691
      %v6533 = vunpack.c.l.b16 %v4692
      %v6534 = vpack.c.b16 %v6503, %v6502
      %v6535 = vpack.c.b16 %v6505, %v6504
      %v6536 = vpack.c.b16 %v6507, %v6506
      %v6537 = vpack.c.b16 %v6509, %v6508
      %v6538 = vpack.c.b16 %v6511, %v6510
      %v6539 = vpack.c.b16 %v6513, %v6512
      %v6540 = vpack.c.b16 %v6515, %v6514
      %v6541 = vpack.c.b16 %v6517, %v6516
      %v6542 = vpack.c.b16 %v6519, %v6518
      %v6543 = vpack.c.b16 %v6521, %v6520
      %v6544 = vpack.c.b16 %v6523, %v6522
      %v6545 = vpack.c.b16 %v6525, %v6524
      %v6546 = vpack.c.b16 %v6527, %v6526
      %v6547 = vpack.c.b16 %v6529, %v6528
      %v6548 = vpack.c.b16 %v6531, %v6530
      %v6549 = vpack.c.b16 %v6533, %v6532
      %v6550 = vunpack.c.l.b16 %v4722
      %v6551 = vunpack.c.l.b16 %v4732
      %v6552 = vunpack.c.l.b16 %v4746
      %v6553 = vunpack.c.l.b16 %v4756
      %v6554 = vunpack.c.l.b16 %v4770
      %v6555 = vunpack.c.l.b16 %v4780
      %v6556 = vunpack.c.l.b16 %v4794
      %v6557 = vunpack.c.l.b16 %v4804
      %v6558 = vunpack.c.l.b16 %v4818
      %v6559 = vunpack.c.l.b16 %v4828
      %v6560 = vunpack.c.l.b16 %v4842
      %v6561 = vunpack.c.l.b16 %v4852
      %v6562 = vunpack.c.l.b16 %v4866
      %v6563 = vunpack.c.l.b16 %v4876
      %v6564 = vunpack.c.l.b16 %v4890
      %v6565 = vunpack.c.l.b16 %v4900
      %v6566 = vunpack.c.l.b16 %v4914
      %v6567 = vunpack.c.l.b16 %v4924
      %v6568 = vunpack.c.l.b16 %v4938
      %v6569 = vunpack.c.l.b16 %v4948
      %v6570 = vunpack.c.l.b16 %v4962
      %v6571 = vunpack.c.l.b16 %v4972
      %v6572 = vunpack.c.l.b16 %v4986
      %v6573 = vunpack.c.l.b16 %v4996
      %v6574 = vunpack.c.l.b16 %v5010
      %v6575 = vunpack.c.l.b16 %v5020
      %v6576 = vunpack.c.l.b16 %v5034
      %v6577 = vunpack.c.l.b16 %v5044
      %v6578 = vunpack.c.l.b16 %v5058
      %v6579 = vunpack.c.l.b16 %v5068
      %v6580 = vunpack.c.l.b16 %v5082
      %v6581 = vunpack.c.l.b16 %v5092
      %v6582 = vpack.c.b16 %v6551, %v6550
      %v6583 = vpack.c.b16 %v6553, %v6552
      %v6584 = vpack.c.b16 %v6555, %v6554
      %v6585 = vpack.c.b16 %v6557, %v6556
      %v6586 = vpack.c.b16 %v6559, %v6558
      %v6587 = vpack.c.b16 %v6561, %v6560
      %v6588 = vpack.c.b16 %v6563, %v6562
      %v6589 = vpack.c.b16 %v6565, %v6564
      %v6590 = vpack.c.b16 %v6567, %v6566
      %v6591 = vpack.c.b16 %v6569, %v6568
      %v6592 = vpack.c.b16 %v6571, %v6570
      %v6593 = vpack.c.b16 %v6573, %v6572
      %v6594 = vpack.c.b16 %v6575, %v6574
      %v6595 = vpack.c.b16 %v6577, %v6576
      %v6596 = vpack.c.b16 %v6579, %v6578
      %v6597 = vpack.c.b16 %v6581, %v6580
      %6598 = vrot.lane.b32.xlu0 %v6582, 4
      %v6599 = vpop.permute.xlu0 %6598
      %6600 = vrot.lane.b32.xlu0 %v6583, 4
      %v6601 = vpop.permute.xlu0 %6600
      %6602 = vrot.lane.b32.xlu0 %v6584, 4
      %v6603 = vpop.permute.xlu0 %6602
      %6604 = vrot.lane.b32.xlu0 %v6585, 4
      %v6605 = vpop.permute.xlu0 %6604
      %6606 = vrot.lane.b32.xlu0 %v6586, 4
      %v6607 = vpop.permute.xlu0 %6606
      %6608 = vrot.lane.b32.xlu0 %v6587, 4
      %v6609 = vpop.permute.xlu0 %6608
      %6610 = vrot.lane.b32.xlu0 %v6588, 4
      %v6611 = vpop.permute.xlu0 %6610
      %6612 = vrot.lane.b32.xlu0 %v6589, 4
      %v6613 = vpop.permute.xlu0 %6612
      %6614 = vrot.lane.b32.xlu0 %v6590, 4
      %v6615 = vpop.permute.xlu0 %6614
      %6616 = vrot.lane.b32.xlu0 %v6591, 4
      %v6617 = vpop.permute.xlu0 %6616
      %6618 = vrot.lane.b32.xlu0 %v6592, 4
      %v6619 = vpop.permute.xlu0 %6618
      %6620 = vrot.lane.b32.xlu0 %v6593, 4
      %v6621 = vpop.permute.xlu0 %6620
      %6622 = vrot.lane.b32.xlu0 %v6594, 4
      %v6623 = vpop.permute.xlu0 %6622
      %6624 = vrot.lane.b32.xlu0 %v6595, 4
      %v6625 = vpop.permute.xlu0 %6624
      %6626 = vrot.lane.b32.xlu0 %v6596, 4
      %v6627 = vpop.permute.xlu0 %6626
      %6628 = vrot.lane.b32.xlu0 %v6597, 4
      %v6629 = vpop.permute.xlu0 %6628
      %v6630 = vunpack.c.l.b16 %v5160
      %v6631 = vunpack.c.l.b16 %v5163
      %v6632 = vunpack.c.l.b16 %v5167
      %v6633 = vunpack.c.l.b16 %v5170
      %v6634 = vunpack.c.l.b16 %v5174
      %v6635 = vunpack.c.l.b16 %v5177
      %v6636 = vunpack.c.l.b16 %v5181
      %v6637 = vunpack.c.l.b16 %v5184
      %v6638 = vunpack.c.l.b16 %v5188
      %v6639 = vunpack.c.l.b16 %v5191
      %v6640 = vunpack.c.l.b16 %v5195
      %v6641 = vunpack.c.l.b16 %v5198
      %v6642 = vunpack.c.l.b16 %v5202
      %v6643 = vunpack.c.l.b16 %v5205
      %v6644 = vunpack.c.l.b16 %v5209
      %v6645 = vunpack.c.l.b16 %v5212
      %v6646 = vunpack.c.l.b16 %v5216
      %v6647 = vunpack.c.l.b16 %v5219
      %v6648 = vunpack.c.l.b16 %v5223
      %v6649 = vunpack.c.l.b16 %v5226
      %v6650 = vunpack.c.l.b16 %v5230
      %v6651 = vunpack.c.l.b16 %v5233
      %v6652 = vunpack.c.l.b16 %v5237
      %v6653 = vunpack.c.l.b16 %v5240
      %v6654 = vunpack.c.l.b16 %v5244
      %v6655 = vunpack.c.l.b16 %v5247
      %v6656 = vunpack.c.l.b16 %v5251
      %v6657 = vunpack.c.l.b16 %v5254
      %v6658 = vunpack.c.l.b16 %v5258
      %v6659 = vunpack.c.l.b16 %v5261
      %v6660 = vunpack.c.l.b16 %v5265
      %v6661 = vunpack.c.l.b16 %v5268
      %v6662 = vpack.c.b16 %v6631, %v6630
      %v6663 = vpack.c.b16 %v6633, %v6632
      %v6664 = vpack.c.b16 %v6635, %v6634
      %v6665 = vpack.c.b16 %v6637, %v6636
      %v6666 = vpack.c.b16 %v6639, %v6638
      %v6667 = vpack.c.b16 %v6641, %v6640
      %v6668 = vpack.c.b16 %v6643, %v6642
      %v6669 = vpack.c.b16 %v6645, %v6644
      %v6670 = vpack.c.b16 %v6647, %v6646
      %v6671 = vpack.c.b16 %v6649, %v6648
      %v6672 = vpack.c.b16 %v6651, %v6650
      %v6673 = vpack.c.b16 %v6653, %v6652
      %v6674 = vpack.c.b16 %v6655, %v6654
      %v6675 = vpack.c.b16 %v6657, %v6656
      %v6676 = vpack.c.b16 %v6659, %v6658
      %v6677 = vpack.c.b16 %v6661, %v6660
      %6678 = vrot.lane.b32.xlu0 %v6662, 8
      %v6679 = vpop.permute.xlu0 %6678
      %6680 = vrot.lane.b32.xlu0 %v6663, 8
      %v6681 = vpop.permute.xlu0 %6680
      %6682 = vrot.lane.b32.xlu0 %v6664, 8
      %v6683 = vpop.permute.xlu0 %6682
      %6684 = vrot.lane.b32.xlu0 %v6665, 8
      %v6685 = vpop.permute.xlu0 %6684
      %6686 = vrot.lane.b32.xlu0 %v6666, 8
      %v6687 = vpop.permute.xlu0 %6686
      %6688 = vrot.lane.b32.xlu0 %v6667, 8
      %v6689 = vpop.permute.xlu0 %6688
      %6690 = vrot.lane.b32.xlu0 %v6668, 8
      %v6691 = vpop.permute.xlu0 %6690
      %6692 = vrot.lane.b32.xlu0 %v6669, 8
      %v6693 = vpop.permute.xlu0 %6692
      %6694 = vrot.lane.b32.xlu0 %v6670, 8
      %v6695 = vpop.permute.xlu0 %6694
      %6696 = vrot.lane.b32.xlu0 %v6671, 8
      %v6697 = vpop.permute.xlu0 %6696
      %6698 = vrot.lane.b32.xlu0 %v6672, 8
      %v6699 = vpop.permute.xlu0 %6698
      %6700 = vrot.lane.b32.xlu0 %v6673, 8
      %v6701 = vpop.permute.xlu0 %6700
      %6702 = vrot.lane.b32.xlu0 %v6674, 8
      %v6703 = vpop.permute.xlu0 %6702
      %6704 = vrot.lane.b32.xlu0 %v6675, 8
      %v6705 = vpop.permute.xlu0 %6704
      %6706 = vrot.lane.b32.xlu0 %v6676, 8
      %v6707 = vpop.permute.xlu0 %6706
      %6708 = vrot.lane.b32.xlu0 %v6677, 8
      %v6709 = vpop.permute.xlu0 %6708
      %v6726 = vunpack.c.l.b16 %v5269
      %v6727 = vunpack.c.l.b16 %v5270
      %v6728 = vunpack.c.l.b16 %v5271
      %v6729 = vunpack.c.l.b16 %v5272
      %v6730 = vunpack.c.l.b16 %v5273
      %v6731 = vunpack.c.l.b16 %v5274
      %v6732 = vunpack.c.l.b16 %v5275
      %v6733 = vunpack.c.l.b16 %v5276
      %v6734 = vunpack.c.l.b16 %v5277
      %v6735 = vunpack.c.l.b16 %v5278
      %v6736 = vunpack.c.l.b16 %v5279
      %v6737 = vunpack.c.l.b16 %v5280
      %v6738 = vunpack.c.l.b16 %v5281
      %v6739 = vunpack.c.l.b16 %v5282
      %v6740 = vunpack.c.l.b16 %v5283
      %v6741 = vunpack.c.l.b16 %v5284
      %v6742 = vunpack.c.l.b16 %v5285
      %v6743 = vunpack.c.l.b16 %v5286
      %v6744 = vunpack.c.l.b16 %v5287
      %v6745 = vunpack.c.l.b16 %v5288
      %v6746 = vunpack.c.l.b16 %v5289
      %v6747 = vunpack.c.l.b16 %v5290
      %v6748 = vunpack.c.l.b16 %v5291
      %v6749 = vunpack.c.l.b16 %v5292
      %v6750 = vunpack.c.l.b16 %v5293
      %v6751 = vunpack.c.l.b16 %v5294
      %v6752 = vunpack.c.l.b16 %v5295
      %v6753 = vunpack.c.l.b16 %v5296
      %v6754 = vunpack.c.l.b16 %v5297
      %v6755 = vunpack.c.l.b16 %v5298
      %v6756 = vunpack.c.l.b16 %v5299
      %v6757 = vunpack.c.l.b16 %v5300
      %v6758 = vpack.c.b16 %v6727, %v6726
      %v6759 = vpack.c.b16 %v6729, %v6728
      %v6760 = vpack.c.b16 %v6731, %v6730
      %v6761 = vpack.c.b16 %v6733, %v6732
      %v6762 = vpack.c.b16 %v6735, %v6734
      %v6763 = vpack.c.b16 %v6737, %v6736
      %v6764 = vpack.c.b16 %v6739, %v6738
      %v6765 = vpack.c.b16 %v6741, %v6740
      %v6766 = vpack.c.b16 %v6743, %v6742
      %v6767 = vpack.c.b16 %v6745, %v6744
      %v6768 = vpack.c.b16 %v6747, %v6746
      %v6769 = vpack.c.b16 %v6749, %v6748
      %v6770 = vpack.c.b16 %v6751, %v6750
      %v6771 = vpack.c.b16 %v6753, %v6752
      %v6772 = vpack.c.b16 %v6755, %v6754
      %v6773 = vpack.c.b16 %v6757, %v6756
      %6774 = vrot.lane.b32.xlu0 %v6758, 12
      %v6775 = vpop.permute.xlu0 %6774
      %6776 = vrot.lane.b32.xlu0 %v6759, 12
      %v6777 = vpop.permute.xlu0 %6776
      %6778 = vrot.lane.b32.xlu0 %v6760, 12
      %v6779 = vpop.permute.xlu0 %6778
      %6780 = vrot.lane.b32.xlu0 %v6761, 12
      %v6781 = vpop.permute.xlu0 %6780
      %6782 = vrot.lane.b32.xlu0 %v6762, 12
      %v6783 = vpop.permute.xlu0 %6782
      %6784 = vrot.lane.b32.xlu0 %v6763, 12
      %v6785 = vpop.permute.xlu0 %6784
      %6786 = vrot.lane.b32.xlu0 %v6764, 12
      %v6787 = vpop.permute.xlu0 %6786
      %6788 = vrot.lane.b32.xlu0 %v6765, 12
      %v6789 = vpop.permute.xlu0 %6788
      %6790 = vrot.lane.b32.xlu0 %v6766, 12
      %v6791 = vpop.permute.xlu0 %6790
      %6792 = vrot.lane.b32.xlu0 %v6767, 12
      %v6793 = vpop.permute.xlu0 %6792
      %6794 = vrot.lane.b32.xlu0 %v6768, 12
      %v6795 = vpop.permute.xlu0 %6794
      %6796 = vrot.lane.b32.xlu0 %v6769, 12
      %v6797 = vpop.permute.xlu0 %6796
      %6798 = vrot.lane.b32.xlu0 %v6770, 12
      %v6799 = vpop.permute.xlu0 %6798
      %6800 = vrot.lane.b32.xlu0 %v6771, 12
      %v6801 = vpop.permute.xlu0 %6800
      %6802 = vrot.lane.b32.xlu0 %v6772, 12
      %v6803 = vpop.permute.xlu0 %6802
      %6804 = vrot.lane.b32.xlu0 %v6773, 12
      %v6805 = vpop.permute.xlu0 %6804
      %v6806 = vunpack.c.l.b16 %v5330
      %v6807 = vunpack.c.l.b16 %v5340
      %v6808 = vunpack.c.l.b16 %v5354
      %v6809 = vunpack.c.l.b16 %v5364
      %v6810 = vunpack.c.l.b16 %v5378
      %v6811 = vunpack.c.l.b16 %v5388
      %v6812 = vunpack.c.l.b16 %v5402
      %v6813 = vunpack.c.l.b16 %v5412
      %v6814 = vunpack.c.l.b16 %v5426
      %v6815 = vunpack.c.l.b16 %v5436
      %v6816 = vunpack.c.l.b16 %v5450
      %v6817 = vunpack.c.l.b16 %v5460
      %v6818 = vunpack.c.l.b16 %v5474
      %v6819 = vunpack.c.l.b16 %v5484
      %v6820 = vunpack.c.l.b16 %v5498
      %v6821 = vunpack.c.l.b16 %v5508
      %v6822 = vunpack.c.l.b16 %v5522
      %v6823 = vunpack.c.l.b16 %v5532
      %v6824 = vunpack.c.l.b16 %v5546
      %v6825 = vunpack.c.l.b16 %v5556
      %v6826 = vunpack.c.l.b16 %v5570
      %v6827 = vunpack.c.l.b16 %v5580
      %v6828 = vunpack.c.l.b16 %v5594
      %v6829 = vunpack.c.l.b16 %v5604
      %v6830 = vunpack.c.l.b16 %v5618
      %v6831 = vunpack.c.l.b16 %v5628
      %v6832 = vunpack.c.l.b16 %v5642
      %v6833 = vunpack.c.l.b16 %v5652
      %v6834 = vunpack.c.l.b16 %v5666
      %v6835 = vunpack.c.l.b16 %v5676
      %v6836 = vunpack.c.l.b16 %v5690
      %v6837 = vunpack.c.l.b16 %v5700
      %v6838 = vpack.c.b16 %v6807, %v6806
      %v6839 = vpack.c.b16 %v6809, %v6808
      %v6840 = vpack.c.b16 %v6811, %v6810
      %v6841 = vpack.c.b16 %v6813, %v6812
      %v6842 = vpack.c.b16 %v6815, %v6814
      %v6843 = vpack.c.b16 %v6817, %v6816
      %v6844 = vpack.c.b16 %v6819, %v6818
      %v6845 = vpack.c.b16 %v6821, %v6820
      %v6846 = vpack.c.b16 %v6823, %v6822
      %v6847 = vpack.c.b16 %v6825, %v6824
      %v6848 = vpack.c.b16 %v6827, %v6826
      %v6849 = vpack.c.b16 %v6829, %v6828
      %v6850 = vpack.c.b16 %v6831, %v6830
      %v6851 = vpack.c.b16 %v6833, %v6832
      %v6852 = vpack.c.b16 %v6835, %v6834
      %v6853 = vpack.c.b16 %v6837, %v6836
      %6854 = vrot.lane.b32.xlu0 %v6838, 16
      %v6855 = vpop.permute.xlu0 %6854
      %6856 = vrot.lane.b32.xlu0 %v6839, 16
      %v6857 = vpop.permute.xlu0 %6856
      %6858 = vrot.lane.b32.xlu0 %v6840, 16
      %v6859 = vpop.permute.xlu0 %6858
      %6860 = vrot.lane.b32.xlu0 %v6841, 16
      %v6861 = vpop.permute.xlu0 %6860
      %6862 = vrot.lane.b32.xlu0 %v6842, 16
      %v6863 = vpop.permute.xlu0 %6862
      %6864 = vrot.lane.b32.xlu0 %v6843, 16
      %v6865 = vpop.permute.xlu0 %6864
      %6866 = vrot.lane.b32.xlu0 %v6844, 16
      %v6867 = vpop.permute.xlu0 %6866
      %6868 = vrot.lane.b32.xlu0 %v6845, 16
      %v6869 = vpop.permute.xlu0 %6868
      %6870 = vrot.lane.b32.xlu0 %v6846, 16
      %v6871 = vpop.permute.xlu0 %6870
      %6872 = vrot.lane.b32.xlu0 %v6847, 16
      %v6873 = vpop.permute.xlu0 %6872
      %6874 = vrot.lane.b32.xlu0 %v6848, 16
      %v6875 = vpop.permute.xlu0 %6874
      %6876 = vrot.lane.b32.xlu0 %v6849, 16
      %v6877 = vpop.permute.xlu0 %6876
      %6878 = vrot.lane.b32.xlu0 %v6850, 16
      %v6879 = vpop.permute.xlu0 %6878
      %6880 = vrot.lane.b32.xlu0 %v6851, 16
      %v6881 = vpop.permute.xlu0 %6880
      %6882 = vrot.lane.b32.xlu0 %v6852, 16
      %v6883 = vpop.permute.xlu0 %6882
      %6884 = vrot.lane.b32.xlu0 %v6853, 16
      %v6885 = vpop.permute.xlu0 %6884
      %v6886 = vunpack.c.l.b16 %v5768
      %v6887 = vunpack.c.l.b16 %v5771
      %v6888 = vunpack.c.l.b16 %v5775
      %v6889 = vunpack.c.l.b16 %v5778
      %v6890 = vunpack.c.l.b16 %v5782
      %v6891 = vunpack.c.l.b16 %v5785
      %v6892 = vunpack.c.l.b16 %v5789
      %v6893 = vunpack.c.l.b16 %v5792
      %v6894 = vunpack.c.l.b16 %v5796
      %v6895 = vunpack.c.l.b16 %v5799
      %v6896 = vunpack.c.l.b16 %v5803
      %v6897 = vunpack.c.l.b16 %v5806
      %v6898 = vunpack.c.l.b16 %v5810
      %v6899 = vunpack.c.l.b16 %v5813
      %v6900 = vunpack.c.l.b16 %v5817
      %v6901 = vunpack.c.l.b16 %v5820
      %v6902 = vunpack.c.l.b16 %v5824
      %v6903 = vunpack.c.l.b16 %v5827
      %v6904 = vunpack.c.l.b16 %v5831
      %v6905 = vunpack.c.l.b16 %v5834
      %v6906 = vunpack.c.l.b16 %v5838
      %v6907 = vunpack.c.l.b16 %v5841
      %v6908 = vunpack.c.l.b16 %v5845
      %v6909 = vunpack.c.l.b16 %v5848
      %v6910 = vunpack.c.l.b16 %v5852
      %v6911 = vunpack.c.l.b16 %v5855
      %v6912 = vunpack.c.l.b16 %v5859
      %v6913 = vunpack.c.l.b16 %v5862
      %v6914 = vunpack.c.l.b16 %v5866
      %v6915 = vunpack.c.l.b16 %v5869
      %v6916 = vunpack.c.l.b16 %v5873
      %v6917 = vunpack.c.l.b16 %v5876
      %v6918 = vpack.c.b16 %v6887, %v6886
      %v6919 = vpack.c.b16 %v6889, %v6888
      %v6920 = vpack.c.b16 %v6891, %v6890
      %v6921 = vpack.c.b16 %v6893, %v6892
      %v6922 = vpack.c.b16 %v6895, %v6894
      %v6923 = vpack.c.b16 %v6897, %v6896
      %v6924 = vpack.c.b16 %v6899, %v6898
      %v6925 = vpack.c.b16 %v6901, %v6900
      %v6926 = vpack.c.b16 %v6903, %v6902
      %v6927 = vpack.c.b16 %v6905, %v6904
      %v6928 = vpack.c.b16 %v6907, %v6906
      %v6929 = vpack.c.b16 %v6909, %v6908
      %v6930 = vpack.c.b16 %v6911, %v6910
      %v6931 = vpack.c.b16 %v6913, %v6912
      %v6932 = vpack.c.b16 %v6915, %v6914
      %v6933 = vpack.c.b16 %v6917, %v6916
      %6934 = vrot.lane.b32.xlu0 %v6918, 20
      %v6935 = vpop.permute.xlu0 %6934
      %6936 = vrot.lane.b32.xlu0 %v6919, 20
      %v6937 = vpop.permute.xlu0 %6936
      %6938 = vrot.lane.b32.xlu0 %v6920, 20
      %v6939 = vpop.permute.xlu0 %6938
      %6940 = vrot.lane.b32.xlu0 %v6921, 20
      %v6941 = vpop.permute.xlu0 %6940
      %6942 = vrot.lane.b32.xlu0 %v6922, 20
      %v6943 = vpop.permute.xlu0 %6942
      %6944 = vrot.lane.b32.xlu0 %v6923, 20
      %v6945 = vpop.permute.xlu0 %6944
      %6946 = vrot.lane.b32.xlu0 %v6924, 20
      %v6947 = vpop.permute.xlu0 %6946
      %6948 = vrot.lane.b32.xlu0 %v6925, 20
      %v6949 = vpop.permute.xlu0 %6948
      %6950 = vrot.lane.b32.xlu0 %v6926, 20
      %v6951 = vpop.permute.xlu0 %6950
      %6952 = vrot.lane.b32.xlu0 %v6927, 20
      %v6953 = vpop.permute.xlu0 %6952
      %6954 = vrot.lane.b32.xlu0 %v6928, 20
      %v6955 = vpop.permute.xlu0 %6954
      %6956 = vrot.lane.b32.xlu0 %v6929, 20
      %v6957 = vpop.permute.xlu0 %6956
      %6958 = vrot.lane.b32.xlu0 %v6930, 20
      %v6959 = vpop.permute.xlu0 %6958
      %6960 = vrot.lane.b32.xlu0 %v6931, 20
      %v6961 = vpop.permute.xlu0 %6960
      %6962 = vrot.lane.b32.xlu0 %v6932, 20
      %v6963 = vpop.permute.xlu0 %6962
      %6964 = vrot.lane.b32.xlu0 %v6933, 20
      %v6965 = vpop.permute.xlu0 %6964
      %v6982 = vunpack.c.l.b16 %v5878
      %v6983 = vunpack.c.l.b16 %v5879
      %v6984 = vunpack.c.l.b16 %v5880
      %v6985 = vunpack.c.l.b16 %v5881
      %v6986 = vunpack.c.l.b16 %v5882
      %v6987 = vunpack.c.l.b16 %v5883
      %v6988 = vunpack.c.l.b16 %v5884
      %v6989 = vunpack.c.l.b16 %v5885
      %v6990 = vunpack.c.l.b16 %v5886
      %v6991 = vunpack.c.l.b16 %v5887
      %v6992 = vunpack.c.l.b16 %v5888
      %v6993 = vunpack.c.l.b16 %v5889
      %v6994 = vunpack.c.l.b16 %v5890
      %v6995 = vunpack.c.l.b16 %v5891
      %v6996 = vunpack.c.l.b16 %v5892
      %v6997 = vunpack.c.l.b16 %v5893
      %v6998 = vunpack.c.l.b16 %v5894
      %v6999 = vunpack.c.l.b16 %v5895
      %v7000 = vunpack.c.l.b16 %v5896
      %v7001 = vunpack.c.l.b16 %v5897
      %v7002 = vunpack.c.l.b16 %v5898
      %v7003 = vunpack.c.l.b16 %v5899
      %v7004 = vunpack.c.l.b16 %v5900
      %v7005 = vunpack.c.l.b16 %v5901
      %v7006 = vunpack.c.l.b16 %v5902
      %v7007 = vunpack.c.l.b16 %v5903
      %v7008 = vunpack.c.l.b16 %v5904
      %v7009 = vunpack.c.l.b16 %v5905
      %v7010 = vunpack.c.l.b16 %v5906
      %v7011 = vunpack.c.l.b16 %v5907
      %v7012 = vunpack.c.l.b16 %v5908
      %v7013 = vunpack.c.l.b16 %v5909
      %v7014 = vpack.c.b16 %v6983, %v6982
      %v7015 = vpack.c.b16 %v6985, %v6984
      %v7016 = vpack.c.b16 %v6987, %v6986
      %v7017 = vpack.c.b16 %v6989, %v6988
      %v7018 = vpack.c.b16 %v6991, %v6990
      %v7019 = vpack.c.b16 %v6993, %v6992
      %v7020 = vpack.c.b16 %v6995, %v6994
      %v7021 = vpack.c.b16 %v6997, %v6996
      %v7022 = vpack.c.b16 %v6999, %v6998
      %v7023 = vpack.c.b16 %v7001, %v7000
      %v7024 = vpack.c.b16 %v7003, %v7002
      %v7025 = vpack.c.b16 %v7005, %v7004
      %v7026 = vpack.c.b16 %v7007, %v7006
      %v7027 = vpack.c.b16 %v7009, %v7008
      %v7028 = vpack.c.b16 %v7011, %v7010
      %v7029 = vpack.c.b16 %v7013, %v7012
      %7030 = vrot.lane.b32.xlu0 %v7014, 24
      %v7031 = vpop.permute.xlu0 %7030
      %7032 = vrot.lane.b32.xlu0 %v7015, 24
      %v7033 = vpop.permute.xlu0 %7032
      %7034 = vrot.lane.b32.xlu0 %v7016, 24
      %v7035 = vpop.permute.xlu0 %7034
      %7036 = vrot.lane.b32.xlu0 %v7017, 24
      %v7037 = vpop.permute.xlu0 %7036
      %7038 = vrot.lane.b32.xlu0 %v7018, 24
      %v7039 = vpop.permute.xlu0 %7038
      %7040 = vrot.lane.b32.xlu0 %v7019, 24
      %v7041 = vpop.permute.xlu0 %7040
      %7042 = vrot.lane.b32.xlu0 %v7020, 24
      %v7043 = vpop.permute.xlu0 %7042
      %7044 = vrot.lane.b32.xlu0 %v7021, 24
      %v7045 = vpop.permute.xlu0 %7044
      %7046 = vrot.lane.b32.xlu0 %v7022, 24
      %v7047 = vpop.permute.xlu0 %7046
      %7048 = vrot.lane.b32.xlu0 %v7023, 24
      %v7049 = vpop.permute.xlu0 %7048
      %7050 = vrot.lane.b32.xlu0 %v7024, 24
      %v7051 = vpop.permute.xlu0 %7050
      %7052 = vrot.lane.b32.xlu0 %v7025, 24
      %v7053 = vpop.permute.xlu0 %7052
      %7054 = vrot.lane.b32.xlu0 %v7026, 24
      %v7055 = vpop.permute.xlu0 %7054
      %7056 = vrot.lane.b32.xlu0 %v7027, 24
      %v7057 = vpop.permute.xlu0 %7056
      %7058 = vrot.lane.b32.xlu0 %v7028, 24
      %v7059 = vpop.permute.xlu0 %7058
      %7060 = vrot.lane.b32.xlu0 %v7029, 24
      %v7061 = vpop.permute.xlu0 %7060
      %v7062 = vunpack.c.l.b16 %v5939
      %v7063 = vunpack.c.l.b16 %v5949
      %v7064 = vunpack.c.l.b16 %v5963
      %v7065 = vunpack.c.l.b16 %v5973
      %v7066 = vunpack.c.l.b16 %v5987
      %v7067 = vunpack.c.l.b16 %v5997
      %v7068 = vunpack.c.l.b16 %v6011
      %v7069 = vunpack.c.l.b16 %v6021
      %v7070 = vunpack.c.l.b16 %v6035
      %v7071 = vunpack.c.l.b16 %v6045
      %v7072 = vunpack.c.l.b16 %v6059
      %v7073 = vunpack.c.l.b16 %v6069
      %v7074 = vunpack.c.l.b16 %v6083
      %v7075 = vunpack.c.l.b16 %v6093
      %v7076 = vunpack.c.l.b16 %v6107
      %v7077 = vunpack.c.l.b16 %v6117
      %v7078 = vunpack.c.l.b16 %v6131
      %v7079 = vunpack.c.l.b16 %v6141
      %v7080 = vunpack.c.l.b16 %v6155
      %v7081 = vunpack.c.l.b16 %v6165
      %v7082 = vunpack.c.l.b16 %v6179
      %v7083 = vunpack.c.l.b16 %v6189
      %v7084 = vunpack.c.l.b16 %v6203
      %v7085 = vunpack.c.l.b16 %v6213
      %v7086 = vunpack.c.l.b16 %v6227
      %v7087 = vunpack.c.l.b16 %v6237
      %v7088 = vunpack.c.l.b16 %v6251
      %v7089 = vunpack.c.l.b16 %v6261
      %v7090 = vunpack.c.l.b16 %v6275
      %v7091 = vunpack.c.l.b16 %v6285
      %v7092 = vunpack.c.l.b16 %v6299
      %v7093 = vunpack.c.l.b16 %v6309
      %v7094 = vpack.c.b16 %v7063, %v7062
      %v7095 = vpack.c.b16 %v7065, %v7064
      %v7096 = vpack.c.b16 %v7067, %v7066
      %v7097 = vpack.c.b16 %v7069, %v7068
      %v7098 = vpack.c.b16 %v7071, %v7070
      %v7099 = vpack.c.b16 %v7073, %v7072
      %v7100 = vpack.c.b16 %v7075, %v7074
      %v7101 = vpack.c.b16 %v7077, %v7076
      %v7102 = vpack.c.b16 %v7079, %v7078
      %v7103 = vpack.c.b16 %v7081, %v7080
      %v7104 = vpack.c.b16 %v7083, %v7082
      %v7105 = vpack.c.b16 %v7085, %v7084
      %v7106 = vpack.c.b16 %v7087, %v7086
      %v7107 = vpack.c.b16 %v7089, %v7088
      %v7108 = vpack.c.b16 %v7091, %v7090
      %v7109 = vpack.c.b16 %v7093, %v7092
      %7110 = vrot.lane.b32.xlu0 %v7094, 28
      %v7111 = vpop.permute.xlu0 %7110
      %7112 = vrot.lane.b32.xlu0 %v7095, 28
      %v7113 = vpop.permute.xlu0 %7112
      %7114 = vrot.lane.b32.xlu0 %v7096, 28
      %v7115 = vpop.permute.xlu0 %7114
      %7116 = vrot.lane.b32.xlu0 %v7097, 28
      %v7117 = vpop.permute.xlu0 %7116
      %7118 = vrot.lane.b32.xlu0 %v7098, 28
      %v7119 = vpop.permute.xlu0 %7118
      %7120 = vrot.lane.b32.xlu0 %v7099, 28
      %v7121 = vpop.permute.xlu0 %7120
      %7122 = vrot.lane.b32.xlu0 %v7100, 28
      %v7123 = vpop.permute.xlu0 %7122
      %7124 = vrot.lane.b32.xlu0 %v7101, 28
      %v7125 = vpop.permute.xlu0 %7124
      %7126 = vrot.lane.b32.xlu0 %v7102, 28
      %v7127 = vpop.permute.xlu0 %7126
      %7128 = vrot.lane.b32.xlu0 %v7103, 28
      %v7129 = vpop.permute.xlu0 %7128
      %7130 = vrot.lane.b32.xlu0 %v7104, 28
      %v7131 = vpop.permute.xlu0 %7130
      %7132 = vrot.lane.b32.xlu0 %v7105, 28
      %v7133 = vpop.permute.xlu0 %7132
      %7134 = vrot.lane.b32.xlu0 %v7106, 28
      %v7135 = vpop.permute.xlu0 %7134
      %7136 = vrot.lane.b32.xlu0 %v7107, 28
      %v7137 = vpop.permute.xlu0 %7136
      %7138 = vrot.lane.b32.xlu0 %v7108, 28
      %v7139 = vpop.permute.xlu0 %7138
      %7140 = vrot.lane.b32.xlu0 %v7109, 28
      %v7141 = vpop.permute.xlu0 %7140
      %v7142 = vunpack.c.l.b16 %v6377
      %v7143 = vunpack.c.l.b16 %v6380
      %v7144 = vunpack.c.l.b16 %v6384
      %v7145 = vunpack.c.l.b16 %v6387
      %v7146 = vunpack.c.l.b16 %v6391
      %v7147 = vunpack.c.l.b16 %v6394
      %v7148 = vunpack.c.l.b16 %v6398
      %v7149 = vunpack.c.l.b16 %v6401
      %v7150 = vunpack.c.l.b16 %v6405
      %v7151 = vunpack.c.l.b16 %v6408
      %v7152 = vunpack.c.l.b16 %v6412
      %v7153 = vunpack.c.l.b16 %v6415
      %v7154 = vunpack.c.l.b16 %v6419
      %v7155 = vunpack.c.l.b16 %v6422
      %v7156 = vunpack.c.l.b16 %v6426
      %v7157 = vunpack.c.l.b16 %v6429
      %v7158 = vunpack.c.l.b16 %v6433
      %v7159 = vunpack.c.l.b16 %v6436
      %v7160 = vunpack.c.l.b16 %v6440
      %v7161 = vunpack.c.l.b16 %v6443
      %v7162 = vunpack.c.l.b16 %v6447
      %v7163 = vunpack.c.l.b16 %v6450
      %v7164 = vunpack.c.l.b16 %v6454
      %v7165 = vunpack.c.l.b16 %v6457
      %v7166 = vunpack.c.l.b16 %v6461
      %v7167 = vunpack.c.l.b16 %v6464
      %v7168 = vunpack.c.l.b16 %v6468
      %v7169 = vunpack.c.l.b16 %v6471
      %v7170 = vunpack.c.l.b16 %v6475
      %v7171 = vunpack.c.l.b16 %v6478
      %v7172 = vunpack.c.l.b16 %v6482
      %v7173 = vunpack.c.l.b16 %v6485
      %v7174 = vpack.c.b16 %v7143, %v7142
      %v7175 = vpack.c.b16 %v7145, %v7144
      %v7176 = vpack.c.b16 %v7147, %v7146
      %v7177 = vpack.c.b16 %v7149, %v7148
      %v7178 = vpack.c.b16 %v7151, %v7150
      %v7179 = vpack.c.b16 %v7153, %v7152
      %v7180 = vpack.c.b16 %v7155, %v7154
      %v7181 = vpack.c.b16 %v7157, %v7156
      %v7182 = vpack.c.b16 %v7159, %v7158
      %v7183 = vpack.c.b16 %v7161, %v7160
      %v7184 = vpack.c.b16 %v7163, %v7162
      %v7185 = vpack.c.b16 %v7165, %v7164
      %v7186 = vpack.c.b16 %v7167, %v7166
      %v7187 = vpack.c.b16 %v7169, %v7168
      %v7188 = vpack.c.b16 %v7171, %v7170
      %v7189 = vpack.c.b16 %v7173, %v7172
      %7190 = vrot.lane.b32.xlu0 %v7174, 32
      %v7191 = vpop.permute.xlu0 %7190
      %7192 = vrot.lane.b32.xlu0 %v7175, 32
      %v7193 = vpop.permute.xlu0 %7192
      %7194 = vrot.lane.b32.xlu0 %v7176, 32
      %v7195 = vpop.permute.xlu0 %7194
      %7196 = vrot.lane.b32.xlu0 %v7177, 32
      %v7197 = vpop.permute.xlu0 %7196
      %7198 = vrot.lane.b32.xlu0 %v7178, 32
      %v7199 = vpop.permute.xlu0 %7198
      %7200 = vrot.lane.b32.xlu0 %v7179, 32
      %v7201 = vpop.permute.xlu0 %7200
      %7202 = vrot.lane.b32.xlu0 %v7180, 32
      %v7203 = vpop.permute.xlu0 %7202
      %7204 = vrot.lane.b32.xlu0 %v7181, 32
      %v7205 = vpop.permute.xlu0 %7204
      %7206 = vrot.lane.b32.xlu0 %v7182, 32
      %v7207 = vpop.permute.xlu0 %7206
      %7208 = vrot.lane.b32.xlu0 %v7183, 32
      %v7209 = vpop.permute.xlu0 %7208
      %7210 = vrot.lane.b32.xlu0 %v7184, 32
      %v7211 = vpop.permute.xlu0 %7210
      %7212 = vrot.lane.b32.xlu0 %v7185, 32
      %v7213 = vpop.permute.xlu0 %7212
      %7214 = vrot.lane.b32.xlu0 %v7186, 32
      %v7215 = vpop.permute.xlu0 %7214
      %7216 = vrot.lane.b32.xlu0 %v7187, 32
      %v7217 = vpop.permute.xlu0 %7216
      %7218 = vrot.lane.b32.xlu0 %v7188, 32
      %v7219 = vpop.permute.xlu0 %7218
      %7220 = vrot.lane.b32.xlu0 %v7189, 32
      %v7221 = vpop.permute.xlu0 %7220
      %v7224 = vsel %vm3595, %v6534, %v6599
      %v7227 = vsel %vm3595, %v6535, %v6601
      %v7230 = vsel %vm3595, %v6536, %v6603
      %v7233 = vsel %vm3595, %v6537, %v6605
      %v7236 = vsel %vm3595, %v6538, %v6607
      %v7239 = vsel %vm3595, %v6539, %v6609
      %v7242 = vsel %vm3595, %v6540, %v6611
      %v7245 = vsel %vm3595, %v6541, %v6613
      %v7248 = vsel %vm3595, %v6542, %v6615
      %v7251 = vsel %vm3595, %v6543, %v6617
      %v7254 = vsel %vm3595, %v6544, %v6619
      %v7257 = vsel %vm3595, %v6545, %v6621
      %v7260 = vsel %vm3595, %v6546, %v6623
      %v7263 = vsel %vm3595, %v6547, %v6625
      %v7266 = vsel %vm3595, %v6548, %v6627
      %v7269 = vsel %vm3595, %v6549, %v6629
      %v7271 = vsel %vm3644, %v7224, %v6679
      %v7273 = vsel %vm3644, %v7227, %v6681
      %v7275 = vsel %vm3644, %v7230, %v6683
      %v7277 = vsel %vm3644, %v7233, %v6685
      %v7279 = vsel %vm3644, %v7236, %v6687
      %v7281 = vsel %vm3644, %v7239, %v6689
      %v7283 = vsel %vm3644, %v7242, %v6691
      %v7285 = vsel %vm3644, %v7245, %v6693
      %v7287 = vsel %vm3644, %v7248, %v6695
      %v7289 = vsel %vm3644, %v7251, %v6697
      %v7291 = vsel %vm3644, %v7254, %v6699
      %v7293 = vsel %vm3644, %v7257, %v6701
      %v7295 = vsel %vm3644, %v7260, %v6703
      %v7297 = vsel %vm3644, %v7263, %v6705
      %v7299 = vsel %vm3644, %v7266, %v6707
      %v7301 = vsel %vm3644, %v7269, %v6709
      %v7303 = vsel %vm3677, %v7271, %v6775
      %v7305 = vsel %vm3677, %v7273, %v6777
      %v7307 = vsel %vm3677, %v7275, %v6779
      %v7309 = vsel %vm3677, %v7277, %v6781
      %v7311 = vsel %vm3677, %v7279, %v6783
      %v7313 = vsel %vm3677, %v7281, %v6785
      %v7315 = vsel %vm3677, %v7283, %v6787
      %v7317 = vsel %vm3677, %v7285, %v6789
      %v7319 = vsel %vm3677, %v7287, %v6791
      %v7321 = vsel %vm3677, %v7289, %v6793
      %v7323 = vsel %vm3677, %v7291, %v6795
      %v7325 = vsel %vm3677, %v7293, %v6797
      %v7327 = vsel %vm3677, %v7295, %v6799
      %v7329 = vsel %vm3677, %v7297, %v6801
      %v7331 = vsel %vm3677, %v7299, %v6803
      %v7333 = vsel %vm3677, %v7301, %v6805
      %v7335 = vsel %vm3710, %v7303, %v6855
      %v7337 = vsel %vm3710, %v7305, %v6857
      %v7339 = vsel %vm3710, %v7307, %v6859
      %v7341 = vsel %vm3710, %v7309, %v6861
      %v7343 = vsel %vm3710, %v7311, %v6863
      %v7345 = vsel %vm3710, %v7313, %v6865
      %v7347 = vsel %vm3710, %v7315, %v6867
      %v7349 = vsel %vm3710, %v7317, %v6869
      %v7351 = vsel %vm3710, %v7319, %v6871
      %v7353 = vsel %vm3710, %v7321, %v6873
      %v7355 = vsel %vm3710, %v7323, %v6875
      %v7357 = vsel %vm3710, %v7325, %v6877
      %v7359 = vsel %vm3710, %v7327, %v6879
      %v7361 = vsel %vm3710, %v7329, %v6881
      %v7363 = vsel %vm3710, %v7331, %v6883
      %v7365 = vsel %vm3710, %v7333, %v6885
      %v7367 = vsel %vm3743, %v7335, %v6935
      %v7369 = vsel %vm3743, %v7337, %v6937
      %v7371 = vsel %vm3743, %v7339, %v6939
      %v7373 = vsel %vm3743, %v7341, %v6941
      %v7375 = vsel %vm3743, %v7343, %v6943
      %v7377 = vsel %vm3743, %v7345, %v6945
      %v7379 = vsel %vm3743, %v7347, %v6947
      %v7381 = vsel %vm3743, %v7349, %v6949
      %v7383 = vsel %vm3743, %v7351, %v6951
      %v7385 = vsel %vm3743, %v7353, %v6953
      %v7387 = vsel %vm3743, %v7355, %v6955
      %v7389 = vsel %vm3743, %v7357, %v6957
      %v7391 = vsel %vm3743, %v7359, %v6959
      %v7393 = vsel %vm3743, %v7361, %v6961
      %v7395 = vsel %vm3743, %v7363, %v6963
      %v7397 = vsel %vm3743, %v7365, %v6965
      %v7399 = vsel %vm3776, %v7367, %v7031
      %v7401 = vsel %vm3776, %v7369, %v7033
      %v7403 = vsel %vm3776, %v7371, %v7035
      %v7405 = vsel %vm3776, %v7373, %v7037
      %v7407 = vsel %vm3776, %v7375, %v7039
      %v7409 = vsel %vm3776, %v7377, %v7041
      %v7411 = vsel %vm3776, %v7379, %v7043
      %v7413 = vsel %vm3776, %v7381, %v7045
      %v7415 = vsel %vm3776, %v7383, %v7047
      %v7417 = vsel %vm3776, %v7385, %v7049
      %v7419 = vsel %vm3776, %v7387, %v7051
      %v7421 = vsel %vm3776, %v7389, %v7053
      %v7423 = vsel %vm3776, %v7391, %v7055
      %v7425 = vsel %vm3776, %v7393, %v7057
      %v7427 = vsel %vm3776, %v7395, %v7059
      %v7429 = vsel %vm3776, %v7397, %v7061
      %v7431 = vsel %vm3809, %v7399, %v7111
      %v7433 = vsel %vm3809, %v7401, %v7113
      %v7435 = vsel %vm3809, %v7403, %v7115
      %v7437 = vsel %vm3809, %v7405, %v7117
      %v7439 = vsel %vm3809, %v7407, %v7119
      %v7441 = vsel %vm3809, %v7409, %v7121
      %v7443 = vsel %vm3809, %v7411, %v7123
      %v7445 = vsel %vm3809, %v7413, %v7125
      %v7447 = vsel %vm3809, %v7415, %v7127
      %v7449 = vsel %vm3809, %v7417, %v7129
      %v7451 = vsel %vm3809, %v7419, %v7131
      %v7453 = vsel %vm3809, %v7421, %v7133
      %v7455 = vsel %vm3809, %v7423, %v7135
      %v7457 = vsel %vm3809, %v7425, %v7137
      %v7459 = vsel %vm3809, %v7427, %v7139
      %v7461 = vsel %vm3809, %v7429, %v7141
      %v7463 = vsel %vm3842, %v7431, %v7191
      %v7465 = vsel %vm3842, %v7433, %v7193
      %v7467 = vsel %vm3842, %v7435, %v7195
      %v7469 = vsel %vm3842, %v7437, %v7197
      %v7471 = vsel %vm3842, %v7439, %v7199
      %v7473 = vsel %vm3842, %v7441, %v7201
      %v7475 = vsel %vm3842, %v7443, %v7203
      %v7477 = vsel %vm3842, %v7445, %v7205
      %v7479 = vsel %vm3842, %v7447, %v7207
      %v7481 = vsel %vm3842, %v7449, %v7209
      %v7483 = vsel %vm3842, %v7451, %v7211
      %v7485 = vsel %vm3842, %v7453, %v7213
      %v7487 = vsel %vm3842, %v7455, %v7215
      %v7489 = vsel %vm3842, %v7457, %v7217
      %v7491 = vsel %vm3842, %v7459, %v7219
      %v7493 = vsel %vm3842, %v7461, %v7221
      %v7494 = vld [vmem:[%s3] sm:$0xf]
      %v7495 = vld [vmem:[%s3 + $0x4] sm:$0xf]
      %v7496 = vld [vmem:[%s3 + $0x8] sm:$0xf]
      %v7497 = vld [vmem:[%s3 + $0xc] sm:$0xf]
      %v7498 = vld [vmem:[%s3 + $0x10] sm:$0x3]
      %v7499 = vld [vmem:[%s4] sm:$0x1]
      %v7501 = vlaneseq
      %v7502 = vshrl.u32 %v7501, 7
      %v7503 = vsub.s32 0, %v7502
      %v7504 = vrot.slane %v7499, %v7503
      %v7511 = vunpack.c.l.b16 %v7494
      %v7512 = vunpack.c.l.b16 %v7495
      %v7513 = vunpack.c.l.b16 %v7496
      %v7514 = vunpack.c.l.b16 %v7497
      %v7515 = vunpack.c.l.b16 %v7498
      %v7516 = vpack.c.b16 %v7512, %v7511
      %v7517 = vpack.c.b16 %v7514, %v7513
      %v7518 = vpack.c.b16 %v7515, %v7515
      %v7521 = vsel %vm3902, %v7463, 0
      %v7523 = vsel %vm3902, %v7465, 0
      %v7525 = vsel %vm3902, %v7467, 0
      %v7527 = vsel %vm3902, %v7469, 0
      %v7529 = vsel %vm3902, %v7471, 0
      %v7531 = vsel %vm3902, %v7473, 0
      %v7533 = vsel %vm3902, %v7475, 0
      %v7535 = vsel %vm3902, %v7477, 0
      %v7537 = vsel %vm3902, %v7479, 0
      %v7539 = vsel %vm3902, %v7481, 0
      %v7541 = vsel %vm3902, %v7483, 0
      %v7543 = vsel %vm3902, %v7485, 0
      %v7545 = vsel %vm3902, %v7487, 0
      %v7547 = vsel %vm3902, %v7489, 0
      %v7549 = vsel %vm3902, %v7491, 0
      %v7551 = vsel %vm3902, %v7493, 0
      %v7554 = vsel %vm3935, %v7518, 0
      %7556 = vmatprep.subr.bf16.mxu0 0
      %7557 = vmatpush1.bf16.msra.mxu0 %v7516
      %7558 = vmatprep.subr.bf16.mxu0 0
      %7559 = vmatpush1.bf16.msra.mxu0 %v7517
      %7560 = vmatprep.subr.bf16.mxu0 0
      %7561 = vmatpush1.bf16.msra.mxu0 %v7554
      %7562 = vmatprep.subr.bf16.mxu0 0
      %7563 = vmatpush1.bf16.msra.mxu0 0
      %7564 = vmatprep.subr.bf16.mxu0 0
      %7565 = vmatpush1.bf16.msra.mxu0 0
      %7566 = vmatprep.subr.bf16.mxu0 0
      %7567 = vmatpush1.bf16.msra.mxu0 0
      %7568 = vmatprep.subr.bf16.mxu0 0
      %7569 = vmatpush1.bf16.msra.mxu0 0
      %7570 = vmatprep.subr.bf16.mxu0 0
      %7571 = vmatpush1.bf16.msra.mxu0 0
      %7572 = vmatprep.subr.bf16.mxu0 0
      %7573 = vmatpush1.bf16.msra.mxu0 0
      %7574 = vmatprep.subr.bf16.mxu0 0
      %7575 = vmatpush1.bf16.msra.mxu0 0
      %7576 = vmatprep.subr.bf16.mxu0 0
      %7577 = vmatpush1.bf16.msra.mxu0 0
      %7578 = vmatprep.subr.bf16.mxu0 0
      %7579 = vmatpush1.bf16.msra.mxu0 0
      %7580 = vmatprep.subr.bf16.mxu0 0
      %7581 = vmatpush1.bf16.msra.mxu0 0
      %7582 = vmatprep.subr.bf16.mxu0 0
      %7583 = vmatpush1.bf16.msra.mxu0 0
      %7584 = vmatprep.subr.bf16.mxu0 0
      %7585 = vmatpush1.bf16.msra.mxu0 0
      %7586 = vmatprep.subr.bf16.mxu0 0
      %7587 = vmatpush1.bf16.msra.mxu0 0
      %7588 = vmatprep.mubr.bf16.mxu0 0
      %7589 = vmatmul.mubr.bf16.gmra.mrb[0].mxu0 %v7521
      %v7590 = vpop.f32.mrb[0].mxu0
      %v7591 = vadd.f32 %v7504, %v7590
      %v7592 = vpop.f32.mrb[0].mxu0
      %v7593 = vpop.f32.mrb[0].mxu0
      %v7594 = vadd.f32 %v7504, %v7593
      %v7595 = vpop.f32.mrb[0].mxu0
      %7596 = vmatprep.mubr.bf16.mxu0 0
      %7597 = vmatmul.mubr.bf16.gmra.mrb[0].mxu0 %v7523
      %v7598 = vpop.f32.mrb[0].mxu0
      %v7599 = vadd.f32 %v7504, %v7598
      %v7600 = vpop.f32.mrb[0].mxu0
      %v7601 = vpop.f32.mrb[0].mxu0
      %v7602 = vadd.f32 %v7504, %v7601
      %v7603 = vpop.f32.mrb[0].mxu0
      %7604 = vmatprep.mubr.bf16.mxu0 0
      %7605 = vmatmul.mubr.bf16.gmra.mrb[0].mxu0 %v7525
      %v7606 = vpop.f32.mrb[0].mxu0
      %v7607 = vadd.f32 %v7504, %v7606
      %v7608 = vpop.f32.mrb[0].mxu0
      %v7609 = vpop.f32.mrb[0].mxu0
      %v7610 = vadd.f32 %v7504, %v7609
      %v7611 = vpop.f32.mrb[0].mxu0
      %7612 = vmatprep.mubr.bf16.mxu0 0
      %7613 = vmatmul.mubr.bf16.gmra.mrb[0].mxu0 %v7527
      %v7614 = vpop.f32.mrb[0].mxu0
      %v7615 = vadd.f32 %v7504, %v7614
      %v7616 = vpop.f32.mrb[0].mxu0
      %v7617 = vpop.f32.mrb[0].mxu0
      %v7618 = vadd.f32 %v7504, %v7617
      %v7619 = vpop.f32.mrb[0].mxu0
      %7620 = vmatprep.mubr.bf16.mxu0 0
      %7621 = vmatmul.mubr.bf16.gmra.mrb[0].mxu0 %v7529
      %v7622 = vpop.f32.mrb[0].mxu0
      %v7623 = vadd.f32 %v7504, %v7622
      %v7624 = vpop.f32.mrb[0].mxu0
      %v7625 = vpop.f32.mrb[0].mxu0
      %v7626 = vadd.f32 %v7504, %v7625
      %v7627 = vpop.f32.mrb[0].mxu0
      %7628 = vmatprep.mubr.bf16.mxu0 0
      %7629 = vmatmul.mubr.bf16.gmra.mrb[0].mxu0 %v7531
      %v7630 = vpop.f32.mrb[0].mxu0
      %v7631 = vadd.f32 %v7504, %v7630
      %v7632 = vpop.f32.mrb[0].mxu0
      %v7633 = vpop.f32.mrb[0].mxu0
      %v7634 = vadd.f32 %v7504, %v7633
      %v7635 = vpop.f32.mrb[0].mxu0
      %7636 = vmatprep.mubr.bf16.mxu0 0
      %7637 = vmatmul.mubr.bf16.gmra.mrb[0].mxu0 %v7533
      %v7638 = vpop.f32.mrb[0].mxu0
      %v7639 = vadd.f32 %v7504, %v7638
      %v7640 = vpop.f32.mrb[0].mxu0
      %v7641 = vpop.f32.mrb[0].mxu0
      %v7642 = vadd.f32 %v7504, %v7641
      %v7643 = vpop.f32.mrb[0].mxu0
      %7644 = vmatprep.mubr.bf16.mxu0 0
      %7645 = vmatmul.mubr.bf16.gmra.mrb[0].mxu0 %v7535
      %v7646 = vpop.f32.mrb[0].mxu0
      %v7647 = vadd.f32 %v7504, %v7646
      %v7648 = vpop.f32.mrb[0].mxu0
      %v7649 = vpop.f32.mrb[0].mxu0
      %v7650 = vadd.f32 %v7504, %v7649
      %v7651 = vpop.f32.mrb[0].mxu0
      %7652 = vmatprep.mubr.bf16.mxu0 0
      %7653 = vmatmul.mubr.bf16.gmra.mrb[0].mxu0 %v7537
      %v7654 = vpop.f32.mrb[0].mxu0
      %v7655 = vadd.f32 %v7504, %v7654
      %v7656 = vpop.f32.mrb[0].mxu0
      %v7657 = vpop.f32.mrb[0].mxu0
      %v7658 = vadd.f32 %v7504, %v7657
      %v7659 = vpop.f32.mrb[0].mxu0
      %7660 = vmatprep.mubr.bf16.mxu0 0
      %7661 = vmatmul.mubr.bf16.gmra.mrb[0].mxu0 %v7539
      %v7662 = vpop.f32.mrb[0].mxu0
      %v7663 = vadd.f32 %v7504, %v7662
      %v7664 = vpop.f32.mrb[0].mxu0
      %v7665 = vpop.f32.mrb[0].mxu0
      %v7666 = vadd.f32 %v7504, %v7665
      %v7667 = vpop.f32.mrb[0].mxu0
      %7668 = vmatprep.mubr.bf16.mxu0 0
      %7669 = vmatmul.mubr.bf16.gmra.mrb[0].mxu0 %v7541
      %v7670 = vpop.f32.mrb[0].mxu0
      %v7671 = vadd.f32 %v7504, %v7670
      %v7672 = vpop.f32.mrb[0].mxu0
      %v7673 = vpop.f32.mrb[0].mxu0
      %v7674 = vadd.f32 %v7504, %v7673
      %v7675 = vpop.f32.mrb[0].mxu0
      %7676 = vmatprep.mubr.bf16.mxu0 0
      %7677 = vmatmul.mubr.bf16.gmra.mrb[0].mxu0 %v7543
      %v7678 = vpop.f32.mrb[0].mxu0
      %v7679 = vadd.f32 %v7504, %v7678
      %v7680 = vpop.f32.mrb[0].mxu0
      %v7681 = vpop.f32.mrb[0].mxu0
      %v7682 = vadd.f32 %v7504, %v7681
      %v7683 = vpop.f32.mrb[0].mxu0
      %7684 = vmatprep.mubr.bf16.mxu0 0
      %7685 = vmatmul.mubr.bf16.gmra.mrb[0].mxu0 %v7545
      %v7686 = vpop.f32.mrb[0].mxu0
      %v7687 = vadd.f32 %v7504, %v7686
      %v7688 = vpop.f32.mrb[0].mxu0
      %v7689 = vpop.f32.mrb[0].mxu0
      %v7690 = vadd.f32 %v7504, %v7689
      %v7691 = vpop.f32.mrb[0].mxu0
      %7692 = vmatprep.mubr.bf16.mxu0 0
      %7693 = vmatmul.mubr.bf16.gmra.mrb[0].mxu0 %v7547
      %v7694 = vpop.f32.mrb[0].mxu0
      %v7695 = vadd.f32 %v7504, %v7694
      %v7696 = vpop.f32.mrb[0].mxu0
      %v7697 = vpop.f32.mrb[0].mxu0
      %v7698 = vadd.f32 %v7504, %v7697
      %v7699 = vpop.f32.mrb[0].mxu0
      %7700 = vmatprep.mubr.bf16.mxu0 0
      %7701 = vmatmul.mubr.bf16.gmra.mrb[0].mxu0 %v7549
      %v7702 = vpop.f32.mrb[0].mxu0
      %v7703 = vadd.f32 %v7504, %v7702
      %v7704 = vpop.f32.mrb[0].mxu0
      %v7705 = vpop.f32.mrb[0].mxu0
      %v7706 = vadd.f32 %v7504, %v7705
      %v7707 = vpop.f32.mrb[0].mxu0
      %7708 = vmatprep.mubr.bf16.mxu0 0
      %7709 = vmatmul.mubr.bf16.gmra.mrb[0].mxu0 %v7551
      %v7710 = vpop.f32.mrb[0].mxu0
      %v7711 = vadd.f32 %v7504, %v7710
      %v7712 = vpop.f32.mrb[0].mxu0
      %v7713 = vpop.f32.mrb[0].mxu0
      %v7714 = vadd.f32 %v7504, %v7713
      %v7715 = vpop.f32.mrb[0].mxu0
      %7716 = vdwg.mxu0
      %v7717 = vadd.f32 %v7591, %v463
      %v7718 = vadd.f32 %v7594, %v464
      %v7719 = vadd.f32 %v7599, %v465
      %v7720 = vadd.f32 %v7602, %v466
      %v7721 = vadd.f32 %v7607, %v467
      %v7722 = vadd.f32 %v7610, %v468
      %v7723 = vadd.f32 %v7615, %v469
      %v7724 = vadd.f32 %v7618, %v470
      %v7725 = vadd.f32 %v7623, %v471
      %v7726 = vadd.f32 %v7626, %v472
      %v7727 = vadd.f32 %v7631, %v473
      %v7728 = vadd.f32 %v7634, %v474
      %v7729 = vadd.f32 %v7639, %v475
      %v7730 = vadd.f32 %v7642, %v476
      %v7731 = vadd.f32 %v7647, %v477
      %v7732 = vadd.f32 %v7650, %v478
      %v7733 = vadd.f32 %v7655, %v479
      %v7734 = vadd.f32 %v7658, %v480
      %v7735 = vadd.f32 %v7663, %v481
      %v7736 = vadd.f32 %v7666, %v482
      %v7737 = vadd.f32 %v7671, %v483
      %v7738 = vadd.f32 %v7674, %v484
      %v7739 = vadd.f32 %v7679, %v485
      %v7740 = vadd.f32 %v7682, %v486
      %v7741 = vadd.f32 %v7687, %v487
      %v7742 = vadd.f32 %v7690, %v488
      %v7743 = vadd.f32 %v7695, %v489
      %v7744 = vadd.f32 %v7698, %v490
      %v7745 = vadd.f32 %v7703, %v491
      %v7746 = vadd.f32 %v7706, %v492
      %v7747 = vadd.f32 %v7711, %v493
      %v7748 = vadd.f32 %v7714, %v494
      %v7749 = vmax.f32 %v7717, 0.0
      %v7750 = vmax.f32 %v7718, 0.0
      %v7751 = vmax.f32 %v7719, 0.0
      %v7752 = vmax.f32 %v7720, 0.0
      %v7753 = vmax.f32 %v7721, 0.0
      %v7754 = vmax.f32 %v7722, 0.0
      %v7755 = vmax.f32 %v7723, 0.0
      %v7756 = vmax.f32 %v7724, 0.0
      %v7757 = vmax.f32 %v7725, 0.0
      %v7758 = vmax.f32 %v7726, 0.0
      %v7759 = vmax.f32 %v7727, 0.0
      %v7760 = vmax.f32 %v7728, 0.0
      %v7761 = vmax.f32 %v7729, 0.0
      %v7762 = vmax.f32 %v7730, 0.0
      %v7763 = vmax.f32 %v7731, 0.0
      %v7764 = vmax.f32 %v7732, 0.0
      %v7765 = vmax.f32 %v7733, 0.0
      %v7766 = vmax.f32 %v7734, 0.0
      %v7767 = vmax.f32 %v7735, 0.0
      %v7768 = vmax.f32 %v7736, 0.0
      %v7769 = vmax.f32 %v7737, 0.0
      %v7770 = vmax.f32 %v7738, 0.0
      %v7771 = vmax.f32 %v7739, 0.0
      %v7772 = vmax.f32 %v7740, 0.0
      %v7773 = vmax.f32 %v7741, 0.0
      %v7774 = vmax.f32 %v7742, 0.0
      %v7775 = vmax.f32 %v7743, 0.0
      %v7776 = vmax.f32 %v7744, 0.0
      %v7777 = vmax.f32 %v7745, 0.0
      %v7778 = vmax.f32 %v7746, 0.0
      %v7779 = vmax.f32 %v7747, 0.0
      %v7780 = vmax.f32 %v7748, 0.0
      %7781 = vst.msk [vmem:[%s224] sm:$0xff] %vm3595, %v7749
      %7782 = vst.msk [vmem:[%s224 + $0x8] sm:$0xff] %vm3595, %v7750
      %7783 = vst.msk [vmem:[%s224 + $0x10] sm:$0xff] %vm3595, %v7751
      %7784 = vst.msk [vmem:[%s224 + $0x18] sm:$0xff] %vm3595, %v7752
      %7785 = vst.msk [vmem:[%s224 + $0x20] sm:$0xff] %vm3595, %v7753
      %7786 = vst.msk [vmem:[%s224 + $0x28] sm:$0xff] %vm3595, %v7754
      %7787 = vst.msk [vmem:[%s224 + $0x30] sm:$0xff] %vm3595, %v7755
      %7788 = vst.msk [vmem:[%s224 + $0x38] sm:$0xff] %vm3595, %v7756
      %7789 = vst.msk [vmem:[%s224 + $0x40] sm:$0xff] %vm3595, %v7757
      %7790 = vst.msk [vmem:[%s224 + $0x48] sm:$0xff] %vm3595, %v7758
      %7791 = vst.msk [vmem:[%s224 + $0x50] sm:$0xff] %vm3595, %v7759
      %7792 = vst.msk [vmem:[%s224 + $0x58] sm:$0xff] %vm3595, %v7760
      %7793 = vst.msk [vmem:[%s224 + $0x60] sm:$0xff] %vm3595, %v7761
      %7794 = vst.msk [vmem:[%s224 + $0x68] sm:$0xff] %vm3595, %v7762
      %7795 = vst.msk [vmem:[%s224 + $0x70] sm:$0xff] %vm3595, %v7763
      %7796 = vst.msk [vmem:[%s224 + $0x78] sm:$0xff] %vm3595, %v7764
      %7797 = vst.msk [vmem:[%s224 + $0x80] sm:$0xff] %vm3595, %v7765
      %7798 = vst.msk [vmem:[%s224 + $0x88] sm:$0xff] %vm3595, %v7766
      %7799 = vst.msk [vmem:[%s224 + $0x90] sm:$0xff] %vm3595, %v7767
      %7800 = vst.msk [vmem:[%s224 + $0x98] sm:$0xff] %vm3595, %v7768
      %7801 = vst.msk [vmem:[%s224 + $0xa0] sm:$0xff] %vm3595, %v7769
      %7802 = vst.msk [vmem:[%s224 + $0xa8] sm:$0xff] %vm3595, %v7770
      %7803 = vst.msk [vmem:[%s224 + $0xb0] sm:$0xff] %vm3595, %v7771
      %7804 = vst.msk [vmem:[%s224 + $0xb8] sm:$0xff] %vm3595, %v7772
      %7805 = vst.msk [vmem:[%s224 + $0xc0] sm:$0xff] %vm3595, %v7773
      %7806 = vst.msk [vmem:[%s224 + $0xc8] sm:$0xff] %vm3595, %v7774
      %7807 = vst.msk [vmem:[%s224 + $0xd0] sm:$0xff] %vm3595, %v7775
      %7808 = vst.msk [vmem:[%s224 + $0xd8] sm:$0xff] %vm3595, %v7776
      %7809 = vst.msk [vmem:[%s224 + $0xe0] sm:$0xff] %vm3595, %v7777
      %7810 = vst.msk [vmem:[%s224 + $0xe8] sm:$0xff] %vm3595, %v7778
      %7811 = vst.msk [vmem:[%s224 + $0xf0] sm:$0xff] %vm3595, %v7779
      %7812 = vst.msk [vmem:[%s224 + $0xf8] sm:$0xff] %vm3595, %v7780
      %p7813 = scmp.lt.s32.totalorder %s16, 1
      %s7814 = scalar_select %p7813, %s16, 1
      %s7815 = smul.addr %s7814, 32
      %s7816 = smul.addr %s7815, 8
      %s7817 = scalar_lea.vmem %s5, %s7816
      // Predicated region
      $region41: #{tpu_custom_call.1} parent=39 // pred_check
        %p7818 = pneg %p144
      $region42: #{tpu_custom_call.1} parent=39 // pred_check_branch
        %7820 = sbr.rel (%p7818) target = $region44
      $region43: #{tpu_custom_call.1} parent=39 // pred_region
        _
      $region44: #{tpu_custom_call.1} parent=39 // pred_fallthru
        _
    $region40: #{tpu_custom_call.1} parent=5 // pred_fallthru
      _
    %p7821 = scmp.le.s32.totalorder 2, %s11
    // Predicated region
    $region45: #{tpu_custom_call.1} parent=5 // pred_check
      %p7822 = pneg %p7821
    $region46: #{tpu_custom_call.1} parent=5 // pred_check_branch
      %7824 = sbr.rel (%p7822) target = $region48
    $region47: #{tpu_custom_call.1} parent=5 // pred_region
      %s7825 = ssub.s32 %s11, 2
      // Predicated region
      $region49: #{tpu_custom_call.1} parent=47 // pred_check
        %p7826 = pneg %p150
      $region50: #{tpu_custom_call.1} parent=47 // pred_check_branch
        %7828 = sbr.rel (%p7826) target = $region52
      $region51: #{tpu_custom_call.1} parent=47 // pred_region
        %p7829 = scmp.lt.s32.totalorder %s17, 1
        %s7830 = scalar_select %p7829, %s17, 1
        %s7831 = smul.addr %s7830, 32
        %s7832 = smul.addr %s7831, 8
        %s7833 = scalar_lea.vmem %s5, %s7832
      $region52: #{tpu_custom_call.1} parent=47 // pred_fallthru
        _
    $region48: #{tpu_custom_call.1} parent=5 // pred_fallthru
      _
  $region6: #{tpu_custom_call.1} parent=0 // loop_footer
    %s15 = sadd.s32 1, %s11
  $region7: #{tpu_custom_call.1} parent=0 // loop_footer_branch
    %10 = sbr.rel target = $region3
  $region8: #{tpu_custom_call.1} parent=0 // loop_exit
    _

</llo_original>
